<compile_context>
chip_gen: v6e
topology: v6e:2x2x1
jax: 0.10.0
libtpu: 0.0.40
codegen_flags: <defaults>
</compile_context>

<pallas_src>
import functools

import jax
import jax.numpy as jnp
import numpy as np
from jax.experimental import pallas as pl
from jax.experimental.pallas import tpu as pltpu

GN_EPS = 1e-5
NUM_GROUPS = 32
LANE = 128


# --------------------------------------------------------------------------- kernel

def _groupnorm_silu(a, gmat, gamma, beta, count):
    """Per-sample GroupNorm(32) + SiLU.

    a:     (B, HW, C) f32 activations
    gmat:  (C, G) f32 one-hot channel->group matrix (all-zero rows for padded channels)
    gamma/beta: (1, C) f32 (zero on padded channels)
    count: python float, #elements per (sample, group) = HW * real_group_size
    returns bf16 (B, HW, C)  (feeds a bf16 pad buffer / MXU operand).
    """
    B = a.shape[0]
    s1 = jnp.sum(a, axis=1)                                   # (B, C)
    s2 = jnp.sum(a * a, axis=1)                               # (B, C)
    # one stacked (2B, C) @ (C, G) matmul for both moment reductions
    g = jnp.dot(jnp.concatenate([s1, s2], axis=0), gmat,
                preferred_element_type=jnp.float32)           # (2B, G)
    mean_g = g[:B] / count
    var_g = g[B:] / count - mean_g * mean_g                   # biased var (PyTorch GN)
    rstd_g = jax.lax.rsqrt(var_g + GN_EPS)

    def back(v):  # (B, G) -> (B, C): contract on G (avoids transposing gmat)
        return jax.lax.dot_general(v, gmat, (((1,), (1,)), ((), ())),
                                   preferred_element_type=jnp.float32)

    # Padded channels: gmat rows are zero -> back(.) = 0, gamma/beta = 0 -> xn = 0.
    xn = (a - back(mean_g)[:, None, :]) * back(rstd_g)[:, None, :] * gamma + beta
    return (xn * jax.nn.sigmoid(xn)).astype(jnp.bfloat16)     # SiLU, bf16 out


def _im2col_3x3(a, pad_ref):
    """im2col for a 3x3 'SAME' conv, K folded tap-major (t = dy*3+dx) then channel.

    a:       (B, HW, C) bf16 activations
    pad_ref: (B, H+2, W+2, C) bf16 persistent VMEM scratch
    returns: (B*H*W, 9*C) bf16
    """
    B, Hp, Wp, C = pad_ref.shape
    H, W = Hp - 2, Wp - 2
    # Zero the halo unconditionally every step: border-only writes are cheap and this
    # keeps the kernel correct under megacore-parallel grid execution (no reliance on
    # a program_id==0 init step).
    zr = jnp.zeros((B, 1, Wp, C), pad_ref.dtype)
    zc = jnp.zeros((B, Hp, 1, C), pad_ref.dtype)
    pad_ref[:, 0:1, :, :] = zr
    pad_ref[:, Hp - 1:Hp, :, :] = zr
    pad_ref[:, :, 0:1, :] = zc
    pad_ref[:, :, Wp - 1:Wp, :] = zc
    pad_ref[:, 1:H + 1, 1:W + 1, :] = a.reshape(B, H, W, C)
    p = pad_ref[...]
    # fold the 3 dx taps into the lane (channel) axis: (B, H+2, W, 3*C)
    xw = jnp.concatenate(
        [p[:, :, 0:W, :], p[:, :, 1:W + 1, :], p[:, :, 2:W + 2, :]], axis=-1)
    # fold the 3 dy taps (cheap major-dim slices): (B, H, W, 9*C)
    col = jnp.concatenate([xw[:, 0:H], xw[:, 1:H + 1], xw[:, 2:H + 2]], axis=-1)
    return col.reshape(B * H * W, 9 * C)


def resnet_block_kernel(x_ref, embo_ref,
                        gn1_g_ref, gn1_b_ref, gmat1_ref, b1_ref,
                        gn2_g_ref, gn2_b_ref, gmat2_ref, b2s_ref,
                        w1_ref, w2s_ref,
                        out_ref,
                        pad1_ref, pad2_ref,
                        *, count1, count2):
    B, H, W, Cin = x_ref.shape
    Cout = out_ref.shape[3]
    HW = H * W

    x = x_ref[...].reshape(B, HW, Cin)                 # bf16 block
    x_f32 = x.astype(jnp.float32)                      # f32 for GN statistics

    # in_layers: GroupNorm(32, Cin) -> SiLU -> Conv3x3(pad=1)
    h1 = _groupnorm_silu(x_f32, gmat1_ref[...], gn1_g_ref[...], gn1_b_ref[...], count1)
    col1 = _im2col_3x3(h1, pad1_ref)                                  # (B*HW, 9*Cin) bf16
    h = jnp.dot(col1, w1_ref[...], preferred_element_type=jnp.float32) + b1_ref[...]

    # emb_layers (SiLU -> Linear) was hoisted to the wrapper; just add the (1,Cout) row.
    h = h.reshape(B, HW, Cout) + embo_ref[...]

    # out_layers: GroupNorm(32, Cout) -> SiLU -> Dropout(identity) -> Conv3x3(pad=1),
    # with the 1x1 shortcut fused into the same matmul (x concatenated along K).
    h2 = _groupnorm_silu(h, gmat2_ref[...], gn2_g_ref[...], gn2_b_ref[...], count2)
    col2 = _im2col_3x3(h2, pad2_ref)                                  # (B*HW, 9*Cout) bf16
    col2s = jnp.concatenate([col2, x.reshape(B * HW, Cin)], axis=-1)  # + shortcut input
    out = jnp.dot(col2s, w2s_ref[...], preferred_element_type=jnp.float32) + b2s_ref[...]

    out_ref[...] = out.reshape(B, H, W, Cout).astype(out_ref.dtype)


# --------------------------------------------------------------------------- wrapper

def _round_up(x, m):
    return ((x + m - 1) // m) * m


def _pad_last(a, target):
    pad = target - a.shape[-1]
    if pad == 0:
        return a
    return jnp.pad(a, [(0, 0)] * (a.ndim - 1) + [(0, pad)])


def make_group_matrix(C, C_pad):
    """(C_pad, 32) one-hot channel->group matrix; rows >= C (lane padding) are zero."""
    gs = C // NUM_GROUPS
    ch = jnp.arange(C_pad)
    onehot = (ch[:, None] // gs == jnp.arange(NUM_GROUPS)[None, :]) & (ch[:, None] < C)
    return onehot.astype(jnp.float32)


def resnet_block_forward_nhwc(x_nhwc, emb, params, *, batch_block=None):
    N, H, W, Cin = x_nhwc.shape
    Cout = params["b1"].shape[-1]
    Cin_p = _round_up(Cin, LANE)      # lane-pad channels so matmuls / stores are
    Cout_p = _round_up(Cout, LANE)    # lane-dense (no-op at real channel counts)

    if batch_block is None:
        batch_block = min(N, 8)
        while N % batch_block:
            batch_block -= 1
    B = batch_block
    assert N % B == 0

    # Hoisted emb branch: one well-shaped (N, E) @ (E, Cout) matmul for the batch.
    emb_out = jax.nn.silu(emb.astype(jnp.float32)) @ params["wl"] + params["bl"]
    emb_out = _pad_last(emb_out, Cout_p).reshape(N, 1, Cout_p)

    # Conv / shortcut weights in kernel layout; bf16 operands, zero-padded channels.
    w1 = jnp.pad(params["w1"], ((0, 0), (0, Cin_p - Cin), (0, Cout_p - Cout))
                 ).reshape(9 * Cin_p, Cout_p).astype(jnp.bfloat16)
    w2 = jnp.pad(params["w2"], ((0, 0), (0, Cout_p - Cout), (0, Cout_p - Cout))
                 ).reshape(9 * Cout_p, Cout_p).astype(jnp.bfloat16)
    ws = jnp.pad(params["ws"], ((0, Cin_p - Cin), (0, Cout_p - Cout))).astype(jnp.bfloat16)
    w2s = jnp.concatenate([w2, ws], axis=0)                 # fused conv2 + 1x1 shortcut
    b1 = _pad_last(params["b1"], Cout_p)
    b2s = _pad_last(params["b2"] + params["bs"], Cout_p)    # merged conv2 + shortcut bias

    gn1_g = _pad_last(params["gn1_g"], Cin_p)
    gn1_b = _pad_last(params["gn1_b"], Cin_p)
    gn2_g = _pad_last(params["gn2_g"], Cout_p)
    gn2_b = _pad_last(params["gn2_b"], Cout_p)
    gmat1 = make_group_matrix(Cin, Cin_p)
    gmat2 = make_group_matrix(Cout, Cout_p)

    # bf16 input blocks: halves the per-step input DMA (GN stats go back to f32 inside).
    x_p = _pad_last(x_nhwc, Cin_p).astype(jnp.bfloat16)

    def const_spec(a):
        idx = (0,) * a.ndim
        return pl.BlockSpec(a.shape, lambda n, _idx=idx: _idx)

    in_specs = [
        pl.BlockSpec((B, H, W, Cin_p), lambda n: (n, 0, 0, 0)),   # x: B samples / step
        pl.BlockSpec((B, 1, Cout_p), lambda n: (n, 0, 0)),        # hoisted emb_out
        const_spec(gn1_g), const_spec(gn1_b), const_spec(gmat1), const_spec(b1),
        const_spec(gn2_g), const_spec(gn2_b), const_spec(gmat2), const_spec(b2s),
        const_spec(w1),                                           # fetched once per core
        const_spec(w2s),
    ]

    scratch_shapes = [
        pltpu.VMEM((B, H + 2, W + 2, Cin_p), jnp.bfloat16),       # conv1 padded input
        pltpu.VMEM((B, H + 2, W + 2, Cout_p), jnp.bfloat16),      # conv2 padded input
    ]

    kernel = functools.partial(
        resnet_block_kernel,
        count1=float(H * W * (Cin // NUM_GROUPS)),
        count2=float(H * W * (Cout // NUM_GROUPS)),
    )

    out = pl.pallas_call(
        kernel,
        out_shape=jax.ShapeDtypeStruct((N, H, W, Cout_p), jnp.float32),
        grid_spec=pltpu.PrefetchScalarGridSpec(
            num_scalar_prefetch=0,
            grid=(N // B,),
            in_specs=in_specs,
            out_specs=pl.BlockSpec((B, H, W, Cout_p), lambda n: (n, 0, 0, 0)),
            scratch_shapes=scratch_shapes,
        ),
        compiler_params=pltpu.CompilerParams(
            # Grid steps are fully independent now (no step-0-only init), so the batch
            # axis can be sharded across both TensorCores on v7x.
            dimension_semantics=("parallel",),
            # Explicit scoped-VMEM limit with headroom below physical capacity
            # (128 MiB on v5e/v6e, 64 MiB on v7x).
            vmem_limit_bytes=48 * 1024 * 1024,
        ),
    )(x_p, emb_out,
      gn1_g, gn1_b, gmat1, b1,
      gn2_g, gn2_b, gmat2, b2s,
      w1, w2s)
    return out[..., :Cout]


def resnet_block_forward(x_nchw, emb, params, *, batch_block=None):
    # NCHW adapter for the PyTorch-layout interface.  For best performance keep the
    # surrounding model in NHWC and call resnet_block_forward_nhwc directly.
    x = jnp.transpose(x_nchw, (0, 2, 3, 1))
    out = resnet_block_forward_nhwc(x, emb, params, batch_block=batch_block)
    return jnp.transpose(out, (0, 3, 1, 2))


# --------------------------------------------------------------------------- params / reference

def init_params(key, Cin, Cout, E):
    ks = jax.random.split(key, 12)
    p = {}
    p["gn1_g"] = (1.0 + 0.1 * jax.random.normal(ks[0], (1, Cin))).astype(jnp.float32)
    p["gn1_b"] = (0.1 * jax.random.normal(ks[1], (1, Cin))).astype(jnp.float32)
    p["w1"] = (0.05 * jax.random.normal(ks[2], (9, Cin, Cout))).astype(jnp.float32)
    p["b1"] = (0.05 * jax.random.normal(ks[3], (1, Cout))).astype(jnp.float32)
    p["wl"] = (0.05 * jax.random.normal(ks[4], (E, Cout))).astype(jnp.float32)
    p["bl"] = (0.05 * jax.random.normal(ks[5], (1, Cout))).astype(jnp.float32)
    p["gn2_g"] = (1.0 + 0.1 * jax.random.normal(ks[6], (1, Cout))).astype(jnp.float32)
    p["gn2_b"] = (0.1 * jax.random.normal(ks[7], (1, Cout))).astype(jnp.float32)
    p["w2"] = (0.05 * jax.random.normal(ks[8], (9, Cout, Cout))).astype(jnp.float32)
    p["b2"] = (0.05 * jax.random.normal(ks[9], (1, Cout))).astype(jnp.float32)
    p["ws"] = (0.05 * jax.random.normal(ks[10], (Cin, Cout))).astype(jnp.float32)
    p["bs"] = (0.05 * jax.random.normal(ks[11], (1, Cout))).astype(jnp.float32)
    return p


def reference_forward(x_nchw, emb, params):
    # Pure-JAX f32 reference matching PyTorch ResnetBlock (eval mode) semantics.
    x = jnp.transpose(x_nchw, (0, 2, 3, 1)).astype(jnp.float32)
    N, H, W, Cin = x.shape
    Cout = params["b1"].shape[-1]

    def gn(a, gamma, beta):
        C = a.shape[-1]
        gs = C // NUM_GROUPS
        ar = a.reshape(N, H, W, NUM_GROUPS, gs)
        mean = ar.mean(axis=(1, 2, 4), keepdims=True)
        var = ar.var(axis=(1, 2, 4), keepdims=True)
        arn = (ar - mean) / jnp.sqrt(var + GN_EPS)
        return (arn.reshape(N, H, W, C) * gamma.reshape(1, 1, 1, C)
                + beta.reshape(1, 1, 1, C))

    def conv3(a, w9, b):
        w = w9.reshape(3, 3, a.shape[-1], w9.shape[-1])
        out = jax.lax.conv_general_dilated(
            a, w, (1, 1), "SAME", dimension_numbers=("NHWC", "HWIO", "NHWC"))
        return out + b.reshape(1, 1, 1, -1)

    h = jax.nn.silu(gn(x, params["gn1_g"], params["gn1_b"]))
    h = conv3(h, params["w1"], params["b1"])
    e = jax.nn.silu(emb) @ params["wl"] + params["bl"]
    h = h + e.reshape(N, 1, 1, Cout)
    h = jax.nn.silu(gn(h, params["gn2_g"], params["gn2_b"]))
    h = conv3(h, params["w2"], params["b2"])
    sc = jnp.einsum("nhwc,cd->nhwd", x, params["ws"]) + params["bs"].reshape(1, 1, 1, -1)
    return jnp.transpose(h + sc, (0, 3, 1, 2))


if __name__ == "__main__":
    key = jax.random.PRNGKey(0)
    kx, ke, kp, kx2, ke2 = jax.random.split(key, 5)

    # GroupNorm(32, C) requires channels divisible by 32 -> smallest sensible sizes.
    N, Cin, Cout, E, H, W = 2, 32, 64, 48, 8, 8
    x = jax.random.normal(kx, (N, Cin, H, W), jnp.float32)
    emb = jax.random.normal(ke, (N, E), jnp.float32)
    params = init_params(kp, Cin, Cout, E)

    out = resnet_block_forward(x, emb, params)
    jax.block_until_ready(out)
    ref = reference_forward(x, emb, params)
    # bf16 inputs / im2col storage / MXU operands (f32 accumulation) vs the pure-f32
    # reference -> a few 1e-2 worst-case diffs.
    np.testing.assert_allclose(np.asarray(out), np.asarray(ref), atol=6e-2, rtol=6e-2)

    # Second config: grid of 2 batch-blocks exercises multi-step (and megacore-parallel)
    # execution with the constant-index weight specs and per-step halo zeroing.
    N2 = 4
    x2 = jax.random.normal(kx2, (N2, Cin, H, W), jnp.float32)
    emb2 = jax.random.normal(ke2, (N2, E), jnp.float32)
    out2 = resnet_block_forward(x2, emb2, params, batch_block=2)
    jax.block_until_ready(out2)
    ref2 = reference_forward(x2, emb2, params)
    np.testing.assert_allclose(np.asarray(out2), np.asarray(ref2), atol=6e-2, rtol=6e-2)

    print("KERNEL_OK")
</pallas_src>

<mosaic_0001>
module attributes {stable_mosaic.version = 11 : i64} {
  func.func @resnet_block_kernel(%arg0: i32, %arg1: memref<2x8x8x128xbf16, #tpu.memory_space<vmem>>, %arg2: memref<2x1x128xf32, #tpu.memory_space<vmem>>, %arg3: memref<1x128xf32, #tpu.memory_space<vmem>>, %arg4: memref<1x128xf32, #tpu.memory_space<vmem>>, %arg5: memref<128x32xf32, #tpu.memory_space<vmem>>, %arg6: memref<1x128xf32, #tpu.memory_space<vmem>>, %arg7: memref<1x128xf32, #tpu.memory_space<vmem>>, %arg8: memref<1x128xf32, #tpu.memory_space<vmem>>, %arg9: memref<128x32xf32, #tpu.memory_space<vmem>>, %arg10: memref<1x128xf32, #tpu.memory_space<vmem>>, %arg11: memref<1152x128xbf16, #tpu.memory_space<vmem>>, %arg12: memref<1280x128xbf16, #tpu.memory_space<vmem>>, %arg13: memref<2x8x8x128xf32, #tpu.memory_space<vmem>>, %arg14: memref<2x10x10x128xbf16, #tpu.memory_space<vmem>>, %arg15: memref<2x10x10x128xbf16, #tpu.memory_space<vmem>>) attributes {dimension_semantics = [#tpu.dimension_semantics<parallel>], iteration_bounds = array<i64: 1>, scalar_prefetch = 0 : i64, scratch_operands = 2 : i64, tpu.core_type = #tpu.core_type<tc>, window_params = [{transform_indices = @transform_0, window_bounds = array<i64: 2, 8, 8, 128>}, {transform_indices = @transform_1, window_bounds = array<i64: 2, 1, 128>}, {pipeline_mode = #tpu.pipeline_mode<synchronous>, transform_indices = @transform_2, window_bounds = array<i64: 1, 128>}, {pipeline_mode = #tpu.pipeline_mode<synchronous>, transform_indices = @transform_3, window_bounds = array<i64: 1, 128>}, {pipeline_mode = #tpu.pipeline_mode<synchronous>, transform_indices = @transform_4, window_bounds = array<i64: 128, 32>}, {pipeline_mode = #tpu.pipeline_mode<synchronous>, transform_indices = @transform_5, window_bounds = array<i64: 1, 128>}, {pipeline_mode = #tpu.pipeline_mode<synchronous>, transform_indices = @transform_6, window_bounds = array<i64: 1, 128>}, {pipeline_mode = #tpu.pipeline_mode<synchronous>, transform_indices = @transform_7, window_bounds = array<i64: 1, 128>}, {pipeline_mode = #tpu.pipeline_mode<synchronous>, transform_indices = @transform_8, window_bounds = array<i64: 128, 32>}, {pipeline_mode = #tpu.pipeline_mode<synchronous>, transform_indices = @transform_9, window_bounds = array<i64: 1, 128>}, {pipeline_mode = #tpu.pipeline_mode<synchronous>, transform_indices = @transform_10, window_bounds = array<i64: 1152, 128>}, {pipeline_mode = #tpu.pipeline_mode<synchronous>, transform_indices = @transform_11, window_bounds = array<i64: 1280, 128>}, {transform_indices = @transform_12, window_bounds = array<i64: 2, 8, 8, 128>}]} {
    %c0 = arith.constant 0 : index
    %c0_0 = arith.constant 0 : index
    %c0_1 = arith.constant 0 : index
    %c0_2 = arith.constant 0 : index
    %0 = vector.load %arg1[%c0, %c0_0, %c0_1, %c0_2] : memref<2x8x8x128xbf16, #tpu.memory_space<vmem>>, vector<2x8x8x128xbf16>
    %1 = vector.shape_cast %0 : vector<2x8x8x128xbf16> to vector<2x64x128xbf16>
    %2 = arith.extf %1 : vector<2x64x128xbf16> to vector<2x64x128xf32>
    %c0_3 = arith.constant 0 : index
    %c0_4 = arith.constant 0 : index
    %3 = vector.load %arg5[%c0_3, %c0_4] : memref<128x32xf32, #tpu.memory_space<vmem>>, vector<128x32xf32>
    %c0_5 = arith.constant 0 : index
    %c0_6 = arith.constant 0 : index
    %4 = vector.load %arg3[%c0_5, %c0_6] : memref<1x128xf32, #tpu.memory_space<vmem>>, vector<1x128xf32>
    %c0_7 = arith.constant 0 : index
    %c0_8 = arith.constant 0 : index
    %5 = vector.load %arg4[%c0_7, %c0_8] : memref<1x128xf32, #tpu.memory_space<vmem>>, vector<1x128xf32>
    %cst = arith.constant dense<0.000000e+00> : vector<2x128xf32>
    %6 = vector.multi_reduction <add>, %2, %cst [1] : vector<2x64x128xf32> to vector<2x128xf32>
    %7 = arith.mulf %2, %2 : vector<2x64x128xf32>
    %cst_9 = arith.constant dense<0.000000e+00> : vector<2x128xf32>
    %8 = vector.multi_reduction <add>, %7, %cst_9 [1] : vector<2x64x128xf32> to vector<2x128xf32>
    %9 = tpu.concatenate %6, %8 in 0 : vector<2x128xf32>, vector<2x128xf32> -> vector<4x128xf32>
    %cst_10 = arith.constant dense<0.000000e+00> : vector<4x32xf32>
    %10 = tpu.matmul %9, %3, %cst_10 {dimension_numbers = #tpu.dot_dimension_numbers<[1], [0], [0], [1], [0, 0, 1, 1], [], []>} : vector<4x128xf32>, vector<128x32xf32>, vector<4x32xf32> -> vector<4x32xf32>
    %11 = vector.extract_strided_slice %10 {offsets = [0, 0], sizes = [2, 32], strides = [1, 1]} : vector<4x32xf32> to vector<2x32xf32>
    %cst_11 = arith.constant 6.400000e+01 : f32
    %12 = vector.broadcast %cst_11 : f32 to vector<2x32xf32>
    %13 = arith.divf %11, %12 : vector<2x32xf32>
    %14 = vector.extract_strided_slice %10 {offsets = [2, 0], sizes = [2, 32], strides = [1, 1]} : vector<4x32xf32> to vector<2x32xf32>
    %cst_12 = arith.constant 6.400000e+01 : f32
    %15 = vector.broadcast %cst_12 : f32 to vector<2x32xf32>
    %16 = arith.divf %14, %15 : vector<2x32xf32>
    %17 = arith.mulf %13, %13 : vector<2x32xf32>
    %18 = arith.subf %16, %17 : vector<2x32xf32>
    %cst_13 = arith.constant 9.99999974E-6 : f32
    %19 = vector.broadcast %cst_13 : f32 to vector<2x32xf32>
    %20 = arith.addf %18, %19 : vector<2x32xf32>
    %21 = math.rsqrt %20 : vector<2x32xf32>
    %cst_14 = arith.constant dense<0.000000e+00> : vector<2x128xf32>
    %22 = tpu.matmul %13, %3, %cst_14 {dimension_numbers = #tpu.dot_dimension_numbers<[1], [1], [0], [0], [0, 0, 1, 0], [], []>} : vector<2x32xf32>, vector<128x32xf32>, vector<2x128xf32> -> vector<2x128xf32>
    %23 = vector.shape_cast %22 : vector<2x128xf32> to vector<2x1x128xf32>
    %24 = vector.broadcast %23 : vector<2x1x128xf32> to vector<2x64x128xf32>
    %25 = arith.subf %2, %24 : vector<2x64x128xf32>
    %cst_15 = arith.constant dense<0.000000e+00> : vector<2x128xf32>
    %26 = tpu.matmul %21, %3, %cst_15 {dimension_numbers = #tpu.dot_dimension_numbers<[1], [1], [0], [0], [0, 0, 1, 0], [], []>} : vector<2x32xf32>, vector<128x32xf32>, vector<2x128xf32> -> vector<2x128xf32>
    %27 = vector.shape_cast %26 : vector<2x128xf32> to vector<2x1x128xf32>
    %28 = vector.broadcast %27 : vector<2x1x128xf32> to vector<2x64x128xf32>
    %29 = arith.mulf %25, %28 : vector<2x64x128xf32>
    %30 = vector.shape_cast %4 : vector<1x128xf32> to vector<1x1x128xf32>
    %31 = vector.broadcast %30 : vector<1x1x128xf32> to vector<2x64x128xf32>
    %32 = arith.mulf %29, %31 : vector<2x64x128xf32>
    %33 = vector.shape_cast %5 : vector<1x128xf32> to vector<1x1x128xf32>
    %34 = vector.broadcast %33 : vector<1x1x128xf32> to vector<2x64x128xf32>
    %35 = arith.addf %32, %34 : vector<2x64x128xf32>
    %36 = arith.negf %35 : vector<2x64x128xf32>
    %37 = math.exp %36 : vector<2x64x128xf32>
    %cst_16 = arith.constant 1.000000e+00 : f32
    %38 = vector.broadcast %cst_16 : f32 to vector<2x64x128xf32>
    %39 = arith.addf %38, %37 : vector<2x64x128xf32>
    %40 = arith.divf %38, %39 : vector<2x64x128xf32>
    %41 = arith.mulf %35, %40 : vector<2x64x128xf32>
    %42 = arith.truncf %41 : vector<2x64x128xf32> to vector<2x64x128xbf16>
    %cst_17 = arith.constant 0.000000e+00 : bf16
    %43 = vector.broadcast %cst_17 : bf16 to vector<2x1x10x128xbf16>
    %cst_18 = arith.constant 0.000000e+00 : bf16
    %44 = vector.broadcast %cst_18 : bf16 to vector<2x10x1x128xbf16>
    %c0_19 = arith.constant 0 : index
    %c0_20 = arith.constant 0 : index
    %c0_21 = arith.constant 0 : index
    %c0_22 = arith.constant 0 : index
    %45 = vector.load %arg14[%c0_19, %c0_20, %c0_21, %c0_22] : memref<2x10x10x128xbf16, #tpu.memory_space<vmem>>, vector<2x1x10x128xbf16>
    tpu.vector_store %arg14[%c0_19, %c0_20, %c0_21, %c0_22], %43 {strides = array<i32>} : memref<2x10x10x128xbf16, #tpu.memory_space<vmem>>, vector<2x1x10x128xbf16>,
    %c0_23 = arith.constant 0 : index
    %c9 = arith.constant 9 : index
    %c0_24 = arith.constant 0 : index
    %c0_25 = arith.constant 0 : index
    %46 = vector.load %arg14[%c0_23, %c9, %c0_24, %c0_25] : memref<2x10x10x128xbf16, #tpu.memory_space<vmem>>, vector<2x1x10x128xbf16>
    tpu.vector_store %arg14[%c0_23, %c9, %c0_24, %c0_25], %43 {strides = array<i32>} : memref<2x10x10x128xbf16, #tpu.memory_space<vmem>>, vector<2x1x10x128xbf16>,
    %c0_26 = arith.constant 0 : index
    %c0_27 = arith.constant 0 : index
    %c0_28 = arith.constant 0 : index
    %c0_29 = arith.constant 0 : index
    %47 = vector.load %arg14[%c0_26, %c0_27, %c0_28, %c0_29] : memref<2x10x10x128xbf16, #tpu.memory_space<vmem>>, vector<2x10x1x128xbf16>
    tpu.vector_store %arg14[%c0_26, %c0_27, %c0_28, %c0_29], %44 {strides = array<i32>} : memref<2x10x10x128xbf16, #tpu.memory_space<vmem>>, vector<2x10x1x128xbf16>,
    %c0_30 = arith.constant 0 : index
    %c0_31 = arith.constant 0 : index
    %c9_32 = arith.constant 9 : index
    %c0_33 = arith.constant 0 : index
    %48 = vector.load %arg14[%c0_30, %c0_31, %c9_32, %c0_33] : memref<2x10x10x128xbf16, #tpu.memory_space<vmem>>, vector<2x10x1x128xbf16>
    tpu.vector_store %arg14[%c0_30, %c0_31, %c9_32, %c0_33], %44 {strides = array<i32>} : memref<2x10x10x128xbf16, #tpu.memory_space<vmem>>, vector<2x10x1x128xbf16>,
    %49 = vector.shape_cast %42 : vector<2x64x128xbf16> to vector<2x8x8x128xbf16>
    %c0_34 = arith.constant 0 : index
    %c1 = arith.constant 1 : index
    %c1_35 = arith.constant 1 : index
    %c0_36 = arith.constant 0 : index
    %50 = vector.load %arg14[%c0_34, %c1, %c1_35, %c0_36] : memref<2x10x10x128xbf16, #tpu.memory_space<vmem>>, vector<2x8x8x128xbf16>
    tpu.vector_store %arg14[%c0_34, %c1, %c1_35, %c0_36], %49 {strides = array<i32>} : memref<2x10x10x128xbf16, #tpu.memory_space<vmem>>, vector<2x8x8x128xbf16>,
    %c0_37 = arith.constant 0 : index
    %c0_38 = arith.constant 0 : index
    %c0_39 = arith.constant 0 : index
    %c0_40 = arith.constant 0 : index
    %51 = vector.load %arg14[%c0_37, %c0_38, %c0_39, %c0_40] : memref<2x10x10x128xbf16, #tpu.memory_space<vmem>>, vector<2x10x10x128xbf16>
    %52 = vector.extract_strided_slice %51 {offsets = [0, 0, 0, 0], sizes = [2, 10, 8, 128], strides = [1, 1, 1, 1]} : vector<2x10x10x128xbf16> to vector<2x10x8x128xbf16>
    %53 = vector.extract_strided_slice %51 {offsets = [0, 0, 1, 0], sizes = [2, 10, 8, 128], strides = [1, 1, 1, 1]} : vector<2x10x10x128xbf16> to vector<2x10x8x128xbf16>
    %54 = vector.extract_strided_slice %51 {offsets = [0, 0, 2, 0], sizes = [2, 10, 8, 128], strides = [1, 1, 1, 1]} : vector<2x10x10x128xbf16> to vector<2x10x8x128xbf16>
    %55 = tpu.concatenate %52, %53, %54 in 3 : vector<2x10x8x128xbf16>, vector<2x10x8x128xbf16>, vector<2x10x8x128xbf16> -> vector<2x10x8x384xbf16>
    %56 = vector.extract_strided_slice %55 {offsets = [0, 0, 0, 0], sizes = [2, 8, 8, 384], strides = [1, 1, 1, 1]} : vector<2x10x8x384xbf16> to vector<2x8x8x384xbf16>
    %57 = vector.extract_strided_slice %55 {offsets = [0, 1, 0, 0], sizes = [2, 8, 8, 384], strides = [1, 1, 1, 1]} : vector<2x10x8x384xbf16> to vector<2x8x8x384xbf16>
    %58 = vector.extract_strided_slice %55 {offsets = [0, 2, 0, 0], sizes = [2, 8, 8, 384], strides = [1, 1, 1, 1]} : vector<2x10x8x384xbf16> to vector<2x8x8x384xbf16>
    %59 = tpu.concatenate %56, %57, %58 in 3 : vector<2x8x8x384xbf16>, vector<2x8x8x384xbf16>, vector<2x8x8x384xbf16> -> vector<2x8x8x1152xbf16>
    %60 = vector.shape_cast %59 : vector<2x8x8x1152xbf16> to vector<128x1152xbf16>
    %c0_41 = arith.constant 0 : index
    %c0_42 = arith.constant 0 : index
    %61 = vector.load %arg11[%c0_41, %c0_42] : memref<1152x128xbf16, #tpu.memory_space<vmem>>, vector<1152x128xbf16>
    %cst_43 = arith.constant dense<0.000000e+00> : vector<128x128xf32>
    %62 = tpu.matmul %60, %61, %cst_43 {dimension_numbers = #tpu.dot_dimension_numbers<[1], [0], [0], [1], [0, 0, 1, 1], [], []>} : vector<128x1152xbf16>, vector<1152x128xbf16>, vector<128x128xf32> -> vector<128x128xf32>
    %c0_44 = arith.constant 0 : index
    %c0_45 = arith.constant 0 : index
    %63 = vector.load %arg6[%c0_44, %c0_45] : memref<1x128xf32, #tpu.memory_space<vmem>>, vector<1x128xf32>
    %64 = vector.broadcast %63 : vector<1x128xf32> to vector<128x128xf32>
    %65 = arith.addf %62, %64 : vector<128x128xf32>
    %66 = vector.shape_cast %65 : vector<128x128xf32> to vector<2x64x128xf32>
    %c0_46 = arith.constant 0 : index
    %c0_47 = arith.constant 0 : index
    %c0_48 = arith.constant 0 : index
    %67 = vector.load %arg2[%c0_46, %c0_47, %c0_48] : memref<2x1x128xf32, #tpu.memory_space<vmem>>, vector<2x1x128xf32>
    %68 = vector.broadcast %67 : vector<2x1x128xf32> to vector<2x64x128xf32>
    %69 = arith.addf %66, %68 : vector<2x64x128xf32>
    %c0_49 = arith.constant 0 : index
    %c0_50 = arith.constant 0 : index
    %70 = vector.load %arg9[%c0_49, %c0_50] : memref<128x32xf32, #tpu.memory_space<vmem>>, vector<128x32xf32>
    %c0_51 = arith.constant 0 : index
    %c0_52 = arith.constant 0 : index
    %71 = vector.load %arg7[%c0_51, %c0_52] : memref<1x128xf32, #tpu.memory_space<vmem>>, vector<1x128xf32>
    %c0_53 = arith.constant 0 : index
    %c0_54 = arith.constant 0 : index
    %72 = vector.load %arg8[%c0_53, %c0_54] : memref<1x128xf32, #tpu.memory_space<vmem>>, vector<1x128xf32>
    %cst_55 = arith.constant dense<0.000000e+00> : vector<2x128xf32>
    %73 = vector.multi_reduction <add>, %69, %cst_55 [1] : vector<2x64x128xf32> to vector<2x128xf32>
    %74 = arith.mulf %69, %69 : vector<2x64x128xf32>
    %cst_56 = arith.constant dense<0.000000e+00> : vector<2x128xf32>
    %75 = vector.multi_reduction <add>, %74, %cst_56 [1] : vector<2x64x128xf32> to vector<2x128xf32>
    %76 = tpu.concatenate %73, %75 in 0 : vector<2x128xf32>, vector<2x128xf32> -> vector<4x128xf32>
    %cst_57 = arith.constant dense<0.000000e+00> : vector<4x32xf32>
    %77 = tpu.matmul %76, %70, %cst_57 {dimension_numbers = #tpu.dot_dimension_numbers<[1], [0], [0], [1], [0, 0, 1, 1], [], []>} : vector<4x128xf32>, vector<128x32xf32>, vector<4x32xf32> -> vector<4x32xf32>
    %78 = vector.extract_strided_slice %77 {offsets = [0, 0], sizes = [2, 32], strides = [1, 1]} : vector<4x32xf32> to vector<2x32xf32>
    %cst_58 = arith.constant 1.280000e+02 : f32
    %79 = vector.broadcast %cst_58 : f32 to vector<2x32xf32>
    %80 = arith.divf %78, %79 : vector<2x32xf32>
    %81 = vector.extract_strided_slice %77 {offsets = [2, 0], sizes = [2, 32], strides = [1, 1]} : vector<4x32xf32> to vector<2x32xf32>
    %cst_59 = arith.constant 1.280000e+02 : f32
    %82 = vector.broadcast %cst_59 : f32 to vector<2x32xf32>
    %83 = arith.divf %81, %82 : vector<2x32xf32>
    %84 = arith.mulf %80, %80 : vector<2x32xf32>
    %85 = arith.subf %83, %84 : vector<2x32xf32>
    %cst_60 = arith.constant 9.99999974E-6 : f32
    %86 = vector.broadcast %cst_60 : f32 to vector<2x32xf32>
    %87 = arith.addf %85, %86 : vector<2x32xf32>
    %88 = math.rsqrt %87 : vector<2x32xf32>
    %cst_61 = arith.constant dense<0.000000e+00> : vector<2x128xf32>
    %89 = tpu.matmul %80, %70, %cst_61 {dimension_numbers = #tpu.dot_dimension_numbers<[1], [1], [0], [0], [0, 0, 1, 0], [], []>} : vector<2x32xf32>, vector<128x32xf32>, vector<2x128xf32> -> vector<2x128xf32>
    %90 = vector.shape_cast %89 : vector<2x128xf32> to vector<2x1x128xf32>
    %91 = vector.broadcast %90 : vector<2x1x128xf32> to vector<2x64x128xf32>
    %92 = arith.subf %69, %91 : vector<2x64x128xf32>
    %cst_62 = arith.constant dense<0.000000e+00> : vector<2x128xf32>
    %93 = tpu.matmul %88, %70, %cst_62 {dimension_numbers = #tpu.dot_dimension_numbers<[1], [1], [0], [0], [0, 0, 1, 0], [], []>} : vector<2x32xf32>, vector<128x32xf32>, vector<2x128xf32> -> vector<2x128xf32>
    %94 = vector.shape_cast %93 : vector<2x128xf32> to vector<2x1x128xf32>
    %95 = vector.broadcast %94 : vector<2x1x128xf32> to vector<2x64x128xf32>
    %96 = arith.mulf %92, %95 : vector<2x64x128xf32>
    %97 = vector.shape_cast %71 : vector<1x128xf32> to vector<1x1x128xf32>
    %98 = vector.broadcast %97 : vector<1x1x128xf32> to vector<2x64x128xf32>
    %99 = arith.mulf %96, %98 : vector<2x64x128xf32>
    %100 = vector.shape_cast %72 : vector<1x128xf32> to vector<1x1x128xf32>
    %101 = vector.broadcast %100 : vector<1x1x128xf32> to vector<2x64x128xf32>
    %102 = arith.addf %99, %101 : vector<2x64x128xf32>
    %103 = arith.negf %102 : vector<2x64x128xf32>
    %104 = math.exp %103 : vector<2x64x128xf32>
    %cst_63 = arith.constant 1.000000e+00 : f32
    %105 = vector.broadcast %cst_63 : f32 to vector<2x64x128xf32>
    %106 = arith.addf %105, %104 : vector<2x64x128xf32>
    %107 = arith.divf %105, %106 : vector<2x64x128xf32>
    %108 = arith.mulf %102, %107 : vector<2x64x128xf32>
    %109 = arith.truncf %108 : vector<2x64x128xf32> to vector<2x64x128xbf16>
    %cst_64 = arith.constant 0.000000e+00 : bf16
    %110 = vector.broadcast %cst_64 : bf16 to vector<2x1x10x128xbf16>
    %cst_65 = arith.constant 0.000000e+00 : bf16
    %111 = vector.broadcast %cst_65 : bf16 to vector<2x10x1x128xbf16>
    %c0_66 = arith.constant 0 : index
    %c0_67 = arith.constant 0 : index
    %c0_68 = arith.constant 0 : index
    %c0_69 = arith.constant 0 : index
    %112 = vector.load %arg15[%c0_66, %c0_67, %c0_68, %c0_69] : memref<2x10x10x128xbf16, #tpu.memory_space<vmem>>, vector<2x1x10x128xbf16>
    tpu.vector_store %arg15[%c0_66, %c0_67, %c0_68, %c0_69], %110 {strides = array<i32>} : memref<2x10x10x128xbf16, #tpu.memory_space<vmem>>, vector<2x1x10x128xbf16>,
    %c0_70 = arith.constant 0 : index
    %c9_71 = arith.constant 9 : index
    %c0_72 = arith.constant 0 : index
    %c0_73 = arith.constant 0 : index
    %113 = vector.load %arg15[%c0_70, %c9_71, %c0_72, %c0_73] : memref<2x10x10x128xbf16, #tpu.memory_space<vmem>>, vector<2x1x10x128xbf16>
    tpu.vector_store %arg15[%c0_70, %c9_71, %c0_72, %c0_73], %110 {strides = array<i32>} : memref<2x10x10x128xbf16, #tpu.memory_space<vmem>>, vector<2x1x10x128xbf16>,
    %c0_74 = arith.constant 0 : index
    %c0_75 = arith.constant 0 : index
    %c0_76 = arith.constant 0 : index
    %c0_77 = arith.constant 0 : index
    %114 = vector.load %arg15[%c0_74, %c0_75, %c0_76, %c0_77] : memref<2x10x10x128xbf16, #tpu.memory_space<vmem>>, vector<2x10x1x128xbf16>
    tpu.vector_store %arg15[%c0_74, %c0_75, %c0_76, %c0_77], %111 {strides = array<i32>} : memref<2x10x10x128xbf16, #tpu.memory_space<vmem>>, vector<2x10x1x128xbf16>,
    %c0_78 = arith.constant 0 : index
    %c0_79 = arith.constant 0 : index
    %c9_80 = arith.constant 9 : index
    %c0_81 = arith.constant 0 : index
    %115 = vector.load %arg15[%c0_78, %c0_79, %c9_80, %c0_81] : memref<2x10x10x128xbf16, #tpu.memory_space<vmem>>, vector<2x10x1x128xbf16>
    tpu.vector_store %arg15[%c0_78, %c0_79, %c9_80, %c0_81], %111 {strides = array<i32>} : memref<2x10x10x128xbf16, #tpu.memory_space<vmem>>, vector<2x10x1x128xbf16>,
    %116 = vector.shape_cast %109 : vector<2x64x128xbf16> to vector<2x8x8x128xbf16>
    %c0_82 = arith.constant 0 : index
    %c1_83 = arith.constant 1 : index
    %c1_84 = arith.constant 1 : index
    %c0_85 = arith.constant 0 : index
    %117 = vector.load %arg15[%c0_82, %c1_83, %c1_84, %c0_85] : memref<2x10x10x128xbf16, #tpu.memory_space<vmem>>, vector<2x8x8x128xbf16>
    tpu.vector_store %arg15[%c0_82, %c1_83, %c1_84, %c0_85], %116 {strides = array<i32>} : memref<2x10x10x128xbf16, #tpu.memory_space<vmem>>, vector<2x8x8x128xbf16>,
    %c0_86 = arith.constant 0 : index
    %c0_87 = arith.constant 0 : index
    %c0_88 = arith.constant 0 : index
    %c0_89 = arith.constant 0 : index
    %118 = vector.load %arg15[%c0_86, %c0_87, %c0_88, %c0_89] : memref<2x10x10x128xbf16, #tpu.memory_space<vmem>>, vector<2x10x10x128xbf16>
    %119 = vector.extract_strided_slice %118 {offsets = [0, 0, 0, 0], sizes = [2, 10, 8, 128], strides = [1, 1, 1, 1]} : vector<2x10x10x128xbf16> to vector<2x10x8x128xbf16>
    %120 = vector.extract_strided_slice %118 {offsets = [0, 0, 1, 0], sizes = [2, 10, 8, 128], strides = [1, 1, 1, 1]} : vector<2x10x10x128xbf16> to vector<2x10x8x128xbf16>
    %121 = vector.extract_strided_slice %118 {offsets = [0, 0, 2, 0], sizes = [2, 10, 8, 128], strides = [1, 1, 1, 1]} : vector<2x10x10x128xbf16> to vector<2x10x8x128xbf16>
    %122 = tpu.concatenate %119, %120, %121 in 3 : vector<2x10x8x128xbf16>, vector<2x10x8x128xbf16>, vector<2x10x8x128xbf16> -> vector<2x10x8x384xbf16>
    %123 = vector.extract_strided_slice %122 {offsets = [0, 0, 0, 0], sizes = [2, 8, 8, 384], strides = [1, 1, 1, 1]} : vector<2x10x8x384xbf16> to vector<2x8x8x384xbf16>
    %124 = vector.extract_strided_slice %122 {offsets = [0, 1, 0, 0], sizes = [2, 8, 8, 384], strides = [1, 1, 1, 1]} : vector<2x10x8x384xbf16> to vector<2x8x8x384xbf16>
    %125 = vector.extract_strided_slice %122 {offsets = [0, 2, 0, 0], sizes = [2, 8, 8, 384], strides = [1, 1, 1, 1]} : vector<2x10x8x384xbf16> to vector<2x8x8x384xbf16>
    %126 = tpu.concatenate %123, %124, %125 in 3 : vector<2x8x8x384xbf16>, vector<2x8x8x384xbf16>, vector<2x8x8x384xbf16> -> vector<2x8x8x1152xbf16>
    %127 = vector.shape_cast %126 : vector<2x8x8x1152xbf16> to vector<128x1152xbf16>
    %128 = vector.shape_cast %1 : vector<2x64x128xbf16> to vector<128x128xbf16>
    %129 = tpu.concatenate %127, %128 in 1 : vector<128x1152xbf16>, vector<128x128xbf16> -> vector<128x1280xbf16>
    %c0_90 = arith.constant 0 : index
    %c0_91 = arith.constant 0 : index
    %130 = vector.load %arg12[%c0_90, %c0_91] : memref<1280x128xbf16, #tpu.memory_space<vmem>>, vector<1280x128xbf16>
    %cst_92 = arith.constant dense<0.000000e+00> : vector<128x128xf32>
    %131 = tpu.matmul %129, %130, %cst_92 {dimension_numbers = #tpu.dot_dimension_numbers<[1], [0], [0], [1], [0, 0, 1, 1], [], []>} : vector<128x1280xbf16>, vector<1280x128xbf16>, vector<128x128xf32> -> vector<128x128xf32>
    %c0_93 = arith.constant 0 : index
    %c0_94 = arith.constant 0 : index
    %132 = vector.load %arg10[%c0_93, %c0_94] : memref<1x128xf32, #tpu.memory_space<vmem>>, vector<1x128xf32>
    %133 = vector.broadcast %132 : vector<1x128xf32> to vector<128x128xf32>
    %134 = arith.addf %131, %133 : vector<128x128xf32>
    %135 = vector.shape_cast %134 : vector<128x128xf32> to vector<2x8x8x128xf32>
    %c0_95 = arith.constant 0 : index
    %c0_96 = arith.constant 0 : index
    %c0_97 = arith.constant 0 : index
    %c0_98 = arith.constant 0 : index
    %136 = vector.load %arg13[%c0_95, %c0_96, %c0_97, %c0_98] : memref<2x8x8x128xf32, #tpu.memory_space<vmem>>, vector<2x8x8x128xf32>
    tpu.vector_store %arg13[%c0_95, %c0_96, %c0_97, %c0_98], %135 {strides = array<i32>} : memref<2x8x8x128xf32, #tpu.memory_space<vmem>>, vector<2x8x8x128xf32>,
    return
  }
  func.func @transform_0(%arg0: i32) -> (i32, i32, i32, i32) {
    %c0_i32 = arith.constant 0 : i32
    %c0_i32_0 = arith.constant 0 : i32
    %c0_i32_1 = arith.constant 0 : i32
    %c0_i32_2 = arith.constant 0 : i32
    return %arg0, %c0_i32, %c0_i32_0, %c0_i32_1 : i32, i32, i32, i32
  }
  func.func @transform_1(%arg0: i32) -> (i32, i32, i32) {
    %c0_i32 = arith.constant 0 : i32
    %c0_i32_0 = arith.constant 0 : i32
    %c0_i32_1 = arith.constant 0 : i32
    return %arg0, %c0_i32, %c0_i32_0 : i32, i32, i32
  }
  func.func @transform_2(%arg0: i32) -> (i32, i32) {
    %c0_i32 = arith.constant 0 : i32
    %c0_i32_0 = arith.constant 0 : i32
    %c0_i32_1 = arith.constant 0 : i32
    return %c0_i32, %c0_i32_0 : i32, i32
  }
  func.func @transform_3(%arg0: i32) -> (i32, i32) {
    %c0_i32 = arith.constant 0 : i32
    %c0_i32_0 = arith.constant 0 : i32
    %c0_i32_1 = arith.constant 0 : i32
    return %c0_i32, %c0_i32_0 : i32, i32
  }
  func.func @transform_4(%arg0: i32) -> (i32, i32) {
    %c0_i32 = arith.constant 0 : i32
    %c0_i32_0 = arith.constant 0 : i32
    %c0_i32_1 = arith.constant 0 : i32
    return %c0_i32, %c0_i32_0 : i32, i32
  }
  func.func @transform_5(%arg0: i32) -> (i32, i32) {
    %c0_i32 = arith.constant 0 : i32
    %c0_i32_0 = arith.constant 0 : i32
    %c0_i32_1 = arith.constant 0 : i32
    return %c0_i32, %c0_i32_0 : i32, i32
  }
  func.func @transform_6(%arg0: i32) -> (i32, i32) {
    %c0_i32 = arith.constant 0 : i32
    %c0_i32_0 = arith.constant 0 : i32
    %c0_i32_1 = arith.constant 0 : i32
    return %c0_i32, %c0_i32_0 : i32, i32
  }
  func.func @transform_7(%arg0: i32) -> (i32, i32) {
    %c0_i32 = arith.constant 0 : i32
    %c0_i32_0 = arith.constant 0 : i32
    %c0_i32_1 = arith.constant 0 : i32
    return %c0_i32, %c0_i32_0 : i32, i32
  }
  func.func @transform_8(%arg0: i32) -> (i32, i32) {
    %c0_i32 = arith.constant 0 : i32
    %c0_i32_0 = arith.constant 0 : i32
    %c0_i32_1 = arith.constant 0 : i32
    return %c0_i32, %c0_i32_0 : i32, i32
  }
  func.func @transform_9(%arg0: i32) -> (i32, i32) {
    %c0_i32 = arith.constant 0 : i32
    %c0_i32_0 = arith.constant 0 : i32
    %c0_i32_1 = arith.constant 0 : i32
    return %c0_i32, %c0_i32_0 : i32, i32
  }
  func.func @transform_10(%arg0: i32) -> (i32, i32) {
    %c0_i32 = arith.constant 0 : i32
    %c0_i32_0 = arith.constant 0 : i32
    %c0_i32_1 = arith.constant 0 : i32
    return %c0_i32, %c0_i32_0 : i32, i32
  }
  func.func @transform_11(%arg0: i32) -> (i32, i32) {
    %c0_i32 = arith.constant 0 : i32
    %c0_i32_0 = arith.constant 0 : i32
    %c0_i32_1 = arith.constant 0 : i32
    return %c0_i32, %c0_i32_0 : i32, i32
  }
  func.func @transform_12(%arg0: i32) -> (i32, i32, i32, i32) {
    %c0_i32 = arith.constant 0 : i32
    %c0_i32_0 = arith.constant 0 : i32
    %c0_i32_1 = arith.constant 0 : i32
    %c0_i32_2 = arith.constant 0 : i32
    return %arg0, %c0_i32, %c0_i32_0, %c0_i32_1 : i32, i32, i32, i32
  }
}

</mosaic_0001>

<llo_original>
// kernel: tpu_custom_call.1
$region0: #{tpu_custom_call.1}
  #allocation0 [shape = 'u32[]', space=smem, size = 0x4, offset = 0x4, fixed_abs, tag = 'smem constant byte address 0x4 - core index']
  #allocation1 [shape = 'u32[144,128]{1,0:T(1,128)}', space=vmem, size = 0x12000, scoped, tag = 'internal scratch']
  #allocation2 [shape = 'bf16[2,10,10,128]{3,2,1,0:T(8,128)(2,1)}', space=vmem, size = 0x14000, scoped, tag = 'scratch operand']
  #allocation3 [shape = 'bf16[2,10,10,128]{3,2,1,0:T(8,128)(2,1)}', space=vmem, size = 0x14000, scoped, tag = 'scratch operand']
  %s0 = inlined_call_operand.vmem [shape: bf16[2,8,8,128], index: 0, kind: input, shape index: {}]
  %s1 = inlined_call_operand.vmem [shape: f32[2,1,128], index: 1, kind: input, shape index: {}]
  %s2 = inlined_call_operand.vmem [shape: f32[1,128], index: 2, kind: input, shape index: {}]
  %s3 = inlined_call_operand.vmem [shape: f32[1,128], index: 3, kind: input, shape index: {}]
  %s4 = inlined_call_operand.vmem [shape: f32[128,32], index: 4, kind: input, shape index: {}]
  %s5 = inlined_call_operand.vmem [shape: f32[1,128], index: 5, kind: input, shape index: {}]
  %s6 = inlined_call_operand.vmem [shape: f32[1,128], index: 6, kind: input, shape index: {}]
  %s7 = inlined_call_operand.vmem [shape: f32[1,128], index: 7, kind: input, shape index: {}]
  %s8 = inlined_call_operand.vmem [shape: f32[128,32], index: 8, kind: input, shape index: {}]
  %s9 = inlined_call_operand.vmem [shape: f32[1,128], index: 9, kind: input, shape index: {}]
  %s10 = inlined_call_operand.hbm [shape: bf16[1152,128], index: 10, kind: input, shape index: {}]
  %s11 = inlined_call_operand.hbm [shape: bf16[1280,128], index: 11, kind: input, shape index: {}]
  %s12 = inlined_call_operand.hbm [shape: f32[2,8,8,128], index: 12, kind: output, shape index: {}]
  %s13 = sld [smem:[#allocation0]]
  $region66: #{tpu_custom_call.1} parent=0
    _
  %s15 = ssub.s32 1, %s13
  %s16 = scalar_select 0, %s15, %s13
  $region1: #{tpu_custom_call.1} parent=0
    #allocation4 [shape = 'u8[294912]{0}', space=vmem, size = 0x48000, scoped, tag = 'input window, operand 10, single buffered']
    #allocation5 [shape = 's32[1]{0}', space=sflag, size = 0x4, scoped, tag = 'scoped memory for tpu_custom_call.1']
    #allocation6 [shape = 's32[1]{0}', space=sflag, size = 0x4, scoped, tag = 'scoped memory for tpu_custom_call.1']
    #allocation7 [shape = 'u8[327680]{0}', space=vmem, size = 0x50000, scoped, tag = 'input window, operand 11, single buffered']
    #allocation8 [shape = 's32[1]{0}', space=sflag, size = 0x4, scoped, tag = 'scoped memory for tpu_custom_call.1']
    #allocation9 [shape = 'u8[65536]{0}', space=vmem, size = 0x10000, scoped, tag = 'output window, operand 0, single buffered']
    %17 = vsyncpa [#allocation5], 0
    %18 = vsyncpa [#allocation8], 0
    %19 = vsyncpa [#allocation6], 0
    // Predicated region
    $region2: #{tpu_custom_call.1} parent=1 // pred_check
      _
    $region3: #{tpu_custom_call.1} parent=1 // pred_check_branch
      %21 = sbr.rel (0) target = $region5
    $region4: #{tpu_custom_call.1} parent=1 // pred_region
      _
    $region5: #{tpu_custom_call.1} parent=1 // pred_fallthru
      _
    // Predicated region
    $region6: #{tpu_custom_call.1} parent=1 // pred_check
      _
    $region7: #{tpu_custom_call.1} parent=1 // pred_check_branch
      %23 = sbr.rel (0) target = $region9
    $region8: #{tpu_custom_call.1} parent=1 // pred_region
      _
    $region9: #{tpu_custom_call.1} parent=1 // pred_fallthru
      _
    // Predicated region
    $region10: #{tpu_custom_call.1} parent=1 // pred_check
      _
    $region11: #{tpu_custom_call.1} parent=1 // pred_check_branch
      %25 = sbr.rel (0) target = $region13
    $region12: #{tpu_custom_call.1} parent=1 // pred_region
      _
    $region13: #{tpu_custom_call.1} parent=1 // pred_fallthru
      _
    // Predicated region
    $region14: #{tpu_custom_call.1} parent=1 // pred_check
      _
    $region15: #{tpu_custom_call.1} parent=1 // pred_check_branch
      %27 = sbr.rel (0) target = $region17
    $region16: #{tpu_custom_call.1} parent=1 // pred_region
      _
    $region17: #{tpu_custom_call.1} parent=1 // pred_fallthru
      _
    // Predicated region
    $region18: #{tpu_custom_call.1} parent=1 // pred_check
      _
    $region19: #{tpu_custom_call.1} parent=1 // pred_check_branch
      %29 = sbr.rel (0) target = $region21
    $region20: #{tpu_custom_call.1} parent=1 // pred_region
      _
    $region21: #{tpu_custom_call.1} parent=1 // pred_fallthru
      _
    // Predicated region
    $region22: #{tpu_custom_call.1} parent=1 // pred_check
      _
    $region23: #{tpu_custom_call.1} parent=1 // pred_check_branch
      %31 = sbr.rel (0) target = $region25
    $region24: #{tpu_custom_call.1} parent=1 // pred_region
      _
    $region25: #{tpu_custom_call.1} parent=1 // pred_fallthru
      _
    // Predicated region
    $region26: #{tpu_custom_call.1} parent=1 // pred_check
      _
    $region27: #{tpu_custom_call.1} parent=1 // pred_check_branch
      %33 = sbr.rel (0) target = $region29
    $region28: #{tpu_custom_call.1} parent=1 // pred_region
      _
    $region29: #{tpu_custom_call.1} parent=1 // pred_fallthru
      _
    // Predicated region
    $region30: #{tpu_custom_call.1} parent=1 // pred_check
      _
    $region31: #{tpu_custom_call.1} parent=1 // pred_check_branch
      %35 = sbr.rel (0) target = $region33
    $region32: #{tpu_custom_call.1} parent=1 // pred_region
      _
    $region33: #{tpu_custom_call.1} parent=1 // pred_fallthru
      _
    // Predicated region
    $region34: #{tpu_custom_call.1} parent=1 // pred_check
      _
    $region35: #{tpu_custom_call.1} parent=1 // pred_check_branch
      %37 = sbr.rel (0) target = $region37
    $region36: #{tpu_custom_call.1} parent=1 // pred_region
      _
    $region37: #{tpu_custom_call.1} parent=1 // pred_fallthru
      _
    // Predicated region
    $region38: #{tpu_custom_call.1} parent=1 // pred_check
      _
    $region39: #{tpu_custom_call.1} parent=1 // pred_check_branch
      %39 = sbr.rel (0) target = $region41
    $region40: #{tpu_custom_call.1} parent=1 // pred_region
      _
    $region41: #{tpu_custom_call.1} parent=1 // pred_fallthru
      _
    // Predicated region
    $region42: #{tpu_custom_call.1} parent=1 // pred_check
      _
    $region43: #{tpu_custom_call.1} parent=1 // pred_check_branch
      %41 = sbr.rel (0) target = $region45
    $region44: #{tpu_custom_call.1} parent=1 // pred_region
      %s43 = ssub.s32 9216, 9216
      %44 = vsyncadd [#allocation5], %s43
      %s45 = sshll.u32 [#allocation4], 4
      %s46 = int_to_ptr.vmem [resolvable:$true] %s45
      %51 = dma.hbm_to_vmem [thread:$0]  %s10, 9216, %s46, [#allocation5], 64, 64, 4
    $region45: #{tpu_custom_call.1} parent=1 // pred_fallthru
      _
    // Predicated region
    $region46: #{tpu_custom_call.1} parent=1 // pred_check
      _
    $region47: #{tpu_custom_call.1} parent=1 // pred_check_branch
      %53 = sbr.rel (0) target = $region49
    $region48: #{tpu_custom_call.1} parent=1 // pred_region
      %s55 = ssub.s32 10240, 10240
      %56 = vsyncadd [#allocation8], %s55
      %s57 = sshll.u32 [#allocation7], 4
      %s58 = int_to_ptr.vmem [resolvable:$true] %s57
      %63 = dma.hbm_to_vmem [thread:$0]  %s11, 10240, %s58, [#allocation8], 64, 64, 4
    $region49: #{tpu_custom_call.1} parent=1 // pred_fallthru
      _
    // Predicated region
    $region50: #{tpu_custom_call.1} parent=1 // pred_check
      _
    $region51: #{tpu_custom_call.1} parent=1 // pred_check_branch
      %65 = sbr.rel (0) target = $region53
    $region52: #{tpu_custom_call.1} parent=1 // pred_region
      %66 = dma.done [#allocation5], 9216
    $region53: #{tpu_custom_call.1} parent=1 // pred_fallthru
      _
    // Predicated region
    $region54: #{tpu_custom_call.1} parent=1 // pred_check
      _
    $region55: #{tpu_custom_call.1} parent=1 // pred_check_branch
      %68 = sbr.rel (0) target = $region57
    $region56: #{tpu_custom_call.1} parent=1 // pred_region
      %69 = dma.done [#allocation8], 10240
    $region57: #{tpu_custom_call.1} parent=1 // pred_fallthru
      _
    %v71 = vld [vmem:[%s0] sm:$0xf]
    %v72 = vld [vmem:[%s0 + $0x4] sm:$0xf]
    %v73 = vld [vmem:[%s0 + $0x8] sm:$0xf]
    %v74 = vld [vmem:[%s0 + $0xc] sm:$0xf]
    %v75 = vld [vmem:[%s0 + $0x10] sm:$0xf]
    %v76 = vld [vmem:[%s0 + $0x14] sm:$0xf]
    %v77 = vld [vmem:[%s0 + $0x18] sm:$0xf]
    %v78 = vld [vmem:[%s0 + $0x1c] sm:$0xf]
    %v79 = vld [vmem:[%s0 + $0x20] sm:$0xf]
    %v80 = vld [vmem:[%s0 + $0x24] sm:$0xf]
    %v81 = vld [vmem:[%s0 + $0x28] sm:$0xf]
    %v82 = vld [vmem:[%s0 + $0x2c] sm:$0xf]
    %v83 = vld [vmem:[%s0 + $0x30] sm:$0xf]
    %v84 = vld [vmem:[%s0 + $0x34] sm:$0xf]
    %v85 = vld [vmem:[%s0 + $0x38] sm:$0xf]
    %v86 = vld [vmem:[%s0 + $0x3c] sm:$0xf]
    %v87 = vunpack.c.l.bf16 %v71
    %v88 = vunpack.c.l.bf16 %v72
    %v89 = vunpack.c.l.bf16 %v73
    %v90 = vunpack.c.l.bf16 %v74
    %v91 = vunpack.c.l.bf16 %v75
    %v92 = vunpack.c.l.bf16 %v76
    %v93 = vunpack.c.l.bf16 %v77
    %v94 = vunpack.c.l.bf16 %v78
    %v95 = vunpack.c.l.bf16 %v79
    %v96 = vunpack.c.l.bf16 %v80
    %v97 = vunpack.c.l.bf16 %v81
    %v98 = vunpack.c.l.bf16 %v82
    %v99 = vunpack.c.l.bf16 %v83
    %v100 = vunpack.c.l.bf16 %v84
    %v101 = vunpack.c.l.bf16 %v85
    %v102 = vunpack.c.l.bf16 %v86
    %v103 = vld [vmem:[%s4] sm:$0xff]
    %v104 = vld [vmem:[%s4 + $0x8] sm:$0xff]
    %v105 = vld [vmem:[%s4 + $0x10] sm:$0xff]
    %v106 = vld [vmem:[%s4 + $0x18] sm:$0xff]
    %v107 = vld [vmem:[%s4 + $0x20] sm:$0xff]
    %v108 = vld [vmem:[%s4 + $0x28] sm:$0xff]
    %v109 = vld [vmem:[%s4 + $0x30] sm:$0xff]
    %v110 = vld [vmem:[%s4 + $0x38] sm:$0xff]
    %v111 = vld [vmem:[%s4 + $0x40] sm:$0xff]
    %v112 = vld [vmem:[%s4 + $0x48] sm:$0xff]
    %v113 = vld [vmem:[%s4 + $0x50] sm:$0xff]
    %v114 = vld [vmem:[%s4 + $0x58] sm:$0xff]
    %v115 = vld [vmem:[%s4 + $0x60] sm:$0xff]
    %v116 = vld [vmem:[%s4 + $0x68] sm:$0xff]
    %v117 = vld [vmem:[%s4 + $0x70] sm:$0xff]
    %v118 = vld [vmem:[%s4 + $0x78] sm:$0xff]
    %v119 = vld [vmem:[%s2] sm:$0x1]
    %v120 = vld [vmem:[%s3] sm:$0x1]
    %v121 = vadd.f32 %v87, %v88
    %v122 = vadd.f32 %v121, %v89
    %v123 = vadd.f32 %v122, %v90
    %v124 = vadd.f32 %v123, %v91
    %v125 = vadd.f32 %v124, %v92
    %v126 = vadd.f32 %v125, %v93
    %v127 = vadd.f32 %v126, %v94
    %v128 = vrot.slane %v127, 4
    %v129 = vadd.f32 %v127, %v128
    %v130 = vrot.slane %v129, 2
    %v131 = vadd.f32 %v129, %v130
    %v132 = vrot.slane %v131, 1
    %v133 = vadd.f32 %v131, %v132
    %v134 = vadd.f32 %v95, %v96
    %v135 = vadd.f32 %v134, %v97
    %v136 = vadd.f32 %v135, %v98
    %v137 = vadd.f32 %v136, %v99
    %v138 = vadd.f32 %v137, %v100
    %v139 = vadd.f32 %v138, %v101
    %v140 = vadd.f32 %v139, %v102
    %v141 = vrot.slane %v140, 4
    %v142 = vadd.f32 %v140, %v141
    %v143 = vrot.slane %v142, 2
    %v144 = vadd.f32 %v142, %v143
    %v145 = vrot.slane %v144, 1
    %v146 = vadd.f32 %v144, %v145
    %v147 = vmul.f32 %v87, %v87
    %v148 = vmul.f32 %v88, %v88
    %v149 = vmul.f32 %v89, %v89
    %v150 = vmul.f32 %v90, %v90
    %v151 = vmul.f32 %v91, %v91
    %v152 = vmul.f32 %v92, %v92
    %v153 = vmul.f32 %v93, %v93
    %v154 = vmul.f32 %v94, %v94
    %v155 = vmul.f32 %v95, %v95
    %v156 = vmul.f32 %v96, %v96
    %v157 = vmul.f32 %v97, %v97
    %v158 = vmul.f32 %v98, %v98
    %v159 = vmul.f32 %v99, %v99
    %v160 = vmul.f32 %v100, %v100
    %v161 = vmul.f32 %v101, %v101
    %v162 = vmul.f32 %v102, %v102
    %v163 = vadd.f32 %v147, %v148
    %v164 = vadd.f32 %v163, %v149
    %v165 = vadd.f32 %v164, %v150
    %v166 = vadd.f32 %v165, %v151
    %v167 = vadd.f32 %v166, %v152
    %v168 = vadd.f32 %v167, %v153
    %v169 = vadd.f32 %v168, %v154
    %v170 = vrot.slane %v169, 4
    %v171 = vadd.f32 %v169, %v170
    %v172 = vrot.slane %v171, 2
    %v173 = vadd.f32 %v171, %v172
    %v174 = vrot.slane %v173, 1
    %v175 = vadd.f32 %v173, %v174
    %v176 = vadd.f32 %v155, %v156
    %v177 = vadd.f32 %v176, %v157
    %v178 = vadd.f32 %v177, %v158
    %v179 = vadd.f32 %v178, %v159
    %v180 = vadd.f32 %v179, %v160
    %v181 = vadd.f32 %v180, %v161
    %v182 = vadd.f32 %v181, %v162
    %v183 = vrot.slane %v182, 4
    %v184 = vadd.f32 %v182, %v183
    %v185 = vrot.slane %v184, 2
    %v186 = vadd.f32 %v184, %v185
    %v187 = vrot.slane %v186, 1
    %v188 = vadd.f32 %v186, %v187
    %vm191 = vcmask 1041409
    %v192 = vsel %vm191, %v146, %v133
    %vm196 = vcmask 1043459
    %v197 = vsel %vm196, %v188, %v175
    %vm199 = vcmask 1041408
    %v200 = vsel %vm199, %v192, %v197
    %201 = vmatprep.subr.mxu0 0.0
    %202 = vmatpush1.msra.mxu0 %v118
    %203 = vmatprep.subr.mxu0 0.0
    %204 = vmatpush1.msra.mxu0 %v117
    %205 = vmatprep.subr.mxu0 0.0
    %206 = vmatpush1.msra.mxu0 %v116
    %207 = vmatprep.subr.mxu0 0.0
    %208 = vmatpush1.msra.mxu0 %v115
    %209 = vmatprep.subr.mxu0 0.0
    %210 = vmatpush1.msra.mxu0 %v114
    %211 = vmatprep.subr.mxu0 0.0
    %212 = vmatpush1.msra.mxu0 %v113
    %213 = vmatprep.subr.mxu0 0.0
    %214 = vmatpush1.msra.mxu0 %v112
    %215 = vmatprep.subr.mxu0 0.0
    %216 = vmatpush1.msra.mxu0 %v111
    %217 = vmatprep.subr.mxu0 0.0
    %218 = vmatpush1.msra.mxu0 %v110
    %219 = vmatprep.subr.mxu0 0.0
    %220 = vmatpush1.msra.mxu0 %v109
    %221 = vmatprep.subr.mxu0 0.0
    %222 = vmatpush1.msra.mxu0 %v108
    %223 = vmatprep.subr.mxu0 0.0
    %224 = vmatpush1.msra.mxu0 %v107
    %225 = vmatprep.subr.mxu0 0.0
    %226 = vmatpush1.msra.mxu0 %v106
    %227 = vmatprep.subr.mxu0 0.0
    %228 = vmatpush1.msra.mxu0 %v105
    %229 = vmatprep.subr.mxu0 0.0
    %230 = vmatpush1.msra.mxu0 %v104
    %231 = vmatprep.subr.mxu0 0.0
    %232 = vmatpush1.msra.mxu0 %v103
    %233 = vmatprep.subr.mxu0 0.0
    %234 = vmatpush2.msra.mxu0 0.0
    %235 = vmatprep.subr.mxu0 0.0
    %236 = vmatpush2.msra.mxu0 0.0
    %237 = vmatprep.subr.mxu0 0.0
    %238 = vmatpush2.msra.mxu0 0.0
    %239 = vmatprep.subr.mxu0 0.0
    %240 = vmatpush2.msra.mxu0 0.0
    %241 = vmatprep.subr.mxu0 0.0
    %242 = vmatpush2.msra.mxu0 0.0
    %243 = vmatprep.subr.mxu0 0.0
    %244 = vmatpush2.msra.mxu0 0.0
    %245 = vmatprep.subr.mxu0 0.0
    %246 = vmatpush2.msra.mxu0 0.0
    %247 = vmatprep.subr.mxu0 0.0
    %248 = vmatpush2.msra.mxu0 0.0
    %249 = vmatprep.subr.mxu0 0.0
    %250 = vmatpush2.msra.mxu0 0.0
    %251 = vmatprep.subr.mxu0 0.0
    %252 = vmatpush2.msra.mxu0 0.0
    %253 = vmatprep.subr.mxu0 0.0
    %254 = vmatpush2.msra.mxu0 0.0
    %255 = vmatprep.subr.mxu0 0.0
    %256 = vmatpush2.msra.mxu0 0.0
    %257 = vmatprep.subr.mxu0 0.0
    %258 = vmatpush2.msra.mxu0 0.0
    %259 = vmatprep.subr.mxu0 0.0
    %260 = vmatpush2.msra.mxu0 0.0
    %261 = vmatprep.subr.mxu0 0.0
    %262 = vmatpush2.msra.mxu0 0.0
    %263 = vmatprep.subr.mxu0 0.0
    %264 = vmatpush2.msra.mxu0 0.0
    %265 = vmatprep.mubr.f32.mxu0 0.0
    %266 = vmatmul.mubr.f32.gmra.mxu0 %v200
    %v267 = vpop.f32.mrf.mxu0
    %v268 = vadd.f32 0.0, %v267
    %v269 = vpop.f32.mrf.mxu0
    %270 = vdwg.mxu0
    %v271 = vrcp.pop 64.0
    %v272 = vmul.f32 %v268, %v271
    %v273 = vmul.f32 %v272, %v272
    %v275 = vrot.slane %v273, 6
    %v277 = vsub.f32 %v272, %v275
    %v278 = vadd.f32 %v277, 1e-05
    %v279 = vrsqrt.pop %v278
    %vm280 = vcmask 261120
    %v282 = vsel %vm280, %v272, 0
    %v285 = vsel %vm280, %v103, 0
    %v288 = vsel %vm280, %v104, 0
    %v291 = vsel %vm280, %v105, 0
    %v294 = vsel %vm280, %v106, 0
    %v297 = vsel %vm280, %v107, 0
    %v300 = vsel %vm280, %v108, 0
    %v303 = vsel %vm280, %v109, 0
    %v306 = vsel %vm280, %v110, 0
    %v309 = vsel %vm280, %v111, 0
    %v312 = vsel %vm280, %v112, 0
    %v315 = vsel %vm280, %v113, 0
    %v318 = vsel %vm280, %v114, 0
    %v321 = vsel %vm280, %v115, 0
    %v324 = vsel %vm280, %v116, 0
    %v327 = vsel %vm280, %v117, 0
    %v330 = vsel %vm280, %v118, 0
    %332 = vmatprep.subr.mxu0 0.0
    %333 = vmatpush1.xpose.msra.mxu0 %v330
    %334 = vmatprep.subr.mxu0 0.0
    %335 = vmatpush1.xpose.msra.mxu0 %v327
    %336 = vmatprep.subr.mxu0 0.0
    %337 = vmatpush1.xpose.msra.mxu0 %v324
    %338 = vmatprep.subr.mxu0 0.0
    %339 = vmatpush1.xpose.msra.mxu0 %v321
    %340 = vmatprep.subr.mxu0 0.0
    %341 = vmatpush1.xpose.msra.mxu0 %v318
    %342 = vmatprep.subr.mxu0 0.0
    %343 = vmatpush1.xpose.msra.mxu0 %v315
    %344 = vmatprep.subr.mxu0 0.0
    %345 = vmatpush1.xpose.msra.mxu0 %v312
    %346 = vmatprep.subr.mxu0 0.0
    %347 = vmatpush1.xpose.msra.mxu0 %v309
    %348 = vmatprep.subr.mxu0 0.0
    %349 = vmatpush1.xpose.msra.mxu0 %v306
    %350 = vmatprep.subr.mxu0 0.0
    %351 = vmatpush1.xpose.msra.mxu0 %v303
    %352 = vmatprep.subr.mxu0 0.0
    %353 = vmatpush1.xpose.msra.mxu0 %v300
    %354 = vmatprep.subr.mxu0 0.0
    %355 = vmatpush1.xpose.msra.mxu0 %v297
    %356 = vmatprep.subr.mxu0 0.0
    %357 = vmatpush1.xpose.msra.mxu0 %v294
    %358 = vmatprep.subr.mxu0 0.0
    %359 = vmatpush1.xpose.msra.mxu0 %v291
    %360 = vmatprep.subr.mxu0 0.0
    %361 = vmatpush1.xpose.msra.mxu0 %v288
    %362 = vmatprep.subr.mxu0 0.0
    %363 = vmatpush1.xpose.msra.mxu0 %v285
    %364 = vmatprep.subr.mxu0 0.0
    %365 = vmatpush2.xpose.msra.mxu0 0.0
    %366 = vmatprep.subr.mxu0 0.0
    %367 = vmatpush2.xpose.msra.mxu0 0.0
    %368 = vmatprep.subr.mxu0 0.0
    %369 = vmatpush2.xpose.msra.mxu0 0.0
    %370 = vmatprep.subr.mxu0 0.0
    %371 = vmatpush2.xpose.msra.mxu0 0.0
    %372 = vmatprep.subr.mxu0 0.0
    %373 = vmatpush2.xpose.msra.mxu0 0.0
    %374 = vmatprep.subr.mxu0 0.0
    %375 = vmatpush2.xpose.msra.mxu0 0.0
    %376 = vmatprep.subr.mxu0 0.0
    %377 = vmatpush2.xpose.msra.mxu0 0.0
    %378 = vmatprep.subr.mxu0 0.0
    %379 = vmatpush2.xpose.msra.mxu0 0.0
    %380 = vmatprep.subr.mxu0 0.0
    %381 = vmatpush2.xpose.msra.mxu0 0.0
    %382 = vmatprep.subr.mxu0 0.0
    %383 = vmatpush2.xpose.msra.mxu0 0.0
    %384 = vmatprep.subr.mxu0 0.0
    %385 = vmatpush2.xpose.msra.mxu0 0.0
    %386 = vmatprep.subr.mxu0 0.0
    %387 = vmatpush2.xpose.msra.mxu0 0.0
    %388 = vmatprep.subr.mxu0 0.0
    %389 = vmatpush2.xpose.msra.mxu0 0.0
    %390 = vmatprep.subr.mxu0 0.0
    %391 = vmatpush2.xpose.msra.mxu0 0.0
    %392 = vmatprep.subr.mxu0 0.0
    %393 = vmatpush2.xpose.msra.mxu0 0.0
    %394 = vmatprep.subr.mxu0 0.0
    %395 = vmatpush2.xpose.msra.mxu0 0.0
    %396 = vmatprep.mubr.f32.mxu0 0.0
    %397 = vmatmul.mubr.f32.gmra.mxu0 %v282
    %v398 = vpop.f32.mrf.mxu0
    %v399 = vadd.f32 0.0, %v398
    %v400 = vpop.f32.mrf.mxu0
    %401 = vdwg.mxu0
    %v404 = vunpack.c.l.s4 1966171168
    %v405 = vunpack.c.0.s8 %v404
    %v406 = vlaneseq
    %v407 = vshrl.u32 %v406, 7
    %v408 = vsub.s32 %v405, %v407
    %v409 = vrot.slane %v399, %v408
    %v410 = vcombine.high %v409, %v409
    %v412 = vunpack.c.l.s4 1966171168
    %v413 = vunpack.c.0.s8 %v412
    %v414 = vlaneseq
    %v415 = vshrl.u32 %v414, 7
    %v416 = vsub.s32 %v413, %v415
    %v417 = vrot.slane %v409, %v416
    %v419 = vunpack.c.l.s4 1966171168
    %v420 = vunpack.c.0.s8 %v419
    %v421 = vlaneseq
    %v422 = vshrl.u32 %v421, 7
    %v423 = vsub.s32 %v420, %v422
    %v424 = vrot.slane %v410, %v423
    %v425 = vlaneseq
    %v426 = vshrl.u32 %v425, 7
    %v427 = vsub.s32 0, %v426
    %v428 = vrot.slane %v417, %v427
    %v429 = vlaneseq
    %v430 = vshrl.u32 %v429, 7
    %v431 = vsub.s32 0, %v430
    %v432 = vrot.slane %v424, %v431
    %v435 = vsub.f32 %v87, %v428
    %v436 = vsub.f32 %v88, %v428
    %v437 = vsub.f32 %v89, %v428
    %v438 = vsub.f32 %v90, %v428
    %v439 = vsub.f32 %v91, %v428
    %v440 = vsub.f32 %v92, %v428
    %v441 = vsub.f32 %v93, %v428
    %v442 = vsub.f32 %v94, %v428
    %v443 = vsub.f32 %v95, %v432
    %v444 = vsub.f32 %v96, %v432
    %v445 = vsub.f32 %v97, %v432
    %v446 = vsub.f32 %v98, %v432
    %v447 = vsub.f32 %v99, %v432
    %v448 = vsub.f32 %v100, %v432
    %v449 = vsub.f32 %v101, %v432
    %v450 = vsub.f32 %v102, %v432
    %v452 = vrot.slane %v279, 2
    %v453 = vsel %vm280, %v452, 0
    %455 = vmatprep.subr.mxu0 0.0
    %456 = vmatpush1.xpose.msra.mxu0 %v330
    %457 = vmatprep.subr.mxu0 0.0
    %458 = vmatpush1.xpose.msra.mxu0 %v327
    %459 = vmatprep.subr.mxu0 0.0
    %460 = vmatpush1.xpose.msra.mxu0 %v324
    %461 = vmatprep.subr.mxu0 0.0
    %462 = vmatpush1.xpose.msra.mxu0 %v321
    %463 = vmatprep.subr.mxu0 0.0
    %464 = vmatpush1.xpose.msra.mxu0 %v318
    %465 = vmatprep.subr.mxu0 0.0
    %466 = vmatpush1.xpose.msra.mxu0 %v315
    %467 = vmatprep.subr.mxu0 0.0
    %468 = vmatpush1.xpose.msra.mxu0 %v312
    %469 = vmatprep.subr.mxu0 0.0
    %470 = vmatpush1.xpose.msra.mxu0 %v309
    %471 = vmatprep.subr.mxu0 0.0
    %472 = vmatpush1.xpose.msra.mxu0 %v306
    %473 = vmatprep.subr.mxu0 0.0
    %474 = vmatpush1.xpose.msra.mxu0 %v303
    %475 = vmatprep.subr.mxu0 0.0
    %476 = vmatpush1.xpose.msra.mxu0 %v300
    %477 = vmatprep.subr.mxu0 0.0
    %478 = vmatpush1.xpose.msra.mxu0 %v297
    %479 = vmatprep.subr.mxu0 0.0
    %480 = vmatpush1.xpose.msra.mxu0 %v294
    %481 = vmatprep.subr.mxu0 0.0
    %482 = vmatpush1.xpose.msra.mxu0 %v291
    %483 = vmatprep.subr.mxu0 0.0
    %484 = vmatpush1.xpose.msra.mxu0 %v288
    %485 = vmatprep.subr.mxu0 0.0
    %486 = vmatpush1.xpose.msra.mxu0 %v285
    %487 = vmatprep.subr.mxu0 0.0
    %488 = vmatpush2.xpose.msra.mxu0 0.0
    %489 = vmatprep.subr.mxu0 0.0
    %490 = vmatpush2.xpose.msra.mxu0 0.0
    %491 = vmatprep.subr.mxu0 0.0
    %492 = vmatpush2.xpose.msra.mxu0 0.0
    %493 = vmatprep.subr.mxu0 0.0
    %494 = vmatpush2.xpose.msra.mxu0 0.0
    %495 = vmatprep.subr.mxu0 0.0
    %496 = vmatpush2.xpose.msra.mxu0 0.0
    %497 = vmatprep.subr.mxu0 0.0
    %498 = vmatpush2.xpose.msra.mxu0 0.0
    %499 = vmatprep.subr.mxu0 0.0
    %500 = vmatpush2.xpose.msra.mxu0 0.0
    %501 = vmatprep.subr.mxu0 0.0
    %502 = vmatpush2.xpose.msra.mxu0 0.0
    %503 = vmatprep.subr.mxu0 0.0
    %504 = vmatpush2.xpose.msra.mxu0 0.0
    %505 = vmatprep.subr.mxu0 0.0
    %506 = vmatpush2.xpose.msra.mxu0 0.0
    %507 = vmatprep.subr.mxu0 0.0
    %508 = vmatpush2.xpose.msra.mxu0 0.0
    %509 = vmatprep.subr.mxu0 0.0
    %510 = vmatpush2.xpose.msra.mxu0 0.0
    %511 = vmatprep.subr.mxu0 0.0
    %512 = vmatpush2.xpose.msra.mxu0 0.0
    %513 = vmatprep.subr.mxu0 0.0
    %514 = vmatpush2.xpose.msra.mxu0 0.0
    %515 = vmatprep.subr.mxu0 0.0
    %516 = vmatpush2.xpose.msra.mxu0 0.0
    %517 = vmatprep.subr.mxu0 0.0
    %518 = vmatpush2.xpose.msra.mxu0 0.0
    %519 = vmatprep.mubr.f32.mxu0 0.0
    %520 = vmatmul.mubr.f32.gmra.mxu0 %v453
    %v521 = vpop.f32.mrf.mxu0
    %v522 = vadd.f32 0.0, %v521
    %v523 = vpop.f32.mrf.mxu0
    %524 = vdwg.mxu0
    %v527 = vunpack.c.l.s4 1966171168
    %v528 = vunpack.c.0.s8 %v527
    %v529 = vlaneseq
    %v530 = vshrl.u32 %v529, 7
    %v531 = vsub.s32 %v528, %v530
    %v532 = vrot.slane %v522, %v531
    %v533 = vcombine.high %v532, %v532
    %v535 = vunpack.c.l.s4 1966171168
    %v536 = vunpack.c.0.s8 %v535
    %v537 = vlaneseq
    %v538 = vshrl.u32 %v537, 7
    %v539 = vsub.s32 %v536, %v538
    %v540 = vrot.slane %v532, %v539
    %v542 = vunpack.c.l.s4 1966171168
    %v543 = vunpack.c.0.s8 %v542
    %v544 = vlaneseq
    %v545 = vshrl.u32 %v544, 7
    %v546 = vsub.s32 %v543, %v545
    %v547 = vrot.slane %v533, %v546
    %v548 = vlaneseq
    %v549 = vshrl.u32 %v548, 7
    %v550 = vsub.s32 0, %v549
    %v551 = vrot.slane %v540, %v550
    %v552 = vlaneseq
    %v553 = vshrl.u32 %v552, 7
    %v554 = vsub.s32 0, %v553
    %v555 = vrot.slane %v547, %v554
    %v558 = vmul.f32 %v435, %v551
    %v559 = vmul.f32 %v436, %v551
    %v560 = vmul.f32 %v437, %v551
    %v561 = vmul.f32 %v438, %v551
    %v562 = vmul.f32 %v439, %v551
    %v563 = vmul.f32 %v440, %v551
    %v564 = vmul.f32 %v441, %v551
    %v565 = vmul.f32 %v442, %v551
    %v566 = vmul.f32 %v443, %v555
    %v567 = vmul.f32 %v444, %v555
    %v568 = vmul.f32 %v445, %v555
    %v569 = vmul.f32 %v446, %v555
    %v570 = vmul.f32 %v447, %v555
    %v571 = vmul.f32 %v448, %v555
    %v572 = vmul.f32 %v449, %v555
    %v573 = vmul.f32 %v450, %v555
    %v575 = vlaneseq
    %v576 = vshrl.u32 %v575, 7
    %v577 = vsub.s32 0, %v576
    %v578 = vrot.slane %v119, %v577
    %v580 = vmul.f32 %v558, %v578
    %v581 = vmul.f32 %v559, %v578
    %v582 = vmul.f32 %v560, %v578
    %v583 = vmul.f32 %v561, %v578
    %v584 = vmul.f32 %v562, %v578
    %v585 = vmul.f32 %v563, %v578
    %v586 = vmul.f32 %v564, %v578
    %v587 = vmul.f32 %v565, %v578
    %v588 = vmul.f32 %v566, %v578
    %v589 = vmul.f32 %v567, %v578
    %v590 = vmul.f32 %v568, %v578
    %v591 = vmul.f32 %v569, %v578
    %v592 = vmul.f32 %v570, %v578
    %v593 = vmul.f32 %v571, %v578
    %v594 = vmul.f32 %v572, %v578
    %v595 = vmul.f32 %v573, %v578
    %v597 = vlaneseq
    %v598 = vshrl.u32 %v597, 7
    %v599 = vsub.s32 0, %v598
    %v600 = vrot.slane %v120, %v599
    %v602 = vadd.f32 %v580, %v600
    %v603 = vadd.f32 %v581, %v600
    %v604 = vadd.f32 %v582, %v600
    %v605 = vadd.f32 %v583, %v600
    %v606 = vadd.f32 %v584, %v600
    %v607 = vadd.f32 %v585, %v600
    %v608 = vadd.f32 %v586, %v600
    %v609 = vadd.f32 %v587, %v600
    %v610 = vadd.f32 %v588, %v600
    %v611 = vadd.f32 %v589, %v600
    %v612 = vadd.f32 %v590, %v600
    %v613 = vadd.f32 %v591, %v600
    %v614 = vadd.f32 %v592, %v600
    %v615 = vadd.f32 %v593, %v600
    %v616 = vadd.f32 %v594, %v600
    %v617 = vadd.f32 %v595, %v600
    %v618 = vxor.u32 %v602, 2147483648
    %v619 = vxor.u32 %v603, 2147483648
    %v620 = vxor.u32 %v604, 2147483648
    %v621 = vxor.u32 %v605, 2147483648
    %v622 = vxor.u32 %v606, 2147483648
    %v623 = vxor.u32 %v607, 2147483648
    %v624 = vxor.u32 %v608, 2147483648
    %v625 = vxor.u32 %v609, 2147483648
    %v626 = vxor.u32 %v610, 2147483648
    %v627 = vxor.u32 %v611, 2147483648
    %v628 = vxor.u32 %v612, 2147483648
    %v629 = vxor.u32 %v613, 2147483648
    %v630 = vxor.u32 %v614, 2147483648
    %v631 = vxor.u32 %v615, 2147483648
    %v632 = vxor.u32 %v616, 2147483648
    %v633 = vxor.u32 %v617, 2147483648
    %v634 = vmul.f32 %v618, 1.442695
    %v635 = vpow.pop %v634
    %v636 = vmul.f32 %v619, 1.442695
    %v637 = vpow.pop %v636
    %v638 = vmul.f32 %v620, 1.442695
    %v639 = vpow.pop %v638
    %v640 = vmul.f32 %v621, 1.442695
    %v641 = vpow.pop %v640
    %v642 = vmul.f32 %v622, 1.442695
    %v643 = vpow.pop %v642
    %v644 = vmul.f32 %v623, 1.442695
    %v645 = vpow.pop %v644
    %v646 = vmul.f32 %v624, 1.442695
    %v647 = vpow.pop %v646
    %v648 = vmul.f32 %v625, 1.442695
    %v649 = vpow.pop %v648
    %v650 = vmul.f32 %v626, 1.442695
    %v651 = vpow.pop %v650
    %v652 = vmul.f32 %v627, 1.442695
    %v653 = vpow.pop %v652
    %v654 = vmul.f32 %v628, 1.442695
    %v655 = vpow.pop %v654
    %v656 = vmul.f32 %v629, 1.442695
    %v657 = vpow.pop %v656
    %v658 = vmul.f32 %v630, 1.442695
    %v659 = vpow.pop %v658
    %v660 = vmul.f32 %v631, 1.442695
    %v661 = vpow.pop %v660
    %v662 = vmul.f32 %v632, 1.442695
    %v663 = vpow.pop %v662
    %v664 = vmul.f32 %v633, 1.442695
    %v665 = vpow.pop %v664
    %v666 = vadd.f32 %v635, 1.0
    %v667 = vadd.f32 %v637, 1.0
    %v668 = vadd.f32 %v639, 1.0
    %v669 = vadd.f32 %v641, 1.0
    %v670 = vadd.f32 %v643, 1.0
    %v671 = vadd.f32 %v645, 1.0
    %v672 = vadd.f32 %v647, 1.0
    %v673 = vadd.f32 %v649, 1.0
    %v674 = vadd.f32 %v651, 1.0
    %v675 = vadd.f32 %v653, 1.0
    %v676 = vadd.f32 %v655, 1.0
    %v677 = vadd.f32 %v657, 1.0
    %v678 = vadd.f32 %v659, 1.0
    %v679 = vadd.f32 %v661, 1.0
    %v680 = vadd.f32 %v663, 1.0
    %v681 = vadd.f32 %v665, 1.0
    %v682 = vrcp.pop %v666
    %v683 = vmul.f32 1.0, %v682
    %v684 = vrcp.pop %v667
    %v685 = vmul.f32 1.0, %v684
    %v686 = vrcp.pop %v668
    %v687 = vmul.f32 1.0, %v686
    %v688 = vrcp.pop %v669
    %v689 = vmul.f32 1.0, %v688
    %v690 = vrcp.pop %v670
    %v691 = vmul.f32 1.0, %v690
    %v692 = vrcp.pop %v671
    %v693 = vmul.f32 1.0, %v692
    %v694 = vrcp.pop %v672
    %v695 = vmul.f32 1.0, %v694
    %v696 = vrcp.pop %v673
    %v697 = vmul.f32 1.0, %v696
    %v698 = vrcp.pop %v674
    %v699 = vmul.f32 1.0, %v698
    %v700 = vrcp.pop %v675
    %v701 = vmul.f32 1.0, %v700
    %v702 = vrcp.pop %v676
    %v703 = vmul.f32 1.0, %v702
    %v704 = vrcp.pop %v677
    %v705 = vmul.f32 1.0, %v704
    %v706 = vrcp.pop %v678
    %v707 = vmul.f32 1.0, %v706
    %v708 = vrcp.pop %v679
    %v709 = vmul.f32 1.0, %v708
    %v710 = vrcp.pop %v680
    %v711 = vmul.f32 1.0, %v710
    %v712 = vrcp.pop %v681
    %v713 = vmul.f32 1.0, %v712
    %v714 = vmul.f32 %v602, %v683
    %v715 = vmul.f32 %v603, %v685
    %v716 = vmul.f32 %v604, %v687
    %v717 = vmul.f32 %v605, %v689
    %v718 = vmul.f32 %v606, %v691
    %v719 = vmul.f32 %v607, %v693
    %v720 = vmul.f32 %v608, %v695
    %v721 = vmul.f32 %v609, %v697
    %v722 = vmul.f32 %v610, %v699
    %v723 = vmul.f32 %v611, %v701
    %v724 = vmul.f32 %v612, %v703
    %v725 = vmul.f32 %v613, %v705
    %v726 = vmul.f32 %v614, %v707
    %v727 = vmul.f32 %v615, %v709
    %v728 = vmul.f32 %v616, %v711
    %v729 = vmul.f32 %v617, %v713
    %v730 = vpack.c.bf16 %v715, %v714
    %v731 = vpack.c.bf16 %v717, %v716
    %v732 = vpack.c.bf16 %v719, %v718
    %v733 = vpack.c.bf16 %v721, %v720
    %v734 = vpack.c.bf16 %v723, %v722
    %v735 = vpack.c.bf16 %v725, %v724
    %v736 = vpack.c.bf16 %v727, %v726
    %v737 = vpack.c.bf16 %v729, %v728
    %738 = vst [vmem:[#allocation2] sm:$0xf] 0
    %739 = vst [vmem:[#allocation2 + $0x4] sm:$0x1] 0
    %740 = vst [vmem:[#allocation2 + $0x50] sm:$0xf] 0
    %741 = vst [vmem:[#allocation2 + $0x54] sm:$0x1] 0
    %s742 = scalar_lea.vmem [#allocation2], 72
    %743 = vst [vmem:[%s742] sm:$0xf] 0
    %744 = vst [vmem:[%s742 + $0x4] sm:$0x1] 0
    %745 = vst [vmem:[%s742 + $0x50] sm:$0xf] 0
    %746 = vst [vmem:[%s742 + $0x54] sm:$0x1] 0
    %vm747 = vcmask 1040384
    %vm748 = vsmask.f32 256
    %vm749 = vmand %vm747, %vm748
    %v750 = vld [vmem:[#allocation2] sm:$0x1]
    %v751 = vsel %vm749, 0, %v750
    %752 = vst [vmem:[#allocation2] sm:$0x1] %v751
    %v753 = vld [vmem:[#allocation2 + $0x8] sm:$0x1]
    %v754 = vsel %vm749, 0, %v753
    %755 = vst [vmem:[#allocation2 + $0x8] sm:$0x1] %v754
    %v756 = vld [vmem:[#allocation2 + $0x10] sm:$0x1]
    %v757 = vsel %vm749, 0, %v756
    %758 = vst [vmem:[#allocation2 + $0x10] sm:$0x1] %v757
    %v759 = vld [vmem:[#allocation2 + $0x18] sm:$0x1]
    %v760 = vsel %vm749, 0, %v759
    %761 = vst [vmem:[#allocation2 + $0x18] sm:$0x1] %v760
    %v762 = vld [vmem:[#allocation2 + $0x20] sm:$0x1]
    %v763 = vsel %vm749, 0, %v762
    %764 = vst [vmem:[#allocation2 + $0x20] sm:$0x1] %v763
    %v765 = vld [vmem:[#allocation2 + $0x28] sm:$0x1]
    %v766 = vsel %vm749, 0, %v765
    %767 = vst [vmem:[#allocation2 + $0x28] sm:$0x1] %v766
    %v768 = vld [vmem:[#allocation2 + $0x30] sm:$0x1]
    %v769 = vsel %vm749, 0, %v768
    %770 = vst [vmem:[#allocation2 + $0x30] sm:$0x1] %v769
    %v771 = vld [vmem:[#allocation2 + $0x38] sm:$0x1]
    %v772 = vsel %vm749, 0, %v771
    %773 = vst [vmem:[#allocation2 + $0x38] sm:$0x1] %v772
    %v774 = vld [vmem:[#allocation2 + $0x40] sm:$0x1]
    %v775 = vsel %vm749, 0, %v774
    %776 = vst [vmem:[#allocation2 + $0x40] sm:$0x1] %v775
    %v777 = vld [vmem:[#allocation2 + $0x48] sm:$0x1]
    %v778 = vsel %vm749, 0, %v777
    %779 = vst [vmem:[#allocation2 + $0x48] sm:$0x1] %v778
    %v780 = vld [vmem:[#allocation2 + $0x50] sm:$0x1]
    %v781 = vsel %vm749, 0, %v780
    %782 = vst [vmem:[#allocation2 + $0x50] sm:$0x1] %v781
    %v783 = vld [vmem:[#allocation2 + $0x58] sm:$0x1]
    %v784 = vsel %vm749, 0, %v783
    %785 = vst [vmem:[#allocation2 + $0x58] sm:$0x1] %v784
    %v786 = vld [vmem:[#allocation2 + $0x60] sm:$0x1]
    %v787 = vsel %vm749, 0, %v786
    %788 = vst [vmem:[#allocation2 + $0x60] sm:$0x1] %v787
    %v789 = vld [vmem:[#allocation2 + $0x68] sm:$0x1]
    %v790 = vsel %vm749, 0, %v789
    %791 = vst [vmem:[#allocation2 + $0x68] sm:$0x1] %v790
    %v792 = vld [vmem:[#allocation2 + $0x70] sm:$0x1]
    %v793 = vsel %vm749, 0, %v792
    %794 = vst [vmem:[#allocation2 + $0x70] sm:$0x1] %v793
    %v795 = vld [vmem:[#allocation2 + $0x78] sm:$0x1]
    %v796 = vsel %vm749, 0, %v795
    %797 = vst [vmem:[#allocation2 + $0x78] sm:$0x1] %v796
    %v798 = vld [vmem:[#allocation2 + $0x80] sm:$0x1]
    %v799 = vsel %vm749, 0, %v798
    %800 = vst [vmem:[#allocation2 + $0x80] sm:$0x1] %v799
    %v801 = vld [vmem:[#allocation2 + $0x88] sm:$0x1]
    %v802 = vsel %vm749, 0, %v801
    %803 = vst [vmem:[#allocation2 + $0x88] sm:$0x1] %v802
    %v804 = vld [vmem:[#allocation2 + $0x90] sm:$0x1]
    %v805 = vsel %vm749, 0, %v804
    %806 = vst [vmem:[#allocation2 + $0x90] sm:$0x1] %v805
    %v807 = vld [vmem:[#allocation2 + $0x98] sm:$0x1]
    %v808 = vsel %vm749, 0, %v807
    %809 = vst [vmem:[#allocation2 + $0x98] sm:$0x1] %v808
    %vm810 = vsmask.f32 7938
    %vm811 = vmand %vm747, %vm810
    %v812 = vld [vmem:[#allocation2 + $0x4] sm:$0x1]
    %v813 = vsel %vm811, 0, %v812
    %814 = vst [vmem:[#allocation2 + $0x4] sm:$0x1] %v813
    %v815 = vld [vmem:[#allocation2 + $0xc] sm:$0x1]
    %v816 = vsel %vm811, 0, %v815
    %817 = vst [vmem:[#allocation2 + $0xc] sm:$0x1] %v816
    %v818 = vld [vmem:[#allocation2 + $0x14] sm:$0x1]
    %v819 = vsel %vm811, 0, %v818
    %820 = vst [vmem:[#allocation2 + $0x14] sm:$0x1] %v819
    %v821 = vld [vmem:[#allocation2 + $0x1c] sm:$0x1]
    %v822 = vsel %vm811, 0, %v821
    %823 = vst [vmem:[#allocation2 + $0x1c] sm:$0x1] %v822
    %v824 = vld [vmem:[#allocation2 + $0x24] sm:$0x1]
    %v825 = vsel %vm811, 0, %v824
    %826 = vst [vmem:[#allocation2 + $0x24] sm:$0x1] %v825
    %v827 = vld [vmem:[#allocation2 + $0x2c] sm:$0x1]
    %v828 = vsel %vm811, 0, %v827
    %829 = vst [vmem:[#allocation2 + $0x2c] sm:$0x1] %v828
    %v830 = vld [vmem:[#allocation2 + $0x34] sm:$0x1]
    %v831 = vsel %vm811, 0, %v830
    %832 = vst [vmem:[#allocation2 + $0x34] sm:$0x1] %v831
    %v833 = vld [vmem:[#allocation2 + $0x3c] sm:$0x1]
    %v834 = vsel %vm811, 0, %v833
    %835 = vst [vmem:[#allocation2 + $0x3c] sm:$0x1] %v834
    %v836 = vld [vmem:[#allocation2 + $0x44] sm:$0x1]
    %v837 = vsel %vm811, 0, %v836
    %838 = vst [vmem:[#allocation2 + $0x44] sm:$0x1] %v837
    %v839 = vld [vmem:[#allocation2 + $0x4c] sm:$0x1]
    %v840 = vsel %vm811, 0, %v839
    %841 = vst [vmem:[#allocation2 + $0x4c] sm:$0x1] %v840
    %v842 = vld [vmem:[#allocation2 + $0x54] sm:$0x1]
    %v843 = vsel %vm811, 0, %v842
    %844 = vst [vmem:[#allocation2 + $0x54] sm:$0x1] %v843
    %v845 = vld [vmem:[#allocation2 + $0x5c] sm:$0x1]
    %v846 = vsel %vm811, 0, %v845
    %847 = vst [vmem:[#allocation2 + $0x5c] sm:$0x1] %v846
    %v848 = vld [vmem:[#allocation2 + $0x64] sm:$0x1]
    %v849 = vsel %vm811, 0, %v848
    %850 = vst [vmem:[#allocation2 + $0x64] sm:$0x1] %v849
    %v851 = vld [vmem:[#allocation2 + $0x6c] sm:$0x1]
    %v852 = vsel %vm811, 0, %v851
    %853 = vst [vmem:[#allocation2 + $0x6c] sm:$0x1] %v852
    %v854 = vld [vmem:[#allocation2 + $0x74] sm:$0x1]
    %v855 = vsel %vm811, 0, %v854
    %856 = vst [vmem:[#allocation2 + $0x74] sm:$0x1] %v855
    %v857 = vld [vmem:[#allocation2 + $0x7c] sm:$0x1]
    %v858 = vsel %vm811, 0, %v857
    %859 = vst [vmem:[#allocation2 + $0x7c] sm:$0x1] %v858
    %v860 = vld [vmem:[#allocation2 + $0x84] sm:$0x1]
    %v861 = vsel %vm811, 0, %v860
    %862 = vst [vmem:[#allocation2 + $0x84] sm:$0x1] %v861
    %v863 = vld [vmem:[#allocation2 + $0x8c] sm:$0x1]
    %v864 = vsel %vm811, 0, %v863
    %865 = vst [vmem:[#allocation2 + $0x8c] sm:$0x1] %v864
    %v866 = vld [vmem:[#allocation2 + $0x94] sm:$0x1]
    %v867 = vsel %vm811, 0, %v866
    %868 = vst [vmem:[#allocation2 + $0x94] sm:$0x1] %v867
    %v869 = vld [vmem:[#allocation2 + $0x9c] sm:$0x1]
    %v870 = vsel %vm811, 0, %v869
    %871 = vst [vmem:[#allocation2 + $0x9c] sm:$0x1] %v870
    %v880 = vunpack.c.l.b16 %v730
    %v881 = vunpack.c.h.b16 %v730
    %v882 = vunpack.c.l.b16 %v731
    %v883 = vunpack.c.h.b16 %v731
    %v884 = vunpack.c.l.b16 %v732
    %v885 = vunpack.c.h.b16 %v732
    %v886 = vunpack.c.l.b16 %v733
    %v887 = vunpack.c.h.b16 %v733
    %v888 = vunpack.c.l.b16 %v734
    %v889 = vunpack.c.h.b16 %v734
    %v890 = vunpack.c.l.b16 %v735
    %v891 = vunpack.c.h.b16 %v735
    %v892 = vunpack.c.l.b16 %v736
    %v893 = vunpack.c.h.b16 %v736
    %v894 = vunpack.c.l.b16 %v737
    %v895 = vunpack.c.h.b16 %v737
    %v896 = vpack.c.b16 %v880, %v880
    %v897 = vpack.c.b16 %v881, %v881
    %v898 = vpack.c.b16 %v882, %v882
    %v899 = vpack.c.b16 %v883, %v883
    %v900 = vpack.c.b16 %v884, %v884
    %v901 = vpack.c.b16 %v885, %v885
    %v902 = vpack.c.b16 %v886, %v886
    %v903 = vpack.c.b16 %v887, %v887
    %v904 = vpack.c.b16 %v888, %v888
    %v905 = vpack.c.b16 %v889, %v889
    %v906 = vpack.c.b16 %v890, %v890
    %v907 = vpack.c.b16 %v891, %v891
    %v908 = vpack.c.b16 %v892, %v892
    %v909 = vpack.c.b16 %v893, %v893
    %v910 = vpack.c.b16 %v894, %v894
    %v911 = vpack.c.b16 %v895, %v895
    %v913 = vshrl.u32 %v896, 16
    %v915 = vrot.slane %v913, 7
    %v916 = vshll.u32 %v896, 16
    %v918 = vor.u32 %v915, %v916
    %v919 = vrot.slane %v915, 4
    %v921 = vshrl.u32 %v897, 16
    %v923 = vrot.slane %v921, 7
    %v924 = vshll.u32 %v897, 16
    %v926 = vor.u32 %v923, %v924
    %v927 = vrot.slane %v923, 4
    %v929 = vshrl.u32 %v898, 16
    %v931 = vrot.slane %v929, 7
    %v932 = vshll.u32 %v898, 16
    %v934 = vor.u32 %v931, %v932
    %v935 = vrot.slane %v931, 4
    %v937 = vshrl.u32 %v899, 16
    %v939 = vrot.slane %v937, 7
    %v940 = vshll.u32 %v899, 16
    %v942 = vor.u32 %v939, %v940
    %v943 = vrot.slane %v939, 4
    %v945 = vshrl.u32 %v900, 16
    %v947 = vrot.slane %v945, 7
    %v948 = vshll.u32 %v900, 16
    %v950 = vor.u32 %v947, %v948
    %v951 = vrot.slane %v947, 4
    %v953 = vshrl.u32 %v901, 16
    %v955 = vrot.slane %v953, 7
    %v956 = vshll.u32 %v901, 16
    %v958 = vor.u32 %v955, %v956
    %v959 = vrot.slane %v955, 4
    %v961 = vshrl.u32 %v902, 16
    %v963 = vrot.slane %v961, 7
    %v964 = vshll.u32 %v902, 16
    %v966 = vor.u32 %v963, %v964
    %v967 = vrot.slane %v963, 4
    %v969 = vshrl.u32 %v903, 16
    %v971 = vrot.slane %v969, 7
    %v972 = vshll.u32 %v903, 16
    %v974 = vor.u32 %v971, %v972
    %v975 = vrot.slane %v971, 4
    %v977 = vshrl.u32 %v904, 16
    %v979 = vrot.slane %v977, 7
    %v980 = vshll.u32 %v904, 16
    %v982 = vor.u32 %v979, %v980
    %v983 = vrot.slane %v979, 4
    %v985 = vshrl.u32 %v905, 16
    %v987 = vrot.slane %v985, 7
    %v988 = vshll.u32 %v905, 16
    %v990 = vor.u32 %v987, %v988
    %v991 = vrot.slane %v987, 4
    %v993 = vshrl.u32 %v906, 16
    %v995 = vrot.slane %v993, 7
    %v996 = vshll.u32 %v906, 16
    %v998 = vor.u32 %v995, %v996
    %v999 = vrot.slane %v995, 4
    %v1001 = vshrl.u32 %v907, 16
    %v1003 = vrot.slane %v1001, 7
    %v1004 = vshll.u32 %v907, 16
    %v1006 = vor.u32 %v1003, %v1004
    %v1007 = vrot.slane %v1003, 4
    %v1009 = vshrl.u32 %v908, 16
    %v1011 = vrot.slane %v1009, 7
    %v1012 = vshll.u32 %v908, 16
    %v1014 = vor.u32 %v1011, %v1012
    %v1015 = vrot.slane %v1011, 4
    %v1017 = vshrl.u32 %v909, 16
    %v1019 = vrot.slane %v1017, 7
    %v1020 = vshll.u32 %v909, 16
    %v1022 = vor.u32 %v1019, %v1020
    %v1023 = vrot.slane %v1019, 4
    %v1025 = vshrl.u32 %v910, 16
    %v1027 = vrot.slane %v1025, 7
    %v1028 = vshll.u32 %v910, 16
    %v1030 = vor.u32 %v1027, %v1028
    %v1031 = vrot.slane %v1027, 4
    %v1033 = vshrl.u32 %v911, 16
    %v1035 = vrot.slane %v1033, 7
    %v1036 = vshll.u32 %v911, 16
    %v1038 = vor.u32 %v1035, %v1036
    %v1039 = vrot.slane %v1035, 4
    %s1072 = scalar_lea.vmem [#allocation2], 8
    %vm1073 = vcmask 1043456
    %vm1074 = vmand %vm1073, %vm810
    %v1075 = vld [vmem:[%s1072] sm:$0xf]
    %v1076 = vsel %vm1074, %v918, %v1075
    %1077 = vst [vmem:[%s1072] sm:$0xf] %v1076
    %v1078 = vld [vmem:[%s1072 + $0x4] sm:$0x1]
    %v1079 = vsel %vm749, %v919, %v1078
    %1080 = vst [vmem:[%s1072 + $0x4] sm:$0x1] %v1079
    %v1081 = vld [vmem:[%s1072 + $0x8] sm:$0xf]
    %v1082 = vsel %vm1074, %v926, %v1081
    %1083 = vst [vmem:[%s1072 + $0x8] sm:$0xf] %v1082
    %v1084 = vld [vmem:[%s1072 + $0xc] sm:$0x1]
    %v1085 = vsel %vm749, %v927, %v1084
    %1086 = vst [vmem:[%s1072 + $0xc] sm:$0x1] %v1085
    %v1087 = vld [vmem:[%s1072 + $0x10] sm:$0xf]
    %v1088 = vsel %vm1074, %v934, %v1087
    %1089 = vst [vmem:[%s1072 + $0x10] sm:$0xf] %v1088
    %v1090 = vld [vmem:[%s1072 + $0x14] sm:$0x1]
    %v1091 = vsel %vm749, %v935, %v1090
    %1092 = vst [vmem:[%s1072 + $0x14] sm:$0x1] %v1091
    %v1093 = vld [vmem:[%s1072 + $0x18] sm:$0xf]
    %v1094 = vsel %vm1074, %v942, %v1093
    %1095 = vst [vmem:[%s1072 + $0x18] sm:$0xf] %v1094
    %v1096 = vld [vmem:[%s1072 + $0x1c] sm:$0x1]
    %v1097 = vsel %vm749, %v943, %v1096
    %1098 = vst [vmem:[%s1072 + $0x1c] sm:$0x1] %v1097
    %v1099 = vld [vmem:[%s1072 + $0x20] sm:$0xf]
    %v1100 = vsel %vm1074, %v950, %v1099
    %1101 = vst [vmem:[%s1072 + $0x20] sm:$0xf] %v1100
    %v1102 = vld [vmem:[%s1072 + $0x24] sm:$0x1]
    %v1103 = vsel %vm749, %v951, %v1102
    %1104 = vst [vmem:[%s1072 + $0x24] sm:$0x1] %v1103
    %v1105 = vld [vmem:[%s1072 + $0x28] sm:$0xf]
    %v1106 = vsel %vm1074, %v958, %v1105
    %1107 = vst [vmem:[%s1072 + $0x28] sm:$0xf] %v1106
    %v1108 = vld [vmem:[%s1072 + $0x2c] sm:$0x1]
    %v1109 = vsel %vm749, %v959, %v1108
    %1110 = vst [vmem:[%s1072 + $0x2c] sm:$0x1] %v1109
    %v1111 = vld [vmem:[%s1072 + $0x30] sm:$0xf]
    %v1112 = vsel %vm1074, %v966, %v1111
    %1113 = vst [vmem:[%s1072 + $0x30] sm:$0xf] %v1112
    %v1114 = vld [vmem:[%s1072 + $0x34] sm:$0x1]
    %v1115 = vsel %vm749, %v967, %v1114
    %1116 = vst [vmem:[%s1072 + $0x34] sm:$0x1] %v1115
    %v1117 = vld [vmem:[%s1072 + $0x38] sm:$0xf]
    %v1118 = vsel %vm1074, %v974, %v1117
    %1119 = vst [vmem:[%s1072 + $0x38] sm:$0xf] %v1118
    %v1120 = vld [vmem:[%s1072 + $0x3c] sm:$0x1]
    %v1121 = vsel %vm749, %v975, %v1120
    %1122 = vst [vmem:[%s1072 + $0x3c] sm:$0x1] %v1121
    %v1123 = vld [vmem:[%s1072 + $0x50] sm:$0xf]
    %v1124 = vsel %vm1074, %v982, %v1123
    %1125 = vst [vmem:[%s1072 + $0x50] sm:$0xf] %v1124
    %v1126 = vld [vmem:[%s1072 + $0x54] sm:$0x1]
    %v1127 = vsel %vm749, %v983, %v1126
    %1128 = vst [vmem:[%s1072 + $0x54] sm:$0x1] %v1127
    %v1129 = vld [vmem:[%s1072 + $0x58] sm:$0xf]
    %v1130 = vsel %vm1074, %v990, %v1129
    %1131 = vst [vmem:[%s1072 + $0x58] sm:$0xf] %v1130
    %v1132 = vld [vmem:[%s1072 + $0x5c] sm:$0x1]
    %v1133 = vsel %vm749, %v991, %v1132
    %1134 = vst [vmem:[%s1072 + $0x5c] sm:$0x1] %v1133
    %v1135 = vld [vmem:[%s1072 + $0x60] sm:$0xf]
    %v1136 = vsel %vm1074, %v998, %v1135
    %1137 = vst [vmem:[%s1072 + $0x60] sm:$0xf] %v1136
    %v1138 = vld [vmem:[%s1072 + $0x64] sm:$0x1]
    %v1139 = vsel %vm749, %v999, %v1138
    %1140 = vst [vmem:[%s1072 + $0x64] sm:$0x1] %v1139
    %v1141 = vld [vmem:[%s1072 + $0x68] sm:$0xf]
    %v1142 = vsel %vm1074, %v1006, %v1141
    %1143 = vst [vmem:[%s1072 + $0x68] sm:$0xf] %v1142
    %v1144 = vld [vmem:[%s1072 + $0x6c] sm:$0x1]
    %v1145 = vsel %vm749, %v1007, %v1144
    %1146 = vst [vmem:[%s1072 + $0x6c] sm:$0x1] %v1145
    %v1147 = vld [vmem:[%s1072 + $0x70] sm:$0xf]
    %v1148 = vsel %vm1074, %v1014, %v1147
    %1149 = vst [vmem:[%s1072 + $0x70] sm:$0xf] %v1148
    %v1150 = vld [vmem:[%s1072 + $0x74] sm:$0x1]
    %v1151 = vsel %vm749, %v1015, %v1150
    %1152 = vst [vmem:[%s1072 + $0x74] sm:$0x1] %v1151
    %v1153 = vld [vmem:[%s1072 + $0x78] sm:$0xf]
    %v1154 = vsel %vm1074, %v1022, %v1153
    %1155 = vst [vmem:[%s1072 + $0x78] sm:$0xf] %v1154
    %v1156 = vld [vmem:[%s1072 + $0x7c] sm:$0x1]
    %v1157 = vsel %vm749, %v1023, %v1156
    %1158 = vst [vmem:[%s1072 + $0x7c] sm:$0x1] %v1157
    %v1159 = vld [vmem:[%s1072 + $0x80] sm:$0xf]
    %v1160 = vsel %vm1074, %v1030, %v1159
    %1161 = vst [vmem:[%s1072 + $0x80] sm:$0xf] %v1160
    %v1162 = vld [vmem:[%s1072 + $0x84] sm:$0x1]
    %v1163 = vsel %vm749, %v1031, %v1162
    %1164 = vst [vmem:[%s1072 + $0x84] sm:$0x1] %v1163
    %v1165 = vld [vmem:[%s1072 + $0x88] sm:$0xf]
    %v1166 = vsel %vm1074, %v1038, %v1165
    %1167 = vst [vmem:[%s1072 + $0x88] sm:$0xf] %v1166
    %v1168 = vld [vmem:[%s1072 + $0x8c] sm:$0x1]
    %v1169 = vsel %vm749, %v1039, %v1168
    %1170 = vst [vmem:[%s1072 + $0x8c] sm:$0x1] %v1169
    %v1171 = vld [vmem:[#allocation2] sm:$0xf]
    %v1172 = vld [vmem:[#allocation2 + $0x4] sm:$0x1]
    %v1173 = vld [vmem:[#allocation2 + $0x8] sm:$0xf]
    %v1174 = vld [vmem:[#allocation2 + $0xc] sm:$0x1]
    %v1175 = vld [vmem:[#allocation2 + $0x10] sm:$0xf]
    %v1176 = vld [vmem:[#allocation2 + $0x14] sm:$0x1]
    %v1177 = vld [vmem:[#allocation2 + $0x18] sm:$0xf]
    %v1178 = vld [vmem:[#allocation2 + $0x1c] sm:$0x1]
    %v1179 = vld [vmem:[#allocation2 + $0x20] sm:$0xf]
    %v1180 = vld [vmem:[#allocation2 + $0x24] sm:$0x1]
    %v1181 = vld [vmem:[#allocation2 + $0x28] sm:$0xf]
    %v1182 = vld [vmem:[#allocation2 + $0x2c] sm:$0x1]
    %v1183 = vld [vmem:[#allocation2 + $0x30] sm:$0xf]
    %v1184 = vld [vmem:[#allocation2 + $0x34] sm:$0x1]
    %v1185 = vld [vmem:[#allocation2 + $0x38] sm:$0xf]
    %v1186 = vld [vmem:[#allocation2 + $0x3c] sm:$0x1]
    %v1187 = vld [vmem:[#allocation2 + $0x40] sm:$0xf]
    %v1188 = vld [vmem:[#allocation2 + $0x44] sm:$0x1]
    %v1189 = vld [vmem:[#allocation2 + $0x48] sm:$0xf]
    %v1190 = vld [vmem:[#allocation2 + $0x4c] sm:$0x1]
    %v1191 = vld [vmem:[#allocation2 + $0x50] sm:$0xf]
    %v1192 = vld [vmem:[#allocation2 + $0x54] sm:$0x1]
    %v1193 = vld [vmem:[#allocation2 + $0x58] sm:$0xf]
    %v1194 = vld [vmem:[#allocation2 + $0x5c] sm:$0x1]
    %v1195 = vld [vmem:[#allocation2 + $0x60] sm:$0xf]
    %v1196 = vld [vmem:[#allocation2 + $0x64] sm:$0x1]
    %v1197 = vld [vmem:[#allocation2 + $0x68] sm:$0xf]
    %v1198 = vld [vmem:[#allocation2 + $0x6c] sm:$0x1]
    %v1199 = vld [vmem:[#allocation2 + $0x70] sm:$0xf]
    %v1200 = vld [vmem:[#allocation2 + $0x74] sm:$0x1]
    %v1201 = vld [vmem:[#allocation2 + $0x78] sm:$0xf]
    %v1202 = vld [vmem:[#allocation2 + $0x7c] sm:$0x1]
    %v1203 = vld [vmem:[#allocation2 + $0x80] sm:$0xf]
    %v1204 = vld [vmem:[#allocation2 + $0x84] sm:$0x1]
    %v1205 = vld [vmem:[#allocation2 + $0x88] sm:$0xf]
    %v1206 = vld [vmem:[#allocation2 + $0x8c] sm:$0x1]
    %v1207 = vld [vmem:[#allocation2 + $0x90] sm:$0xf]
    %v1208 = vld [vmem:[#allocation2 + $0x94] sm:$0x1]
    %v1209 = vld [vmem:[#allocation2 + $0x98] sm:$0xf]
    %v1210 = vld [vmem:[#allocation2 + $0x9c] sm:$0x1]
    %v1251 = vunpack.c.l.b16 %v1171
    %v1252 = vunpack.c.l.b16 %v1172
    %v1253 = vunpack.c.l.b16 %v1173
    %v1254 = vunpack.c.l.b16 %v1174
    %v1255 = vunpack.c.l.b16 %v1175
    %v1256 = vunpack.c.l.b16 %v1176
    %v1257 = vunpack.c.l.b16 %v1177
    %v1258 = vunpack.c.l.b16 %v1178
    %v1259 = vunpack.c.l.b16 %v1179
    %v1260 = vunpack.c.l.b16 %v1180
    %v1261 = vunpack.c.l.b16 %v1181
    %v1262 = vunpack.c.l.b16 %v1182
    %v1263 = vunpack.c.l.b16 %v1183
    %v1264 = vunpack.c.l.b16 %v1184
    %v1265 = vunpack.c.l.b16 %v1185
    %v1266 = vunpack.c.l.b16 %v1186
    %v1267 = vunpack.c.l.b16 %v1187
    %v1268 = vunpack.c.l.b16 %v1188
    %v1269 = vunpack.c.l.b16 %v1189
    %v1270 = vunpack.c.l.b16 %v1190
    %v1271 = vunpack.c.l.b16 %v1191
    %v1272 = vunpack.c.l.b16 %v1192
    %v1273 = vunpack.c.l.b16 %v1193
    %v1274 = vunpack.c.l.b16 %v1194
    %v1275 = vunpack.c.l.b16 %v1195
    %v1276 = vunpack.c.l.b16 %v1196
    %v1277 = vunpack.c.l.b16 %v1197
    %v1278 = vunpack.c.l.b16 %v1198
    %v1279 = vunpack.c.l.b16 %v1199
    %v1280 = vunpack.c.l.b16 %v1200
    %v1281 = vunpack.c.l.b16 %v1201
    %v1282 = vunpack.c.l.b16 %v1202
    %v1283 = vunpack.c.l.b16 %v1203
    %v1284 = vunpack.c.l.b16 %v1204
    %v1285 = vunpack.c.l.b16 %v1205
    %v1286 = vunpack.c.l.b16 %v1206
    %v1287 = vunpack.c.l.b16 %v1207
    %v1288 = vunpack.c.l.b16 %v1208
    %v1289 = vunpack.c.l.b16 %v1209
    %v1290 = vunpack.c.l.b16 %v1210
    %v1291 = vpack.c.b16 %v1252, %v1251
    %v1292 = vpack.c.b16 %v1254, %v1253
    %v1293 = vpack.c.b16 %v1256, %v1255
    %v1294 = vpack.c.b16 %v1258, %v1257
    %v1295 = vpack.c.b16 %v1260, %v1259
    %v1296 = vpack.c.b16 %v1262, %v1261
    %v1297 = vpack.c.b16 %v1264, %v1263
    %v1298 = vpack.c.b16 %v1266, %v1265
    %v1299 = vpack.c.b16 %v1268, %v1267
    %v1300 = vpack.c.b16 %v1270, %v1269
    %v1301 = vpack.c.b16 %v1272, %v1271
    %v1302 = vpack.c.b16 %v1274, %v1273
    %v1303 = vpack.c.b16 %v1276, %v1275
    %v1304 = vpack.c.b16 %v1278, %v1277
    %v1305 = vpack.c.b16 %v1280, %v1279
    %v1306 = vpack.c.b16 %v1282, %v1281
    %v1307 = vpack.c.b16 %v1284, %v1283
    %v1308 = vpack.c.b16 %v1286, %v1285
    %v1309 = vpack.c.b16 %v1288, %v1287
    %v1310 = vpack.c.b16 %v1290, %v1289
    %v1312 = vshrl.u32 %v1291, 16
    %v1314 = vshll.u32 %v1291, 16
    %v1316 = vrot.slane %v1314, 1
    %v1317 = vor.u32 %v1312, %v1316
    %v1319 = vshrl.u32 %v1292, 16
    %v1321 = vshll.u32 %v1292, 16
    %v1323 = vrot.slane %v1321, 1
    %v1324 = vor.u32 %v1319, %v1323
    %v1326 = vshrl.u32 %v1293, 16
    %v1328 = vshll.u32 %v1293, 16
    %v1330 = vrot.slane %v1328, 1
    %v1331 = vor.u32 %v1326, %v1330
    %v1333 = vshrl.u32 %v1294, 16
    %v1335 = vshll.u32 %v1294, 16
    %v1337 = vrot.slane %v1335, 1
    %v1338 = vor.u32 %v1333, %v1337
    %v1340 = vshrl.u32 %v1295, 16
    %v1342 = vshll.u32 %v1295, 16
    %v1344 = vrot.slane %v1342, 1
    %v1345 = vor.u32 %v1340, %v1344
    %v1347 = vshrl.u32 %v1296, 16
    %v1349 = vshll.u32 %v1296, 16
    %v1351 = vrot.slane %v1349, 1
    %v1352 = vor.u32 %v1347, %v1351
    %v1354 = vshrl.u32 %v1297, 16
    %v1356 = vshll.u32 %v1297, 16
    %v1358 = vrot.slane %v1356, 1
    %v1359 = vor.u32 %v1354, %v1358
    %v1361 = vshrl.u32 %v1298, 16
    %v1363 = vshll.u32 %v1298, 16
    %v1365 = vrot.slane %v1363, 1
    %v1366 = vor.u32 %v1361, %v1365
    %v1368 = vshrl.u32 %v1299, 16
    %v1370 = vshll.u32 %v1299, 16
    %v1372 = vrot.slane %v1370, 1
    %v1373 = vor.u32 %v1368, %v1372
    %v1375 = vshrl.u32 %v1300, 16
    %v1377 = vshll.u32 %v1300, 16
    %v1379 = vrot.slane %v1377, 1
    %v1380 = vor.u32 %v1375, %v1379
    %v1382 = vshrl.u32 %v1301, 16
    %v1384 = vshll.u32 %v1301, 16
    %v1386 = vrot.slane %v1384, 1
    %v1387 = vor.u32 %v1382, %v1386
    %v1389 = vshrl.u32 %v1302, 16
    %v1391 = vshll.u32 %v1302, 16
    %v1393 = vrot.slane %v1391, 1
    %v1394 = vor.u32 %v1389, %v1393
    %v1396 = vshrl.u32 %v1303, 16
    %v1398 = vshll.u32 %v1303, 16
    %v1400 = vrot.slane %v1398, 1
    %v1401 = vor.u32 %v1396, %v1400
    %v1403 = vshrl.u32 %v1304, 16
    %v1405 = vshll.u32 %v1304, 16
    %v1407 = vrot.slane %v1405, 1
    %v1408 = vor.u32 %v1403, %v1407
    %v1410 = vshrl.u32 %v1305, 16
    %v1412 = vshll.u32 %v1305, 16
    %v1414 = vrot.slane %v1412, 1
    %v1415 = vor.u32 %v1410, %v1414
    %v1417 = vshrl.u32 %v1306, 16
    %v1419 = vshll.u32 %v1306, 16
    %v1421 = vrot.slane %v1419, 1
    %v1422 = vor.u32 %v1417, %v1421
    %v1424 = vshrl.u32 %v1307, 16
    %v1426 = vshll.u32 %v1307, 16
    %v1428 = vrot.slane %v1426, 1
    %v1429 = vor.u32 %v1424, %v1428
    %v1431 = vshrl.u32 %v1308, 16
    %v1433 = vshll.u32 %v1308, 16
    %v1435 = vrot.slane %v1433, 1
    %v1436 = vor.u32 %v1431, %v1435
    %v1438 = vshrl.u32 %v1309, 16
    %v1440 = vshll.u32 %v1309, 16
    %v1442 = vrot.slane %v1440, 1
    %v1443 = vor.u32 %v1438, %v1442
    %v1445 = vshrl.u32 %v1310, 16
    %v1447 = vshll.u32 %v1310, 16
    %v1449 = vrot.slane %v1447, 1
    %v1450 = vor.u32 %v1445, %v1449
    %v1451 = vrot.slane %v1291, 1
    %v1452 = vrot.slane %v1292, 1
    %v1453 = vrot.slane %v1293, 1
    %v1454 = vrot.slane %v1294, 1
    %v1455 = vrot.slane %v1295, 1
    %v1456 = vrot.slane %v1296, 1
    %v1457 = vrot.slane %v1297, 1
    %v1458 = vrot.slane %v1298, 1
    %v1459 = vrot.slane %v1299, 1
    %v1460 = vrot.slane %v1300, 1
    %v1461 = vrot.slane %v1301, 1
    %v1462 = vrot.slane %v1302, 1
    %v1463 = vrot.slane %v1303, 1
    %v1464 = vrot.slane %v1304, 1
    %v1465 = vrot.slane %v1305, 1
    %v1466 = vrot.slane %v1306, 1
    %v1467 = vrot.slane %v1307, 1
    %v1468 = vrot.slane %v1308, 1
    %v1469 = vrot.slane %v1309, 1
    %v1470 = vrot.slane %v1310, 1
    %v1471 = vunpack.c.l.b16 %v1317
    %v1472 = vunpack.c.l.b16 %v1451
    %v1473 = vunpack.c.l.b16 %v1324
    %v1474 = vunpack.c.l.b16 %v1452
    %v1475 = vunpack.c.l.b16 %v1331
    %v1476 = vunpack.c.l.b16 %v1453
    %v1477 = vunpack.c.l.b16 %v1338
    %v1478 = vunpack.c.l.b16 %v1454
    %v1479 = vunpack.c.l.b16 %v1345
    %v1480 = vunpack.c.l.b16 %v1455
    %v1481 = vunpack.c.l.b16 %v1352
    %v1482 = vunpack.c.l.b16 %v1456
    %v1483 = vunpack.c.l.b16 %v1359
    %v1484 = vunpack.c.l.b16 %v1457
    %v1485 = vunpack.c.l.b16 %v1366
    %v1486 = vunpack.c.l.b16 %v1458
    %v1487 = vunpack.c.l.b16 %v1373
    %v1488 = vunpack.c.l.b16 %v1459
    %v1489 = vunpack.c.l.b16 %v1380
    %v1490 = vunpack.c.l.b16 %v1460
    %v1491 = vunpack.c.l.b16 %v1387
    %v1492 = vunpack.c.l.b16 %v1461
    %v1493 = vunpack.c.l.b16 %v1394
    %v1494 = vunpack.c.l.b16 %v1462
    %v1495 = vunpack.c.l.b16 %v1401
    %v1496 = vunpack.c.l.b16 %v1463
    %v1497 = vunpack.c.l.b16 %v1408
    %v1498 = vunpack.c.l.b16 %v1464
    %v1499 = vunpack.c.l.b16 %v1415
    %v1500 = vunpack.c.l.b16 %v1465
    %v1501 = vunpack.c.l.b16 %v1422
    %v1502 = vunpack.c.l.b16 %v1466
    %v1503 = vunpack.c.l.b16 %v1429
    %v1504 = vunpack.c.l.b16 %v1467
    %v1505 = vunpack.c.l.b16 %v1436
    %v1506 = vunpack.c.l.b16 %v1468
    %v1507 = vunpack.c.l.b16 %v1443
    %v1508 = vunpack.c.l.b16 %v1469
    %v1509 = vunpack.c.l.b16 %v1450
    %v1510 = vunpack.c.l.b16 %v1470
    %v1511 = vld [vmem:[#allocation4] sm:$0xf]
    %v1512 = vld [vmem:[#allocation4 + $0x4] sm:$0xf]
    %v1513 = vld [vmem:[#allocation4 + $0x8] sm:$0xf]
    %v1514 = vld [vmem:[#allocation4 + $0xc] sm:$0xf]
    %v1515 = vld [vmem:[#allocation4 + $0x10] sm:$0xf]
    %v1516 = vld [vmem:[#allocation4 + $0x14] sm:$0xf]
    %v1517 = vld [vmem:[#allocation4 + $0x18] sm:$0xf]
    %v1518 = vld [vmem:[#allocation4 + $0x1c] sm:$0xf]
    %v1519 = vld [vmem:[#allocation4 + $0x20] sm:$0xf]
    %v1520 = vld [vmem:[#allocation4 + $0x24] sm:$0xf]
    %v1521 = vld [vmem:[#allocation4 + $0x28] sm:$0xf]
    %v1522 = vld [vmem:[#allocation4 + $0x2c] sm:$0xf]
    %v1523 = vld [vmem:[#allocation4 + $0x30] sm:$0xf]
    %v1524 = vld [vmem:[#allocation4 + $0x34] sm:$0xf]
    %v1525 = vld [vmem:[#allocation4 + $0x38] sm:$0xf]
    %v1526 = vld [vmem:[#allocation4 + $0x3c] sm:$0xf]
    %v1527 = vld [vmem:[#allocation4 + $0x40] sm:$0xf]
    %v1528 = vld [vmem:[#allocation4 + $0x44] sm:$0xf]
    %v1529 = vld [vmem:[#allocation4 + $0x48] sm:$0xf]
    %v1530 = vld [vmem:[#allocation4 + $0x4c] sm:$0xf]
    %v1531 = vld [vmem:[#allocation4 + $0x50] sm:$0xf]
    %v1532 = vld [vmem:[#allocation4 + $0x54] sm:$0xf]
    %v1533 = vld [vmem:[#allocation4 + $0x58] sm:$0xf]
    %v1534 = vld [vmem:[#allocation4 + $0x5c] sm:$0xf]
    %v1535 = vld [vmem:[#allocation4 + $0x60] sm:$0xf]
    %v1536 = vld [vmem:[#allocation4 + $0x64] sm:$0xf]
    %v1537 = vld [vmem:[#allocation4 + $0x68] sm:$0xf]
    %v1538 = vld [vmem:[#allocation4 + $0x6c] sm:$0xf]
    %v1539 = vld [vmem:[#allocation4 + $0x70] sm:$0xf]
    %v1540 = vld [vmem:[#allocation4 + $0x74] sm:$0xf]
    %v1541 = vld [vmem:[#allocation4 + $0x78] sm:$0xf]
    %v1542 = vld [vmem:[#allocation4 + $0x7c] sm:$0xf]
    %v1543 = vld [vmem:[#allocation4 + $0x80] sm:$0xf]
    %v1544 = vld [vmem:[#allocation4 + $0x84] sm:$0xf]
    %v1545 = vld [vmem:[#allocation4 + $0x88] sm:$0xf]
    %v1546 = vld [vmem:[#allocation4 + $0x8c] sm:$0xf]
    %v1547 = vld [vmem:[#allocation4 + $0x90] sm:$0xf]
    %v1548 = vld [vmem:[#allocation4 + $0x94] sm:$0xf]
    %v1549 = vld [vmem:[#allocation4 + $0x98] sm:$0xf]
    %v1550 = vld [vmem:[#allocation4 + $0x9c] sm:$0xf]
    %v1551 = vld [vmem:[#allocation4 + $0xa0] sm:$0xf]
    %v1552 = vld [vmem:[#allocation4 + $0xa4] sm:$0xf]
    %v1553 = vld [vmem:[#allocation4 + $0xa8] sm:$0xf]
    %v1554 = vld [vmem:[#allocation4 + $0xac] sm:$0xf]
    %v1555 = vld [vmem:[#allocation4 + $0xb0] sm:$0xf]
    %v1556 = vld [vmem:[#allocation4 + $0xb4] sm:$0xf]
    %v1557 = vld [vmem:[#allocation4 + $0xb8] sm:$0xf]
    %v1558 = vld [vmem:[#allocation4 + $0xbc] sm:$0xf]
    %v1559 = vld [vmem:[#allocation4 + $0xc0] sm:$0xf]
    %v1560 = vld [vmem:[#allocation4 + $0xc4] sm:$0xf]
    %v1561 = vld [vmem:[#allocation4 + $0xc8] sm:$0xf]
    %v1562 = vld [vmem:[#allocation4 + $0xcc] sm:$0xf]
    %v1563 = vld [vmem:[#allocation4 + $0xd0] sm:$0xf]
    %v1564 = vld [vmem:[#allocation4 + $0xd4] sm:$0xf]
    %v1565 = vld [vmem:[#allocation4 + $0xd8] sm:$0xf]
    %v1566 = vld [vmem:[#allocation4 + $0xdc] sm:$0xf]
    %v1567 = vld [vmem:[#allocation4 + $0xe0] sm:$0xf]
    %v1568 = vld [vmem:[#allocation4 + $0xe4] sm:$0xf]
    %v1569 = vld [vmem:[#allocation4 + $0xe8] sm:$0xf]
    %v1570 = vld [vmem:[#allocation4 + $0xec] sm:$0xf]
    %v1571 = vld [vmem:[#allocation4 + $0xf0] sm:$0xf]
    %v1572 = vld [vmem:[#allocation4 + $0xf4] sm:$0xf]
    %v1573 = vld [vmem:[#allocation4 + $0xf8] sm:$0xf]
    %v1574 = vld [vmem:[#allocation4 + $0xfc] sm:$0xf]
    %v1575 = vld [vmem:[#allocation4 + $0x100] sm:$0xf]
    %v1576 = vld [vmem:[#allocation4 + $0x104] sm:$0xf]
    %v1577 = vld [vmem:[#allocation4 + $0x108] sm:$0xf]
    %v1578 = vld [vmem:[#allocation4 + $0x10c] sm:$0xf]
    %v1579 = vld [vmem:[#allocation4 + $0x110] sm:$0xf]
    %v1580 = vld [vmem:[#allocation4 + $0x114] sm:$0xf]
    %v1581 = vld [vmem:[#allocation4 + $0x118] sm:$0xf]
    %v1582 = vld [vmem:[#allocation4 + $0x11c] sm:$0xf]
    %v1583 = vld [vmem:[#allocation4 + $0x120] sm:$0xf]
    %v1584 = vld [vmem:[#allocation4 + $0x124] sm:$0xf]
    %v1585 = vld [vmem:[#allocation4 + $0x128] sm:$0xf]
    %v1586 = vld [vmem:[#allocation4 + $0x12c] sm:$0xf]
    %v1587 = vld [vmem:[#allocation4 + $0x130] sm:$0xf]
    %v1588 = vld [vmem:[#allocation4 + $0x134] sm:$0xf]
    %v1589 = vld [vmem:[#allocation4 + $0x138] sm:$0xf]
    %v1590 = vld [vmem:[#allocation4 + $0x13c] sm:$0xf]
    %v1591 = vld [vmem:[#allocation4 + $0x140] sm:$0xf]
    %v1592 = vld [vmem:[#allocation4 + $0x144] sm:$0xf]
    %v1593 = vld [vmem:[#allocation4 + $0x148] sm:$0xf]
    %v1594 = vld [vmem:[#allocation4 + $0x14c] sm:$0xf]
    %v1595 = vld [vmem:[#allocation4 + $0x150] sm:$0xf]
    %v1596 = vld [vmem:[#allocation4 + $0x154] sm:$0xf]
    %v1597 = vld [vmem:[#allocation4 + $0x158] sm:$0xf]
    %v1598 = vld [vmem:[#allocation4 + $0x15c] sm:$0xf]
    %v1599 = vld [vmem:[#allocation4 + $0x160] sm:$0xf]
    %v1600 = vld [vmem:[#allocation4 + $0x164] sm:$0xf]
    %v1601 = vld [vmem:[#allocation4 + $0x168] sm:$0xf]
    %v1602 = vld [vmem:[#allocation4 + $0x16c] sm:$0xf]
    %v1603 = vld [vmem:[#allocation4 + $0x170] sm:$0xf]
    %v1604 = vld [vmem:[#allocation4 + $0x174] sm:$0xf]
    %v1605 = vld [vmem:[#allocation4 + $0x178] sm:$0xf]
    %v1606 = vld [vmem:[#allocation4 + $0x17c] sm:$0xf]
    %v1607 = vld [vmem:[#allocation4 + $0x180] sm:$0xf]
    %v1608 = vld [vmem:[#allocation4 + $0x184] sm:$0xf]
    %v1609 = vld [vmem:[#allocation4 + $0x188] sm:$0xf]
    %v1610 = vld [vmem:[#allocation4 + $0x18c] sm:$0xf]
    %v1611 = vld [vmem:[#allocation4 + $0x190] sm:$0xf]
    %v1612 = vld [vmem:[#allocation4 + $0x194] sm:$0xf]
    %v1613 = vld [vmem:[#allocation4 + $0x198] sm:$0xf]
    %v1614 = vld [vmem:[#allocation4 + $0x19c] sm:$0xf]
    %v1615 = vld [vmem:[#allocation4 + $0x1a0] sm:$0xf]
    %v1616 = vld [vmem:[#allocation4 + $0x1a4] sm:$0xf]
    %v1617 = vld [vmem:[#allocation4 + $0x1a8] sm:$0xf]
    %v1618 = vld [vmem:[#allocation4 + $0x1ac] sm:$0xf]
    %v1619 = vld [vmem:[#allocation4 + $0x1b0] sm:$0xf]
    %v1620 = vld [vmem:[#allocation4 + $0x1b4] sm:$0xf]
    %v1621 = vld [vmem:[#allocation4 + $0x1b8] sm:$0xf]
    %v1622 = vld [vmem:[#allocation4 + $0x1bc] sm:$0xf]
    %v1623 = vld [vmem:[#allocation4 + $0x1c0] sm:$0xf]
    %v1624 = vld [vmem:[#allocation4 + $0x1c4] sm:$0xf]
    %v1625 = vld [vmem:[#allocation4 + $0x1c8] sm:$0xf]
    %v1626 = vld [vmem:[#allocation4 + $0x1cc] sm:$0xf]
    %v1627 = vld [vmem:[#allocation4 + $0x1d0] sm:$0xf]
    %v1628 = vld [vmem:[#allocation4 + $0x1d4] sm:$0xf]
    %v1629 = vld [vmem:[#allocation4 + $0x1d8] sm:$0xf]
    %v1630 = vld [vmem:[#allocation4 + $0x1dc] sm:$0xf]
    %v1631 = vld [vmem:[#allocation4 + $0x1e0] sm:$0xf]
    %v1632 = vld [vmem:[#allocation4 + $0x1e4] sm:$0xf]
    %v1633 = vld [vmem:[#allocation4 + $0x1e8] sm:$0xf]
    %v1634 = vld [vmem:[#allocation4 + $0x1ec] sm:$0xf]
    %v1635 = vld [vmem:[#allocation4 + $0x1f0] sm:$0xf]
    %v1636 = vld [vmem:[#allocation4 + $0x1f4] sm:$0xf]
    %v1637 = vld [vmem:[#allocation4 + $0x1f8] sm:$0xf]
    %v1638 = vld [vmem:[#allocation4 + $0x1fc] sm:$0xf]
    %v1639 = vld [vmem:[#allocation4 + $0x200] sm:$0xf]
    %v1640 = vld [vmem:[#allocation4 + $0x204] sm:$0xf]
    %v1641 = vld [vmem:[#allocation4 + $0x208] sm:$0xf]
    %v1642 = vld [vmem:[#allocation4 + $0x20c] sm:$0xf]
    %v1643 = vld [vmem:[#allocation4 + $0x210] sm:$0xf]
    %v1644 = vld [vmem:[#allocation4 + $0x214] sm:$0xf]
    %v1645 = vld [vmem:[#allocation4 + $0x218] sm:$0xf]
    %v1646 = vld [vmem:[#allocation4 + $0x21c] sm:$0xf]
    %v1647 = vld [vmem:[#allocation4 + $0x220] sm:$0xf]
    %v1648 = vld [vmem:[#allocation4 + $0x224] sm:$0xf]
    %v1649 = vld [vmem:[#allocation4 + $0x228] sm:$0xf]
    %v1650 = vld [vmem:[#allocation4 + $0x22c] sm:$0xf]
    %v1651 = vld [vmem:[#allocation4 + $0x230] sm:$0xf]
    %v1652 = vld [vmem:[#allocation4 + $0x234] sm:$0xf]
    %v1653 = vld [vmem:[#allocation4 + $0x238] sm:$0xf]
    %v1654 = vld [vmem:[#allocation4 + $0x23c] sm:$0xf]
    %v1655 = vld [vmem:[%s5] sm:$0x1]
    %v1657 = vlaneseq
    %v1658 = vshrl.u32 %v1657, 7
    %v1659 = vsub.s32 0, %v1658
    %v1660 = vrot.slane %v1655, %v1659
    %v1662 = vpack.c.b16 %v1253, %v1251
    %v1663 = vpack.c.b16 %v1473, %v1471
    %v1664 = vpack.c.b16 %v1474, %v1472
    %v1665 = vpack.c.b16 %v1255, %v1253
    %v1666 = vpack.c.b16 %v1475, %v1473
    %v1667 = vpack.c.b16 %v1476, %v1474
    %v1668 = vpack.c.b16 %v1257, %v1255
    %v1669 = vpack.c.b16 %v1477, %v1475
    %v1670 = vpack.c.b16 %v1478, %v1476
    %v1671 = vpack.c.b16 %v1259, %v1257
    %v1672 = vpack.c.b16 %v1479, %v1477
    %v1673 = vpack.c.b16 %v1480, %v1478
    %v1674 = vpack.c.b16 %v1261, %v1259
    %v1675 = vpack.c.b16 %v1481, %v1479
    %v1676 = vpack.c.b16 %v1482, %v1480
    %v1677 = vpack.c.b16 %v1263, %v1261
    %v1678 = vpack.c.b16 %v1483, %v1481
    %v1679 = vpack.c.b16 %v1484, %v1482
    %v1680 = vpack.c.b16 %v1265, %v1263
    %v1681 = vpack.c.b16 %v1485, %v1483
    %v1682 = vpack.c.b16 %v1486, %v1484
    %v1683 = vpack.c.b16 %v1267, %v1265
    %v1684 = vpack.c.b16 %v1487, %v1485
    %v1685 = vpack.c.b16 %v1488, %v1486
    %v1686 = vpack.c.b16 %v1269, %v1267
    %v1687 = vpack.c.b16 %v1489, %v1487
    %v1688 = vpack.c.b16 %v1490, %v1488
    %v1689 = vpack.c.b16 %v1273, %v1271
    %v1690 = vpack.c.b16 %v1493, %v1491
    %v1691 = vpack.c.b16 %v1494, %v1492
    %v1692 = vpack.c.b16 %v1275, %v1273
    %v1693 = vpack.c.b16 %v1495, %v1493
    %v1694 = vpack.c.b16 %v1496, %v1494
    %v1695 = vpack.c.b16 %v1277, %v1275
    %v1696 = vpack.c.b16 %v1497, %v1495
    %v1697 = vpack.c.b16 %v1498, %v1496
    %v1698 = vpack.c.b16 %v1279, %v1277
    %v1699 = vpack.c.b16 %v1499, %v1497
    %v1700 = vpack.c.b16 %v1500, %v1498
    %v1701 = vpack.c.b16 %v1281, %v1279
    %v1702 = vpack.c.b16 %v1501, %v1499
    %v1703 = vpack.c.b16 %v1502, %v1500
    %v1704 = vpack.c.b16 %v1283, %v1281
    %v1705 = vpack.c.b16 %v1503, %v1501
    %v1706 = vpack.c.b16 %v1504, %v1502
    %v1707 = vpack.c.b16 %v1285, %v1283
    %v1708 = vpack.c.b16 %v1505, %v1503
    %v1709 = vpack.c.b16 %v1506, %v1504
    %v1710 = vpack.c.b16 %v1287, %v1285
    %v1711 = vpack.c.b16 %v1507, %v1505
    %v1712 = vpack.c.b16 %v1508, %v1506
    %v1713 = vpack.c.b16 %v1289, %v1287
    %v1714 = vpack.c.b16 %v1509, %v1507
    %v1715 = vpack.c.b16 %v1510, %v1508
    %v1914 = vunpack.c.l.b16 %v1511
    %v1915 = vunpack.c.l.b16 %v1512
    %v1916 = vunpack.c.l.b16 %v1513
    %v1917 = vunpack.c.l.b16 %v1514
    %v1918 = vunpack.c.l.b16 %v1515
    %v1919 = vunpack.c.l.b16 %v1516
    %v1920 = vunpack.c.l.b16 %v1517
    %v1921 = vunpack.c.l.b16 %v1518
    %v1922 = vunpack.c.l.b16 %v1519
    %v1923 = vunpack.c.l.b16 %v1520
    %v1924 = vunpack.c.l.b16 %v1521
    %v1925 = vunpack.c.l.b16 %v1522
    %v1926 = vunpack.c.l.b16 %v1523
    %v1927 = vunpack.c.l.b16 %v1524
    %v1928 = vunpack.c.l.b16 %v1525
    %v1929 = vunpack.c.l.b16 %v1526
    %v1930 = vunpack.c.l.b16 %v1527
    %v1931 = vunpack.c.l.b16 %v1528
    %v1932 = vunpack.c.l.b16 %v1529
    %v1933 = vunpack.c.l.b16 %v1530
    %v1934 = vunpack.c.l.b16 %v1531
    %v1935 = vunpack.c.l.b16 %v1532
    %v1936 = vunpack.c.l.b16 %v1533
    %v1937 = vunpack.c.l.b16 %v1534
    %v1938 = vunpack.c.l.b16 %v1535
    %v1939 = vunpack.c.l.b16 %v1536
    %v1940 = vunpack.c.l.b16 %v1537
    %v1941 = vunpack.c.l.b16 %v1538
    %v1942 = vunpack.c.l.b16 %v1539
    %v1943 = vunpack.c.l.b16 %v1540
    %v1944 = vunpack.c.l.b16 %v1541
    %v1945 = vunpack.c.l.b16 %v1542
    %v1946 = vunpack.c.l.b16 %v1543
    %v1947 = vunpack.c.l.b16 %v1544
    %v1948 = vunpack.c.l.b16 %v1545
    %v1949 = vunpack.c.l.b16 %v1546
    %v1950 = vunpack.c.l.b16 %v1547
    %v1951 = vunpack.c.l.b16 %v1548
    %v1952 = vunpack.c.l.b16 %v1549
    %v1953 = vunpack.c.l.b16 %v1550
    %v1954 = vunpack.c.l.b16 %v1551
    %v1955 = vunpack.c.l.b16 %v1552
    %v1956 = vunpack.c.l.b16 %v1553
    %v1957 = vunpack.c.l.b16 %v1554
    %v1958 = vunpack.c.l.b16 %v1555
    %v1959 = vunpack.c.l.b16 %v1556
    %v1960 = vunpack.c.l.b16 %v1557
    %v1961 = vunpack.c.l.b16 %v1558
    %v1962 = vunpack.c.l.b16 %v1559
    %v1963 = vunpack.c.l.b16 %v1560
    %v1964 = vunpack.c.l.b16 %v1561
    %v1965 = vunpack.c.l.b16 %v1562
    %v1966 = vunpack.c.l.b16 %v1563
    %v1967 = vunpack.c.l.b16 %v1564
    %v1968 = vunpack.c.l.b16 %v1565
    %v1969 = vunpack.c.l.b16 %v1566
    %v1970 = vunpack.c.l.b16 %v1567
    %v1971 = vunpack.c.l.b16 %v1568
    %v1972 = vunpack.c.l.b16 %v1569
    %v1973 = vunpack.c.l.b16 %v1570
    %v1974 = vunpack.c.l.b16 %v1571
    %v1975 = vunpack.c.l.b16 %v1572
    %v1976 = vunpack.c.l.b16 %v1573
    %v1977 = vunpack.c.l.b16 %v1574
    %v1978 = vunpack.c.l.b16 %v1575
    %v1979 = vunpack.c.l.b16 %v1576
    %v1980 = vunpack.c.l.b16 %v1577
    %v1981 = vunpack.c.l.b16 %v1578
    %v1982 = vunpack.c.l.b16 %v1579
    %v1983 = vunpack.c.l.b16 %v1580
    %v1984 = vunpack.c.l.b16 %v1581
    %v1985 = vunpack.c.l.b16 %v1582
    %v1986 = vunpack.c.l.b16 %v1583
    %v1987 = vunpack.c.l.b16 %v1584
    %v1988 = vunpack.c.l.b16 %v1585
    %v1989 = vunpack.c.l.b16 %v1586
    %v1990 = vunpack.c.l.b16 %v1587
    %v1991 = vunpack.c.l.b16 %v1588
    %v1992 = vunpack.c.l.b16 %v1589
    %v1993 = vunpack.c.l.b16 %v1590
    %v1994 = vunpack.c.l.b16 %v1591
    %v1995 = vunpack.c.l.b16 %v1592
    %v1996 = vunpack.c.l.b16 %v1593
    %v1997 = vunpack.c.l.b16 %v1594
    %v1998 = vunpack.c.l.b16 %v1595
    %v1999 = vunpack.c.l.b16 %v1596
    %v2000 = vunpack.c.l.b16 %v1597
    %v2001 = vunpack.c.l.b16 %v1598
    %v2002 = vunpack.c.l.b16 %v1599
    %v2003 = vunpack.c.l.b16 %v1600
    %v2004 = vunpack.c.l.b16 %v1601
    %v2005 = vunpack.c.l.b16 %v1602
    %v2006 = vunpack.c.l.b16 %v1603
    %v2007 = vunpack.c.l.b16 %v1604
    %v2008 = vunpack.c.l.b16 %v1605
    %v2009 = vunpack.c.l.b16 %v1606
    %v2010 = vunpack.c.l.b16 %v1607
    %v2011 = vunpack.c.l.b16 %v1608
    %v2012 = vunpack.c.l.b16 %v1609
    %v2013 = vunpack.c.l.b16 %v1610
    %v2014 = vunpack.c.l.b16 %v1611
    %v2015 = vunpack.c.l.b16 %v1612
    %v2016 = vunpack.c.l.b16 %v1613
    %v2017 = vunpack.c.l.b16 %v1614
    %v2018 = vunpack.c.l.b16 %v1615
    %v2019 = vunpack.c.l.b16 %v1616
    %v2020 = vunpack.c.l.b16 %v1617
    %v2021 = vunpack.c.l.b16 %v1618
    %v2022 = vunpack.c.l.b16 %v1619
    %v2023 = vunpack.c.l.b16 %v1620
    %v2024 = vunpack.c.l.b16 %v1621
    %v2025 = vunpack.c.l.b16 %v1622
    %v2026 = vunpack.c.l.b16 %v1623
    %v2027 = vunpack.c.l.b16 %v1624
    %v2028 = vunpack.c.l.b16 %v1625
    %v2029 = vunpack.c.l.b16 %v1626
    %v2030 = vunpack.c.l.b16 %v1627
    %v2031 = vunpack.c.l.b16 %v1628
    %v2032 = vunpack.c.l.b16 %v1629
    %v2033 = vunpack.c.l.b16 %v1630
    %v2034 = vunpack.c.l.b16 %v1631
    %v2035 = vunpack.c.l.b16 %v1632
    %v2036 = vunpack.c.l.b16 %v1633
    %v2037 = vunpack.c.l.b16 %v1634
    %v2038 = vunpack.c.l.b16 %v1635
    %v2039 = vunpack.c.l.b16 %v1636
    %v2040 = vunpack.c.l.b16 %v1637
    %v2041 = vunpack.c.l.b16 %v1638
    %v2042 = vunpack.c.l.b16 %v1639
    %v2043 = vunpack.c.l.b16 %v1640
    %v2044 = vunpack.c.l.b16 %v1641
    %v2045 = vunpack.c.l.b16 %v1642
    %v2046 = vunpack.c.l.b16 %v1643
    %v2047 = vunpack.c.l.b16 %v1644
    %v2048 = vunpack.c.l.b16 %v1645
    %v2049 = vunpack.c.l.b16 %v1646
    %v2050 = vunpack.c.l.b16 %v1647
    %v2051 = vunpack.c.l.b16 %v1648
    %v2052 = vunpack.c.l.b16 %v1649
    %v2053 = vunpack.c.l.b16 %v1650
    %v2054 = vunpack.c.l.b16 %v1651
    %v2055 = vunpack.c.l.b16 %v1652
    %v2056 = vunpack.c.l.b16 %v1653
    %v2057 = vunpack.c.l.b16 %v1654
    %v2058 = vpack.c.b16 %v1915, %v1914
    %v2059 = vpack.c.b16 %v1917, %v1916
    %v2060 = vpack.c.b16 %v1919, %v1918
    %v2061 = vpack.c.b16 %v1921, %v1920
    %v2062 = vpack.c.b16 %v1923, %v1922
    %v2063 = vpack.c.b16 %v1925, %v1924
    %v2064 = vpack.c.b16 %v1927, %v1926
    %v2065 = vpack.c.b16 %v1929, %v1928
    %v2066 = vpack.c.b16 %v1931, %v1930
    %v2067 = vpack.c.b16 %v1933, %v1932
    %v2068 = vpack.c.b16 %v1935, %v1934
    %v2069 = vpack.c.b16 %v1937, %v1936
    %v2070 = vpack.c.b16 %v1939, %v1938
    %v2071 = vpack.c.b16 %v1941, %v1940
    %v2072 = vpack.c.b16 %v1943, %v1942
    %v2073 = vpack.c.b16 %v1945, %v1944
    %v2074 = vpack.c.b16 %v1947, %v1946
    %v2075 = vpack.c.b16 %v1949, %v1948
    %v2076 = vpack.c.b16 %v1951, %v1950
    %v2077 = vpack.c.b16 %v1953, %v1952
    %v2078 = vpack.c.b16 %v1955, %v1954
    %v2079 = vpack.c.b16 %v1957, %v1956
    %v2080 = vpack.c.b16 %v1959, %v1958
    %v2081 = vpack.c.b16 %v1961, %v1960
    %v2082 = vpack.c.b16 %v1963, %v1962
    %v2083 = vpack.c.b16 %v1965, %v1964
    %v2084 = vpack.c.b16 %v1967, %v1966
    %v2085 = vpack.c.b16 %v1969, %v1968
    %v2086 = vpack.c.b16 %v1971, %v1970
    %v2087 = vpack.c.b16 %v1973, %v1972
    %v2088 = vpack.c.b16 %v1975, %v1974
    %v2089 = vpack.c.b16 %v1977, %v1976
    %v2090 = vpack.c.b16 %v1979, %v1978
    %v2091 = vpack.c.b16 %v1981, %v1980
    %v2092 = vpack.c.b16 %v1983, %v1982
    %v2093 = vpack.c.b16 %v1985, %v1984
    %v2094 = vpack.c.b16 %v1987, %v1986
    %v2095 = vpack.c.b16 %v1989, %v1988
    %v2096 = vpack.c.b16 %v1991, %v1990
    %v2097 = vpack.c.b16 %v1993, %v1992
    %v2098 = vpack.c.b16 %v1995, %v1994
    %v2099 = vpack.c.b16 %v1997, %v1996
    %v2100 = vpack.c.b16 %v1999, %v1998
    %v2101 = vpack.c.b16 %v2001, %v2000
    %v2102 = vpack.c.b16 %v2003, %v2002
    %v2103 = vpack.c.b16 %v2005, %v2004
    %v2104 = vpack.c.b16 %v2007, %v2006
    %v2105 = vpack.c.b16 %v2009, %v2008
    %v2106 = vpack.c.b16 %v2011, %v2010
    %v2107 = vpack.c.b16 %v2013, %v2012
    %v2108 = vpack.c.b16 %v2015, %v2014
    %v2109 = vpack.c.b16 %v2017, %v2016
    %v2110 = vpack.c.b16 %v2019, %v2018
    %v2111 = vpack.c.b16 %v2021, %v2020
    %v2112 = vpack.c.b16 %v2023, %v2022
    %v2113 = vpack.c.b16 %v2025, %v2024
    %v2114 = vpack.c.b16 %v2027, %v2026
    %v2115 = vpack.c.b16 %v2029, %v2028
    %v2116 = vpack.c.b16 %v2031, %v2030
    %v2117 = vpack.c.b16 %v2033, %v2032
    %v2118 = vpack.c.b16 %v2035, %v2034
    %v2119 = vpack.c.b16 %v2037, %v2036
    %v2120 = vpack.c.b16 %v2039, %v2038
    %v2121 = vpack.c.b16 %v2041, %v2040
    %v2122 = vpack.c.b16 %v2043, %v2042
    %v2123 = vpack.c.b16 %v2045, %v2044
    %v2124 = vpack.c.b16 %v2047, %v2046
    %v2125 = vpack.c.b16 %v2049, %v2048
    %v2126 = vpack.c.b16 %v2051, %v2050
    %v2127 = vpack.c.b16 %v2053, %v2052
    %v2128 = vpack.c.b16 %v2055, %v2054
    %v2129 = vpack.c.b16 %v2057, %v2056
    %2202 = vmatprep.subr.bf16.mxu0 0
    %2203 = vmatpush1.bf16.msra.mxu0 %v2065
    %2204 = vmatprep.subr.bf16.mxu0 0
    %2205 = vmatpush1.bf16.msra.mxu0 %v2064
    %2206 = vmatprep.subr.bf16.mxu0 0
    %2207 = vmatpush1.bf16.msra.mxu0 %v2063
    %2208 = vmatprep.subr.bf16.mxu0 0
    %2209 = vmatpush1.bf16.msra.mxu0 %v2062
    %2210 = vmatprep.subr.bf16.mxu0 0
    %2211 = vmatpush1.bf16.msra.mxu0 %v2061
    %2212 = vmatprep.subr.bf16.mxu0 0
    %2213 = vmatpush1.bf16.msra.mxu0 %v2060
    %2214 = vmatprep.subr.bf16.mxu0 0
    %2215 = vmatpush1.bf16.msra.mxu0 %v2059
    %2216 = vmatprep.subr.bf16.mxu0 0
    %2217 = vmatpush1.bf16.msra.mxu0 %v2058
    %2218 = vmatprep.subr.bf16.mxu0 0
    %2219 = vmatpush2.bf16.msra.mxu0 %v2073
    %2220 = vmatprep.subr.bf16.mxu0 0
    %2221 = vmatpush2.bf16.msra.mxu0 %v2072
    %2222 = vmatprep.subr.bf16.mxu0 0
    %2223 = vmatpush2.bf16.msra.mxu0 %v2071
    %2224 = vmatprep.subr.bf16.mxu0 0
    %2225 = vmatpush2.bf16.msra.mxu0 %v2070
    %2226 = vmatprep.subr.bf16.mxu0 0
    %2227 = vmatpush2.bf16.msra.mxu0 %v2069
    %2228 = vmatprep.subr.bf16.mxu0 0
    %2229 = vmatpush2.bf16.msra.mxu0 %v2068
    %2230 = vmatprep.subr.bf16.mxu0 0
    %2231 = vmatpush2.bf16.msra.mxu0 %v2067
    %2232 = vmatprep.subr.bf16.mxu0 0
    %2233 = vmatpush2.bf16.msra.mxu0 %v2066
    %2234 = vmatprep.mubr.bf16.mxu0 %v1663
    %2235 = vmatmul.mubr.bf16.gmra.mxu0 %v1662
    %v2236 = vpop.f32.mrf.mxu0
    %v2237 = vadd.f32 %v1660, %v2236
    %v2238 = vpop.f32.mrf.mxu0
    %v2239 = vpop.f32.mrf.mxu0
    %v2240 = vadd.f32 %v1660, %v2239
    %v2241 = vpop.f32.mrf.mxu0
    %2242 = vmatprep.mubr.bf16.mxu0 %v1669
    %2243 = vmatmul.mubr.bf16.gmra.mxu0 %v1668
    %v2244 = vpop.f32.mrf.mxu0
    %v2245 = vadd.f32 %v1660, %v2244
    %v2246 = vpop.f32.mrf.mxu0
    %v2247 = vpop.f32.mrf.mxu0
    %v2248 = vadd.f32 %v1660, %v2247
    %v2249 = vpop.f32.mrf.mxu0
    %2250 = vmatprep.mubr.bf16.mxu0 %v1675
    %2251 = vmatmul.mubr.bf16.gmra.mxu0 %v1674
    %v2252 = vpop.f32.mrf.mxu0
    %v2253 = vadd.f32 %v1660, %v2252
    %v2254 = vpop.f32.mrf.mxu0
    %v2255 = vpop.f32.mrf.mxu0
    %v2256 = vadd.f32 %v1660, %v2255
    %v2257 = vpop.f32.mrf.mxu0
    %2258 = vmatprep.mubr.bf16.mxu0 %v1681
    %2259 = vmatmul.mubr.bf16.gmra.mxu0 %v1680
    %v2260 = vpop.f32.mrf.mxu0
    %v2261 = vadd.f32 %v1660, %v2260
    %v2262 = vpop.f32.mrf.mxu0
    %v2263 = vpop.f32.mrf.mxu0
    %v2264 = vadd.f32 %v1660, %v2263
    %v2265 = vpop.f32.mrf.mxu0
    %2266 = vmatprep.mubr.bf16.mxu0 %v1690
    %2267 = vmatmul.mubr.bf16.gmra.mxu0 %v1689
    %v2268 = vpop.f32.mrf.mxu0
    %v2269 = vadd.f32 %v1660, %v2268
    %v2270 = vpop.f32.mrf.mxu0
    %v2271 = vpop.f32.mrf.mxu0
    %v2272 = vadd.f32 %v1660, %v2271
    %v2273 = vpop.f32.mrf.mxu0
    %2274 = vmatprep.mubr.bf16.mxu0 %v1696
    %2275 = vmatmul.mubr.bf16.gmra.mxu0 %v1695
    %v2276 = vpop.f32.mrf.mxu0
    %v2277 = vadd.f32 %v1660, %v2276
    %v2278 = vpop.f32.mrf.mxu0
    %v2279 = vpop.f32.mrf.mxu0
    %v2280 = vadd.f32 %v1660, %v2279
    %v2281 = vpop.f32.mrf.mxu0
    %2282 = vmatprep.mubr.bf16.mxu0 %v1702
    %2283 = vmatmul.mubr.bf16.gmra.mxu0 %v1701
    %v2284 = vpop.f32.mrf.mxu0
    %v2285 = vadd.f32 %v1660, %v2284
    %v2286 = vpop.f32.mrf.mxu0
    %v2287 = vpop.f32.mrf.mxu0
    %v2288 = vadd.f32 %v1660, %v2287
    %v2289 = vpop.f32.mrf.mxu0
    %2290 = vmatprep.mubr.bf16.mxu0 %v1708
    %2291 = vmatmul.mubr.bf16.gmra.mxu0 %v1707
    %v2292 = vpop.f32.mrf.mxu0
    %v2293 = vadd.f32 %v1660, %v2292
    %v2294 = vpop.f32.mrf.mxu0
    %v2295 = vpop.f32.mrf.mxu0
    %v2296 = vadd.f32 %v1660, %v2295
    %v2297 = vpop.f32.mrf.mxu0
    %2298 = vdwg.mxu0
    %2299 = vmatprep.subr.bf16.mxu0 0
    %2300 = vmatpush1.bf16.msra.mxu0 %v2081
    %2301 = vmatprep.subr.bf16.mxu0 0
    %2302 = vmatpush1.bf16.msra.mxu0 %v2080
    %2303 = vmatprep.subr.bf16.mxu0 0
    %2304 = vmatpush1.bf16.msra.mxu0 %v2079
    %2305 = vmatprep.subr.bf16.mxu0 0
    %2306 = vmatpush1.bf16.msra.mxu0 %v2078
    %2307 = vmatprep.subr.bf16.mxu0 0
    %2308 = vmatpush1.bf16.msra.mxu0 %v2077
    %2309 = vmatprep.subr.bf16.mxu0 0
    %2310 = vmatpush1.bf16.msra.mxu0 %v2076
    %2311 = vmatprep.subr.bf16.mxu0 0
    %2312 = vmatpush1.bf16.msra.mxu0 %v2075
    %2313 = vmatprep.subr.bf16.mxu0 0
    %2314 = vmatpush1.bf16.msra.mxu0 %v2074
    %2315 = vmatprep.subr.bf16.mxu0 0
    %2316 = vmatpush2.bf16.msra.mxu0 %v2089
    %2317 = vmatprep.subr.bf16.mxu0 0
    %2318 = vmatpush2.bf16.msra.mxu0 %v2088
    %2319 = vmatprep.subr.bf16.mxu0 0
    %2320 = vmatpush2.bf16.msra.mxu0 %v2087
    %2321 = vmatprep.subr.bf16.mxu0 0
    %2322 = vmatpush2.bf16.msra.mxu0 %v2086
    %2323 = vmatprep.subr.bf16.mxu0 0
    %2324 = vmatpush2.bf16.msra.mxu0 %v2085
    %2325 = vmatprep.subr.bf16.mxu0 0
    %2326 = vmatpush2.bf16.msra.mxu0 %v2084
    %2327 = vmatprep.subr.bf16.mxu0 0
    %2328 = vmatpush2.bf16.msra.mxu0 %v2083
    %2329 = vmatprep.subr.bf16.mxu0 0
    %2330 = vmatpush2.bf16.msra.mxu0 %v2082
    %2331 = vmatprep.mubr.bf16.mxu0 %v1665
    %2332 = vmatmul.mubr.bf16.gmra.mxu0 %v1664
    %v2333 = vpop.f32.mrf.mxu0
    %v2334 = vadd.f32 %v2237, %v2333
    %v2335 = vpop.f32.mrf.mxu0
    %v2336 = vpop.f32.mrf.mxu0
    %v2337 = vadd.f32 %v2240, %v2336
    %v2338 = vpop.f32.mrf.mxu0
    %2339 = vmatprep.mubr.bf16.mxu0 %v1671
    %2340 = vmatmul.mubr.bf16.gmra.mxu0 %v1670
    %v2341 = vpop.f32.mrf.mxu0
    %v2342 = vadd.f32 %v2245, %v2341
    %v2343 = vpop.f32.mrf.mxu0
    %v2344 = vpop.f32.mrf.mxu0
    %v2345 = vadd.f32 %v2248, %v2344
    %v2346 = vpop.f32.mrf.mxu0
    %2347 = vmatprep.mubr.bf16.mxu0 %v1677
    %2348 = vmatmul.mubr.bf16.gmra.mxu0 %v1676
    %v2349 = vpop.f32.mrf.mxu0
    %v2350 = vadd.f32 %v2253, %v2349
    %v2351 = vpop.f32.mrf.mxu0
    %v2352 = vpop.f32.mrf.mxu0
    %v2353 = vadd.f32 %v2256, %v2352
    %v2354 = vpop.f32.mrf.mxu0
    %2355 = vmatprep.mubr.bf16.mxu0 %v1683
    %2356 = vmatmul.mubr.bf16.gmra.mxu0 %v1682
    %v2357 = vpop.f32.mrf.mxu0
    %v2358 = vadd.f32 %v2261, %v2357
    %v2359 = vpop.f32.mrf.mxu0
    %v2360 = vpop.f32.mrf.mxu0
    %v2361 = vadd.f32 %v2264, %v2360
    %v2362 = vpop.f32.mrf.mxu0
    %2363 = vmatprep.mubr.bf16.mxu0 %v1692
    %2364 = vmatmul.mubr.bf16.gmra.mxu0 %v1691
    %v2365 = vpop.f32.mrf.mxu0
    %v2366 = vadd.f32 %v2269, %v2365
    %v2367 = vpop.f32.mrf.mxu0
    %v2368 = vpop.f32.mrf.mxu0
    %v2369 = vadd.f32 %v2272, %v2368
    %v2370 = vpop.f32.mrf.mxu0
    %2371 = vmatprep.mubr.bf16.mxu0 %v1698
    %2372 = vmatmul.mubr.bf16.gmra.mxu0 %v1697
    %v2373 = vpop.f32.mrf.mxu0
    %v2374 = vadd.f32 %v2277, %v2373
    %v2375 = vpop.f32.mrf.mxu0
    %v2376 = vpop.f32.mrf.mxu0
    %v2377 = vadd.f32 %v2280, %v2376
    %v2378 = vpop.f32.mrf.mxu0
    %2379 = vmatprep.mubr.bf16.mxu0 %v1704
    %2380 = vmatmul.mubr.bf16.gmra.mxu0 %v1703
    %v2381 = vpop.f32.mrf.mxu0
    %v2382 = vadd.f32 %v2285, %v2381
    %v2383 = vpop.f32.mrf.mxu0
    %v2384 = vpop.f32.mrf.mxu0
    %v2385 = vadd.f32 %v2288, %v2384
    %v2386 = vpop.f32.mrf.mxu0
    %2387 = vmatprep.mubr.bf16.mxu0 %v1710
    %2388 = vmatmul.mubr.bf16.gmra.mxu0 %v1709
    %v2389 = vpop.f32.mrf.mxu0
    %v2390 = vadd.f32 %v2293, %v2389
    %v2391 = vpop.f32.mrf.mxu0
    %v2392 = vpop.f32.mrf.mxu0
    %v2393 = vadd.f32 %v2296, %v2392
    %v2394 = vpop.f32.mrf.mxu0
    %2395 = vdwg.mxu0
    %2396 = vmatprep.subr.bf16.mxu0 0
    %2397 = vmatpush1.bf16.msra.mxu0 %v2097
    %2398 = vmatprep.subr.bf16.mxu0 0
    %2399 = vmatpush1.bf16.msra.mxu0 %v2096
    %2400 = vmatprep.subr.bf16.mxu0 0
    %2401 = vmatpush1.bf16.msra.mxu0 %v2095
    %2402 = vmatprep.subr.bf16.mxu0 0
    %2403 = vmatpush1.bf16.msra.mxu0 %v2094
    %2404 = vmatprep.subr.bf16.mxu0 0
    %2405 = vmatpush1.bf16.msra.mxu0 %v2093
    %2406 = vmatprep.subr.bf16.mxu0 0
    %2407 = vmatpush1.bf16.msra.mxu0 %v2092
    %2408 = vmatprep.subr.bf16.mxu0 0
    %2409 = vmatpush1.bf16.msra.mxu0 %v2091
    %2410 = vmatprep.subr.bf16.mxu0 0
    %2411 = vmatpush1.bf16.msra.mxu0 %v2090
    %2412 = vmatprep.subr.bf16.mxu0 0
    %2413 = vmatpush2.bf16.msra.mxu0 %v2105
    %2414 = vmatprep.subr.bf16.mxu0 0
    %2415 = vmatpush2.bf16.msra.mxu0 %v2104
    %2416 = vmatprep.subr.bf16.mxu0 0
    %2417 = vmatpush2.bf16.msra.mxu0 %v2103
    %2418 = vmatprep.subr.bf16.mxu0 0
    %2419 = vmatpush2.bf16.msra.mxu0 %v2102
    %2420 = vmatprep.subr.bf16.mxu0 0
    %2421 = vmatpush2.bf16.msra.mxu0 %v2101
    %2422 = vmatprep.subr.bf16.mxu0 0
    %2423 = vmatpush2.bf16.msra.mxu0 %v2100
    %2424 = vmatprep.subr.bf16.mxu0 0
    %2425 = vmatpush2.bf16.msra.mxu0 %v2099
    %2426 = vmatprep.subr.bf16.mxu0 0
    %2427 = vmatpush2.bf16.msra.mxu0 %v2098
    %2428 = vmatprep.mubr.bf16.mxu0 %v1667
    %2429 = vmatmul.mubr.bf16.gmra.mxu0 %v1666
    %v2430 = vpop.f32.mrf.mxu0
    %v2431 = vadd.f32 %v2334, %v2430
    %v2432 = vpop.f32.mrf.mxu0
    %v2433 = vpop.f32.mrf.mxu0
    %v2434 = vadd.f32 %v2337, %v2433
    %v2435 = vpop.f32.mrf.mxu0
    %2436 = vmatprep.mubr.bf16.mxu0 %v1673
    %2437 = vmatmul.mubr.bf16.gmra.mxu0 %v1672
    %v2438 = vpop.f32.mrf.mxu0
    %v2439 = vadd.f32 %v2342, %v2438
    %v2440 = vpop.f32.mrf.mxu0
    %v2441 = vpop.f32.mrf.mxu0
    %v2442 = vadd.f32 %v2345, %v2441
    %v2443 = vpop.f32.mrf.mxu0
    %2444 = vmatprep.mubr.bf16.mxu0 %v1679
    %2445 = vmatmul.mubr.bf16.gmra.mxu0 %v1678
    %v2446 = vpop.f32.mrf.mxu0
    %v2447 = vadd.f32 %v2350, %v2446
    %v2448 = vpop.f32.mrf.mxu0
    %v2449 = vpop.f32.mrf.mxu0
    %v2450 = vadd.f32 %v2353, %v2449
    %v2451 = vpop.f32.mrf.mxu0
    %2452 = vmatprep.mubr.bf16.mxu0 %v1685
    %2453 = vmatmul.mubr.bf16.gmra.mxu0 %v1684
    %v2454 = vpop.f32.mrf.mxu0
    %v2455 = vadd.f32 %v2358, %v2454
    %v2456 = vpop.f32.mrf.mxu0
    %v2457 = vpop.f32.mrf.mxu0
    %v2458 = vadd.f32 %v2361, %v2457
    %v2459 = vpop.f32.mrf.mxu0
    %2460 = vmatprep.mubr.bf16.mxu0 %v1694
    %2461 = vmatmul.mubr.bf16.gmra.mxu0 %v1693
    %v2462 = vpop.f32.mrf.mxu0
    %v2463 = vadd.f32 %v2366, %v2462
    %v2464 = vpop.f32.mrf.mxu0
    %v2465 = vpop.f32.mrf.mxu0
    %v2466 = vadd.f32 %v2369, %v2465
    %v2467 = vpop.f32.mrf.mxu0
    %2468 = vmatprep.mubr.bf16.mxu0 %v1700
    %2469 = vmatmul.mubr.bf16.gmra.mxu0 %v1699
    %v2470 = vpop.f32.mrf.mxu0
    %v2471 = vadd.f32 %v2374, %v2470
    %v2472 = vpop.f32.mrf.mxu0
    %v2473 = vpop.f32.mrf.mxu0
    %v2474 = vadd.f32 %v2377, %v2473
    %v2475 = vpop.f32.mrf.mxu0
    %2476 = vmatprep.mubr.bf16.mxu0 %v1706
    %2477 = vmatmul.mubr.bf16.gmra.mxu0 %v1705
    %v2478 = vpop.f32.mrf.mxu0
    %v2479 = vadd.f32 %v2382, %v2478
    %v2480 = vpop.f32.mrf.mxu0
    %v2481 = vpop.f32.mrf.mxu0
    %v2482 = vadd.f32 %v2385, %v2481
    %v2483 = vpop.f32.mrf.mxu0
    %2484 = vmatprep.mubr.bf16.mxu0 %v1712
    %2485 = vmatmul.mubr.bf16.gmra.mxu0 %v1711
    %v2486 = vpop.f32.mrf.mxu0
    %v2487 = vadd.f32 %v2390, %v2486
    %v2488 = vpop.f32.mrf.mxu0
    %v2489 = vpop.f32.mrf.mxu0
    %v2490 = vadd.f32 %v2393, %v2489
    %v2491 = vpop.f32.mrf.mxu0
    %2492 = vdwg.mxu0
    %2493 = vmatprep.subr.bf16.mxu0 0
    %2494 = vmatpush1.bf16.msra.mxu0 %v2113
    %2495 = vmatprep.subr.bf16.mxu0 0
    %2496 = vmatpush1.bf16.msra.mxu0 %v2112
    %2497 = vmatprep.subr.bf16.mxu0 0
    %2498 = vmatpush1.bf16.msra.mxu0 %v2111
    %2499 = vmatprep.subr.bf16.mxu0 0
    %2500 = vmatpush1.bf16.msra.mxu0 %v2110
    %2501 = vmatprep.subr.bf16.mxu0 0
    %2502 = vmatpush1.bf16.msra.mxu0 %v2109
    %2503 = vmatprep.subr.bf16.mxu0 0
    %2504 = vmatpush1.bf16.msra.mxu0 %v2108
    %2505 = vmatprep.subr.bf16.mxu0 0
    %2506 = vmatpush1.bf16.msra.mxu0 %v2107
    %2507 = vmatprep.subr.bf16.mxu0 0
    %2508 = vmatpush1.bf16.msra.mxu0 %v2106
    %2509 = vmatprep.subr.bf16.mxu0 0
    %2510 = vmatpush2.bf16.msra.mxu0 %v2121
    %2511 = vmatprep.subr.bf16.mxu0 0
    %2512 = vmatpush2.bf16.msra.mxu0 %v2120
    %2513 = vmatprep.subr.bf16.mxu0 0
    %2514 = vmatpush2.bf16.msra.mxu0 %v2119
    %2515 = vmatprep.subr.bf16.mxu0 0
    %2516 = vmatpush2.bf16.msra.mxu0 %v2118
    %2517 = vmatprep.subr.bf16.mxu0 0
    %2518 = vmatpush2.bf16.msra.mxu0 %v2117
    %2519 = vmatprep.subr.bf16.mxu0 0
    %2520 = vmatpush2.bf16.msra.mxu0 %v2116
    %2521 = vmatprep.subr.bf16.mxu0 0
    %2522 = vmatpush2.bf16.msra.mxu0 %v2115
    %2523 = vmatprep.subr.bf16.mxu0 0
    %2524 = vmatpush2.bf16.msra.mxu0 %v2114
    %2525 = vmatprep.mubr.bf16.mxu0 %v1669
    %2526 = vmatmul.mubr.bf16.gmra.mxu0 %v1668
    %v2527 = vpop.f32.mrf.mxu0
    %v2528 = vadd.f32 %v2431, %v2527
    %v2529 = vpop.f32.mrf.mxu0
    %v2530 = vpop.f32.mrf.mxu0
    %v2531 = vadd.f32 %v2434, %v2530
    %v2532 = vpop.f32.mrf.mxu0
    %2533 = vmatprep.mubr.bf16.mxu0 %v1675
    %2534 = vmatmul.mubr.bf16.gmra.mxu0 %v1674
    %v2535 = vpop.f32.mrf.mxu0
    %v2536 = vadd.f32 %v2439, %v2535
    %v2537 = vpop.f32.mrf.mxu0
    %v2538 = vpop.f32.mrf.mxu0
    %v2539 = vadd.f32 %v2442, %v2538
    %v2540 = vpop.f32.mrf.mxu0
    %2541 = vmatprep.mubr.bf16.mxu0 %v1681
    %2542 = vmatmul.mubr.bf16.gmra.mxu0 %v1680
    %v2543 = vpop.f32.mrf.mxu0
    %v2544 = vadd.f32 %v2447, %v2543
    %v2545 = vpop.f32.mrf.mxu0
    %v2546 = vpop.f32.mrf.mxu0
    %v2547 = vadd.f32 %v2450, %v2546
    %v2548 = vpop.f32.mrf.mxu0
    %2549 = vmatprep.mubr.bf16.mxu0 %v1687
    %2550 = vmatmul.mubr.bf16.gmra.mxu0 %v1686
    %v2551 = vpop.f32.mrf.mxu0
    %v2552 = vadd.f32 %v2455, %v2551
    %v2553 = vpop.f32.mrf.mxu0
    %v2554 = vpop.f32.mrf.mxu0
    %v2555 = vadd.f32 %v2458, %v2554
    %v2556 = vpop.f32.mrf.mxu0
    %2557 = vmatprep.mubr.bf16.mxu0 %v1696
    %2558 = vmatmul.mubr.bf16.gmra.mxu0 %v1695
    %v2559 = vpop.f32.mrf.mxu0
    %v2560 = vadd.f32 %v2463, %v2559
    %v2561 = vpop.f32.mrf.mxu0
    %v2562 = vpop.f32.mrf.mxu0
    %v2563 = vadd.f32 %v2466, %v2562
    %v2564 = vpop.f32.mrf.mxu0
    %2565 = vmatprep.mubr.bf16.mxu0 %v1702
    %2566 = vmatmul.mubr.bf16.gmra.mxu0 %v1701
    %v2567 = vpop.f32.mrf.mxu0
    %v2568 = vadd.f32 %v2471, %v2567
    %v2569 = vpop.f32.mrf.mxu0
    %v2570 = vpop.f32.mrf.mxu0
    %v2571 = vadd.f32 %v2474, %v2570
    %v2572 = vpop.f32.mrf.mxu0
    %2573 = vmatprep.mubr.bf16.mxu0 %v1708
    %2574 = vmatmul.mubr.bf16.gmra.mxu0 %v1707
    %v2575 = vpop.f32.mrf.mxu0
    %v2576 = vadd.f32 %v2479, %v2575
    %v2577 = vpop.f32.mrf.mxu0
    %v2578 = vpop.f32.mrf.mxu0
    %v2579 = vadd.f32 %v2482, %v2578
    %v2580 = vpop.f32.mrf.mxu0
    %2581 = vmatprep.mubr.bf16.mxu0 %v1714
    %2582 = vmatmul.mubr.bf16.gmra.mxu0 %v1713
    %v2583 = vpop.f32.mrf.mxu0
    %v2584 = vadd.f32 %v2487, %v2583
    %v2585 = vpop.f32.mrf.mxu0
    %v2586 = vpop.f32.mrf.mxu0
    %v2587 = vadd.f32 %v2490, %v2586
    %v2588 = vpop.f32.mrf.mxu0
    %2589 = vdwg.mxu0
    %2590 = vmatprep.subr.bf16.mxu0 0
    %2591 = vmatpush1.bf16.msra.mxu0 %v2129
    %2592 = vmatprep.subr.bf16.mxu0 0
    %2593 = vmatpush1.bf16.msra.mxu0 %v2128
    %2594 = vmatprep.subr.bf16.mxu0 0
    %2595 = vmatpush1.bf16.msra.mxu0 %v2127
    %2596 = vmatprep.subr.bf16.mxu0 0
    %2597 = vmatpush1.bf16.msra.mxu0 %v2126
    %2598 = vmatprep.subr.bf16.mxu0 0
    %2599 = vmatpush1.bf16.msra.mxu0 %v2125
    %2600 = vmatprep.subr.bf16.mxu0 0
    %2601 = vmatpush1.bf16.msra.mxu0 %v2124
    %2602 = vmatprep.subr.bf16.mxu0 0
    %2603 = vmatpush1.bf16.msra.mxu0 %v2123
    %2604 = vmatprep.subr.bf16.mxu0 0
    %2605 = vmatpush1.bf16.msra.mxu0 %v2122
    %2606 = vmatprep.subr.bf16.mxu0 0
    %2607 = vmatpush2.bf16.msra.mxu0 0
    %2608 = vmatprep.subr.bf16.mxu0 0
    %2609 = vmatpush2.bf16.msra.mxu0 0
    %2610 = vmatprep.subr.bf16.mxu0 0
    %2611 = vmatpush2.bf16.msra.mxu0 0
    %2612 = vmatprep.subr.bf16.mxu0 0
    %2613 = vmatpush2.bf16.msra.mxu0 0
    %2614 = vmatprep.subr.bf16.mxu0 0
    %2615 = vmatpush2.bf16.msra.mxu0 0
    %2616 = vmatprep.subr.bf16.mxu0 0
    %2617 = vmatpush2.bf16.msra.mxu0 0
    %2618 = vmatprep.subr.bf16.mxu0 0
    %2619 = vmatpush2.bf16.msra.mxu0 0
    %2620 = vmatprep.subr.bf16.mxu0 0
    %2621 = vmatpush2.bf16.msra.mxu0 0
    %2622 = vmatprep.mubr.bf16.mxu0 0
    %2623 = vmatmul.mubr.bf16.gmra.mxu0 %v1670
    %v2624 = vpop.f32.mrf.mxu0
    %v2625 = vadd.f32 %v2528, %v2624
    %v2626 = vpop.f32.mrf.mxu0
    %v2627 = vpop.f32.mrf.mxu0
    %v2628 = vadd.f32 %v2531, %v2627
    %v2629 = vpop.f32.mrf.mxu0
    %2630 = vmatprep.mubr.bf16.mxu0 0
    %2631 = vmatmul.mubr.bf16.gmra.mxu0 %v1676
    %v2632 = vpop.f32.mrf.mxu0
    %v2633 = vadd.f32 %v2536, %v2632
    %v2634 = vpop.f32.mrf.mxu0
    %v2635 = vpop.f32.mrf.mxu0
    %v2636 = vadd.f32 %v2539, %v2635
    %v2637 = vpop.f32.mrf.mxu0
    %2638 = vmatprep.mubr.bf16.mxu0 0
    %2639 = vmatmul.mubr.bf16.gmra.mxu0 %v1682
    %v2640 = vpop.f32.mrf.mxu0
    %v2641 = vadd.f32 %v2544, %v2640
    %v2642 = vpop.f32.mrf.mxu0
    %v2643 = vpop.f32.mrf.mxu0
    %v2644 = vadd.f32 %v2547, %v2643
    %v2645 = vpop.f32.mrf.mxu0
    %2646 = vmatprep.mubr.bf16.mxu0 0
    %2647 = vmatmul.mubr.bf16.gmra.mxu0 %v1688
    %v2648 = vpop.f32.mrf.mxu0
    %v2649 = vadd.f32 %v2552, %v2648
    %v2650 = vpop.f32.mrf.mxu0
    %v2651 = vpop.f32.mrf.mxu0
    %v2652 = vadd.f32 %v2555, %v2651
    %v2653 = vpop.f32.mrf.mxu0
    %2654 = vmatprep.mubr.bf16.mxu0 0
    %2655 = vmatmul.mubr.bf16.gmra.mxu0 %v1697
    %v2656 = vpop.f32.mrf.mxu0
    %v2657 = vadd.f32 %v2560, %v2656
    %v2658 = vpop.f32.mrf.mxu0
    %v2659 = vpop.f32.mrf.mxu0
    %v2660 = vadd.f32 %v2563, %v2659
    %v2661 = vpop.f32.mrf.mxu0
    %2662 = vmatprep.mubr.bf16.mxu0 0
    %2663 = vmatmul.mubr.bf16.gmra.mxu0 %v1703
    %v2664 = vpop.f32.mrf.mxu0
    %v2665 = vadd.f32 %v2568, %v2664
    %v2666 = vpop.f32.mrf.mxu0
    %v2667 = vpop.f32.mrf.mxu0
    %v2668 = vadd.f32 %v2571, %v2667
    %v2669 = vpop.f32.mrf.mxu0
    %2670 = vmatprep.mubr.bf16.mxu0 0
    %2671 = vmatmul.mubr.bf16.gmra.mxu0 %v1709
    %v2672 = vpop.f32.mrf.mxu0
    %v2673 = vadd.f32 %v2576, %v2672
    %v2674 = vpop.f32.mrf.mxu0
    %v2675 = vpop.f32.mrf.mxu0
    %v2676 = vadd.f32 %v2579, %v2675
    %v2677 = vpop.f32.mrf.mxu0
    %2678 = vmatprep.mubr.bf16.mxu0 0
    %2679 = vmatmul.mubr.bf16.gmra.mxu0 %v1715
    %v2680 = vpop.f32.mrf.mxu0
    %v2681 = vadd.f32 %v2584, %v2680
    %v2682 = vpop.f32.mrf.mxu0
    %v2683 = vpop.f32.mrf.mxu0
    %v2684 = vadd.f32 %v2587, %v2683
    %v2685 = vpop.f32.mrf.mxu0
    %2686 = vdwg.mxu0
    %v2687 = vld [vmem:[%s1] sm:$0x1]
    %v2688 = vld [vmem:[%s1 + $0x1] sm:$0x1]
    %v2691 = vlaneseq
    %v2692 = vshrl.u32 %v2691, 7
    %v2693 = vsub.s32 0, %v2692
    %v2694 = vrot.slane %v2687, %v2693
    %v2695 = vlaneseq
    %v2696 = vshrl.u32 %v2695, 7
    %v2697 = vsub.s32 0, %v2696
    %v2698 = vrot.slane %v2688, %v2697
    %v2701 = vadd.f32 %v2625, %v2694
    %v2702 = vadd.f32 %v2628, %v2694
    %v2703 = vadd.f32 %v2633, %v2694
    %v2704 = vadd.f32 %v2636, %v2694
    %v2705 = vadd.f32 %v2641, %v2694
    %v2706 = vadd.f32 %v2644, %v2694
    %v2707 = vadd.f32 %v2649, %v2694
    %v2708 = vadd.f32 %v2652, %v2694
    %v2709 = vadd.f32 %v2657, %v2698
    %v2710 = vadd.f32 %v2660, %v2698
    %v2711 = vadd.f32 %v2665, %v2698
    %v2712 = vadd.f32 %v2668, %v2698
    %v2713 = vadd.f32 %v2673, %v2698
    %v2714 = vadd.f32 %v2676, %v2698
    %v2715 = vadd.f32 %v2681, %v2698
    %v2716 = vadd.f32 %v2684, %v2698
    %v2717 = vld [vmem:[%s8] sm:$0xff]
    %v2718 = vld [vmem:[%s8 + $0x8] sm:$0xff]
    %v2719 = vld [vmem:[%s8 + $0x10] sm:$0xff]
    %v2720 = vld [vmem:[%s8 + $0x18] sm:$0xff]
    %v2721 = vld [vmem:[%s8 + $0x20] sm:$0xff]
    %v2722 = vld [vmem:[%s8 + $0x28] sm:$0xff]
    %v2723 = vld [vmem:[%s8 + $0x30] sm:$0xff]
    %v2724 = vld [vmem:[%s8 + $0x38] sm:$0xff]
    %v2725 = vld [vmem:[%s8 + $0x40] sm:$0xff]
    %v2726 = vld [vmem:[%s8 + $0x48] sm:$0xff]
    %v2727 = vld [vmem:[%s8 + $0x50] sm:$0xff]
    %v2728 = vld [vmem:[%s8 + $0x58] sm:$0xff]
    %v2729 = vld [vmem:[%s8 + $0x60] sm:$0xff]
    %v2730 = vld [vmem:[%s8 + $0x68] sm:$0xff]
    %v2731 = vld [vmem:[%s8 + $0x70] sm:$0xff]
    %v2732 = vld [vmem:[%s8 + $0x78] sm:$0xff]
    %v2733 = vld [vmem:[%s6] sm:$0x1]
    %v2734 = vld [vmem:[%s7] sm:$0x1]
    %v2735 = vadd.f32 %v2701, %v2702
    %v2736 = vadd.f32 %v2735, %v2703
    %v2737 = vadd.f32 %v2736, %v2704
    %v2738 = vadd.f32 %v2737, %v2705
    %v2739 = vadd.f32 %v2738, %v2706
    %v2740 = vadd.f32 %v2739, %v2707
    %v2741 = vadd.f32 %v2740, %v2708
    %v2742 = vrot.slane %v2741, 4
    %v2743 = vadd.f32 %v2741, %v2742
    %v2744 = vrot.slane %v2743, 2
    %v2745 = vadd.f32 %v2743, %v2744
    %v2746 = vrot.slane %v2745, 1
    %v2747 = vadd.f32 %v2745, %v2746
    %v2748 = vadd.f32 %v2709, %v2710
    %v2749 = vadd.f32 %v2748, %v2711
    %v2750 = vadd.f32 %v2749, %v2712
    %v2751 = vadd.f32 %v2750, %v2713
    %v2752 = vadd.f32 %v2751, %v2714
    %v2753 = vadd.f32 %v2752, %v2715
    %v2754 = vadd.f32 %v2753, %v2716
    %v2755 = vrot.slane %v2754, 4
    %v2756 = vadd.f32 %v2754, %v2755
    %v2757 = vrot.slane %v2756, 2
    %v2758 = vadd.f32 %v2756, %v2757
    %v2759 = vrot.slane %v2758, 1
    %v2760 = vadd.f32 %v2758, %v2759
    %v2761 = vmul.f32 %v2701, %v2701
    %v2762 = vmul.f32 %v2702, %v2702
    %v2763 = vmul.f32 %v2703, %v2703
    %v2764 = vmul.f32 %v2704, %v2704
    %v2765 = vmul.f32 %v2705, %v2705
    %v2766 = vmul.f32 %v2706, %v2706
    %v2767 = vmul.f32 %v2707, %v2707
    %v2768 = vmul.f32 %v2708, %v2708
    %v2769 = vmul.f32 %v2709, %v2709
    %v2770 = vmul.f32 %v2710, %v2710
    %v2771 = vmul.f32 %v2711, %v2711
    %v2772 = vmul.f32 %v2712, %v2712
    %v2773 = vmul.f32 %v2713, %v2713
    %v2774 = vmul.f32 %v2714, %v2714
    %v2775 = vmul.f32 %v2715, %v2715
    %v2776 = vmul.f32 %v2716, %v2716
    %v2777 = vadd.f32 %v2761, %v2762
    %v2778 = vadd.f32 %v2777, %v2763
    %v2779 = vadd.f32 %v2778, %v2764
    %v2780 = vadd.f32 %v2779, %v2765
    %v2781 = vadd.f32 %v2780, %v2766
    %v2782 = vadd.f32 %v2781, %v2767
    %v2783 = vadd.f32 %v2782, %v2768
    %v2784 = vrot.slane %v2783, 4
    %v2785 = vadd.f32 %v2783, %v2784
    %v2786 = vrot.slane %v2785, 2
    %v2787 = vadd.f32 %v2785, %v2786
    %v2788 = vrot.slane %v2787, 1
    %v2789 = vadd.f32 %v2787, %v2788
    %v2790 = vadd.f32 %v2769, %v2770
    %v2791 = vadd.f32 %v2790, %v2771
    %v2792 = vadd.f32 %v2791, %v2772
    %v2793 = vadd.f32 %v2792, %v2773
    %v2794 = vadd.f32 %v2793, %v2774
    %v2795 = vadd.f32 %v2794, %v2775
    %v2796 = vadd.f32 %v2795, %v2776
    %v2797 = vrot.slane %v2796, 4
    %v2798 = vadd.f32 %v2796, %v2797
    %v2799 = vrot.slane %v2798, 2
    %v2800 = vadd.f32 %v2798, %v2799
    %v2801 = vrot.slane %v2800, 1
    %v2802 = vadd.f32 %v2800, %v2801
    %v2805 = vsel %vm191, %v2760, %v2747
    %v2809 = vsel %vm196, %v2802, %v2789
    %v2811 = vsel %vm199, %v2805, %v2809
    %2812 = vmatprep.subr.mxu0 0.0
    %2813 = vmatpush1.msra.mxu0 %v2732
    %2814 = vmatprep.subr.mxu0 0.0
    %2815 = vmatpush1.msra.mxu0 %v2731
    %2816 = vmatprep.subr.mxu0 0.0
    %2817 = vmatpush1.msra.mxu0 %v2730
    %2818 = vmatprep.subr.mxu0 0.0
    %2819 = vmatpush1.msra.mxu0 %v2729
    %2820 = vmatprep.subr.mxu0 0.0
    %2821 = vmatpush1.msra.mxu0 %v2728
    %2822 = vmatprep.subr.mxu0 0.0
    %2823 = vmatpush1.msra.mxu0 %v2727
    %2824 = vmatprep.subr.mxu0 0.0
    %2825 = vmatpush1.msra.mxu0 %v2726
    %2826 = vmatprep.subr.mxu0 0.0
    %2827 = vmatpush1.msra.mxu0 %v2725
    %2828 = vmatprep.subr.mxu0 0.0
    %2829 = vmatpush1.msra.mxu0 %v2724
    %2830 = vmatprep.subr.mxu0 0.0
    %2831 = vmatpush1.msra.mxu0 %v2723
    %2832 = vmatprep.subr.mxu0 0.0
    %2833 = vmatpush1.msra.mxu0 %v2722
    %2834 = vmatprep.subr.mxu0 0.0
    %2835 = vmatpush1.msra.mxu0 %v2721
    %2836 = vmatprep.subr.mxu0 0.0
    %2837 = vmatpush1.msra.mxu0 %v2720
    %2838 = vmatprep.subr.mxu0 0.0
    %2839 = vmatpush1.msra.mxu0 %v2719
    %2840 = vmatprep.subr.mxu0 0.0
    %2841 = vmatpush1.msra.mxu0 %v2718
    %2842 = vmatprep.subr.mxu0 0.0
    %2843 = vmatpush1.msra.mxu0 %v2717
    %2844 = vmatprep.subr.mxu0 0.0
    %2845 = vmatpush2.msra.mxu0 0.0
    %2846 = vmatprep.subr.mxu0 0.0
    %2847 = vmatpush2.msra.mxu0 0.0
    %2848 = vmatprep.subr.mxu0 0.0
    %2849 = vmatpush2.msra.mxu0 0.0
    %2850 = vmatprep.subr.mxu0 0.0
    %2851 = vmatpush2.msra.mxu0 0.0
    %2852 = vmatprep.subr.mxu0 0.0
    %2853 = vmatpush2.msra.mxu0 0.0
    %2854 = vmatprep.subr.mxu0 0.0
    %2855 = vmatpush2.msra.mxu0 0.0
    %2856 = vmatprep.subr.mxu0 0.0
    %2857 = vmatpush2.msra.mxu0 0.0
    %2858 = vmatprep.subr.mxu0 0.0
    %2859 = vmatpush2.msra.mxu0 0.0
    %2860 = vmatprep.subr.mxu0 0.0
    %2861 = vmatpush2.msra.mxu0 0.0
    %2862 = vmatprep.subr.mxu0 0.0
    %2863 = vmatpush2.msra.mxu0 0.0
    %2864 = vmatprep.subr.mxu0 0.0
    %2865 = vmatpush2.msra.mxu0 0.0
    %2866 = vmatprep.subr.mxu0 0.0
    %2867 = vmatpush2.msra.mxu0 0.0
    %2868 = vmatprep.subr.mxu0 0.0
    %2869 = vmatpush2.msra.mxu0 0.0
    %2870 = vmatprep.subr.mxu0 0.0
    %2871 = vmatpush2.msra.mxu0 0.0
    %2872 = vmatprep.subr.mxu0 0.0
    %2873 = vmatpush2.msra.mxu0 0.0
    %2874 = vmatprep.subr.mxu0 0.0
    %2875 = vmatpush2.msra.mxu0 0.0
    %2876 = vmatprep.mubr.f32.mxu0 0.0
    %2877 = vmatmul.mubr.f32.gmra.mxu0 %v2811
    %v2878 = vpop.f32.mrf.mxu0
    %v2879 = vadd.f32 0.0, %v2878
    %v2880 = vpop.f32.mrf.mxu0
    %2881 = vdwg.mxu0
    %v2882 = vrcp.pop 128.0
    %v2883 = vmul.f32 %v2879, %v2882
    %v2884 = vmul.f32 %v2883, %v2883
    %v2886 = vrot.slane %v2884, 6
    %v2888 = vsub.f32 %v2883, %v2886
    %v2889 = vadd.f32 %v2888, 1e-05
    %v2890 = vrsqrt.pop %v2889
    %v2892 = vsel %vm280, %v2883, 0
    %v2895 = vsel %vm280, %v2717, 0
    %v2898 = vsel %vm280, %v2718, 0
    %v2901 = vsel %vm280, %v2719, 0
    %v2904 = vsel %vm280, %v2720, 0
    %v2907 = vsel %vm280, %v2721, 0
    %v2910 = vsel %vm280, %v2722, 0
    %v2913 = vsel %vm280, %v2723, 0
    %v2916 = vsel %vm280, %v2724, 0
    %v2919 = vsel %vm280, %v2725, 0
    %v2922 = vsel %vm280, %v2726, 0
    %v2925 = vsel %vm280, %v2727, 0
    %v2928 = vsel %vm280, %v2728, 0
    %v2931 = vsel %vm280, %v2729, 0
    %v2934 = vsel %vm280, %v2730, 0
    %v2937 = vsel %vm280, %v2731, 0
    %v2940 = vsel %vm280, %v2732, 0
    %2942 = vmatprep.subr.mxu0 0.0
    %2943 = vmatpush1.xpose.msra.mxu0 %v2940
    %2944 = vmatprep.subr.mxu0 0.0
    %2945 = vmatpush1.xpose.msra.mxu0 %v2937
    %2946 = vmatprep.subr.mxu0 0.0
    %2947 = vmatpush1.xpose.msra.mxu0 %v2934
    %2948 = vmatprep.subr.mxu0 0.0
    %2949 = vmatpush1.xpose.msra.mxu0 %v2931
    %2950 = vmatprep.subr.mxu0 0.0
    %2951 = vmatpush1.xpose.msra.mxu0 %v2928
    %2952 = vmatprep.subr.mxu0 0.0
    %2953 = vmatpush1.xpose.msra.mxu0 %v2925
    %2954 = vmatprep.subr.mxu0 0.0
    %2955 = vmatpush1.xpose.msra.mxu0 %v2922
    %2956 = vmatprep.subr.mxu0 0.0
    %2957 = vmatpush1.xpose.msra.mxu0 %v2919
    %2958 = vmatprep.subr.mxu0 0.0
    %2959 = vmatpush1.xpose.msra.mxu0 %v2916
    %2960 = vmatprep.subr.mxu0 0.0
    %2961 = vmatpush1.xpose.msra.mxu0 %v2913
    %2962 = vmatprep.subr.mxu0 0.0
    %2963 = vmatpush1.xpose.msra.mxu0 %v2910
    %2964 = vmatprep.subr.mxu0 0.0
    %2965 = vmatpush1.xpose.msra.mxu0 %v2907
    %2966 = vmatprep.subr.mxu0 0.0
    %2967 = vmatpush1.xpose.msra.mxu0 %v2904
    %2968 = vmatprep.subr.mxu0 0.0
    %2969 = vmatpush1.xpose.msra.mxu0 %v2901
    %2970 = vmatprep.subr.mxu0 0.0
    %2971 = vmatpush1.xpose.msra.mxu0 %v2898
    %2972 = vmatprep.subr.mxu0 0.0
    %2973 = vmatpush1.xpose.msra.mxu0 %v2895
    %2974 = vmatprep.subr.mxu0 0.0
    %2975 = vmatpush2.xpose.msra.mxu0 0.0
    %2976 = vmatprep.subr.mxu0 0.0
    %2977 = vmatpush2.xpose.msra.mxu0 0.0
    %2978 = vmatprep.subr.mxu0 0.0
    %2979 = vmatpush2.xpose.msra.mxu0 0.0
    %2980 = vmatprep.subr.mxu0 0.0
    %2981 = vmatpush2.xpose.msra.mxu0 0.0
    %2982 = vmatprep.subr.mxu0 0.0
    %2983 = vmatpush2.xpose.msra.mxu0 0.0
    %2984 = vmatprep.subr.mxu0 0.0
    %2985 = vmatpush2.xpose.msra.mxu0 0.0
    %2986 = vmatprep.subr.mxu0 0.0
    %2987 = vmatpush2.xpose.msra.mxu0 0.0
    %2988 = vmatprep.subr.mxu0 0.0
    %2989 = vmatpush2.xpose.msra.mxu0 0.0
    %2990 = vmatprep.subr.mxu0 0.0
    %2991 = vmatpush2.xpose.msra.mxu0 0.0
    %2992 = vmatprep.subr.mxu0 0.0
    %2993 = vmatpush2.xpose.msra.mxu0 0.0
    %2994 = vmatprep.subr.mxu0 0.0
    %2995 = vmatpush2.xpose.msra.mxu0 0.0
    %2996 = vmatprep.subr.mxu0 0.0
    %2997 = vmatpush2.xpose.msra.mxu0 0.0
    %2998 = vmatprep.subr.mxu0 0.0
    %2999 = vmatpush2.xpose.msra.mxu0 0.0
    %3000 = vmatprep.subr.mxu0 0.0
    %3001 = vmatpush2.xpose.msra.mxu0 0.0
    %3002 = vmatprep.subr.mxu0 0.0
    %3003 = vmatpush2.xpose.msra.mxu0 0.0
    %3004 = vmatprep.subr.mxu0 0.0
    %3005 = vmatpush2.xpose.msra.mxu0 0.0
    %3006 = vmatprep.mubr.f32.mxu0 0.0
    %3007 = vmatmul.mubr.f32.gmra.mxu0 %v2892
    %v3008 = vpop.f32.mrf.mxu0
    %v3009 = vadd.f32 0.0, %v3008
    %v3010 = vpop.f32.mrf.mxu0
    %3011 = vdwg.mxu0
    %v3014 = vunpack.c.l.s4 1966171168
    %v3015 = vunpack.c.0.s8 %v3014
    %v3016 = vlaneseq
    %v3017 = vshrl.u32 %v3016, 7
    %v3018 = vsub.s32 %v3015, %v3017
    %v3019 = vrot.slane %v3009, %v3018
    %v3020 = vcombine.high %v3019, %v3019
    %v3022 = vunpack.c.l.s4 1966171168
    %v3023 = vunpack.c.0.s8 %v3022
    %v3024 = vlaneseq
    %v3025 = vshrl.u32 %v3024, 7
    %v3026 = vsub.s32 %v3023, %v3025
    %v3027 = vrot.slane %v3019, %v3026
    %v3029 = vunpack.c.l.s4 1966171168
    %v3030 = vunpack.c.0.s8 %v3029
    %v3031 = vlaneseq
    %v3032 = vshrl.u32 %v3031, 7
    %v3033 = vsub.s32 %v3030, %v3032
    %v3034 = vrot.slane %v3020, %v3033
    %v3035 = vlaneseq
    %v3036 = vshrl.u32 %v3035, 7
    %v3037 = vsub.s32 0, %v3036
    %v3038 = vrot.slane %v3027, %v3037
    %v3039 = vlaneseq
    %v3040 = vshrl.u32 %v3039, 7
    %v3041 = vsub.s32 0, %v3040
    %v3042 = vrot.slane %v3034, %v3041
    %v3045 = vsub.f32 %v2701, %v3038
    %v3046 = vsub.f32 %v2702, %v3038
    %v3047 = vsub.f32 %v2703, %v3038
    %v3048 = vsub.f32 %v2704, %v3038
    %v3049 = vsub.f32 %v2705, %v3038
    %v3050 = vsub.f32 %v2706, %v3038
    %v3051 = vsub.f32 %v2707, %v3038
    %v3052 = vsub.f32 %v2708, %v3038
    %v3053 = vsub.f32 %v2709, %v3042
    %v3054 = vsub.f32 %v2710, %v3042
    %v3055 = vsub.f32 %v2711, %v3042
    %v3056 = vsub.f32 %v2712, %v3042
    %v3057 = vsub.f32 %v2713, %v3042
    %v3058 = vsub.f32 %v2714, %v3042
    %v3059 = vsub.f32 %v2715, %v3042
    %v3060 = vsub.f32 %v2716, %v3042
    %v3062 = vrot.slane %v2890, 2
    %v3063 = vsel %vm280, %v3062, 0
    %3065 = vmatprep.subr.mxu0 0.0
    %3066 = vmatpush1.xpose.msra.mxu0 %v2940
    %3067 = vmatprep.subr.mxu0 0.0
    %3068 = vmatpush1.xpose.msra.mxu0 %v2937
    %3069 = vmatprep.subr.mxu0 0.0
    %3070 = vmatpush1.xpose.msra.mxu0 %v2934
    %3071 = vmatprep.subr.mxu0 0.0
    %3072 = vmatpush1.xpose.msra.mxu0 %v2931
    %3073 = vmatprep.subr.mxu0 0.0
    %3074 = vmatpush1.xpose.msra.mxu0 %v2928
    %3075 = vmatprep.subr.mxu0 0.0
    %3076 = vmatpush1.xpose.msra.mxu0 %v2925
    %3077 = vmatprep.subr.mxu0 0.0
    %3078 = vmatpush1.xpose.msra.mxu0 %v2922
    %3079 = vmatprep.subr.mxu0 0.0
    %3080 = vmatpush1.xpose.msra.mxu0 %v2919
    %3081 = vmatprep.subr.mxu0 0.0
    %3082 = vmatpush1.xpose.msra.mxu0 %v2916
    %3083 = vmatprep.subr.mxu0 0.0
    %3084 = vmatpush1.xpose.msra.mxu0 %v2913
    %3085 = vmatprep.subr.mxu0 0.0
    %3086 = vmatpush1.xpose.msra.mxu0 %v2910
    %3087 = vmatprep.subr.mxu0 0.0
    %3088 = vmatpush1.xpose.msra.mxu0 %v2907
    %3089 = vmatprep.subr.mxu0 0.0
    %3090 = vmatpush1.xpose.msra.mxu0 %v2904
    %3091 = vmatprep.subr.mxu0 0.0
    %3092 = vmatpush1.xpose.msra.mxu0 %v2901
    %3093 = vmatprep.subr.mxu0 0.0
    %3094 = vmatpush1.xpose.msra.mxu0 %v2898
    %3095 = vmatprep.subr.mxu0 0.0
    %3096 = vmatpush1.xpose.msra.mxu0 %v2895
    %3097 = vmatprep.subr.mxu0 0.0
    %3098 = vmatpush2.xpose.msra.mxu0 0.0
    %3099 = vmatprep.subr.mxu0 0.0
    %3100 = vmatpush2.xpose.msra.mxu0 0.0
    %3101 = vmatprep.subr.mxu0 0.0
    %3102 = vmatpush2.xpose.msra.mxu0 0.0
    %3103 = vmatprep.subr.mxu0 0.0
    %3104 = vmatpush2.xpose.msra.mxu0 0.0
    %3105 = vmatprep.subr.mxu0 0.0
    %3106 = vmatpush2.xpose.msra.mxu0 0.0
    %3107 = vmatprep.subr.mxu0 0.0
    %3108 = vmatpush2.xpose.msra.mxu0 0.0
    %3109 = vmatprep.subr.mxu0 0.0
    %3110 = vmatpush2.xpose.msra.mxu0 0.0
    %3111 = vmatprep.subr.mxu0 0.0
    %3112 = vmatpush2.xpose.msra.mxu0 0.0
    %3113 = vmatprep.subr.mxu0 0.0
    %3114 = vmatpush2.xpose.msra.mxu0 0.0
    %3115 = vmatprep.subr.mxu0 0.0
    %3116 = vmatpush2.xpose.msra.mxu0 0.0
    %3117 = vmatprep.subr.mxu0 0.0
    %3118 = vmatpush2.xpose.msra.mxu0 0.0
    %3119 = vmatprep.subr.mxu0 0.0
    %3120 = vmatpush2.xpose.msra.mxu0 0.0
    %3121 = vmatprep.subr.mxu0 0.0
    %3122 = vmatpush2.xpose.msra.mxu0 0.0
    %3123 = vmatprep.subr.mxu0 0.0
    %3124 = vmatpush2.xpose.msra.mxu0 0.0
    %3125 = vmatprep.subr.mxu0 0.0
    %3126 = vmatpush2.xpose.msra.mxu0 0.0
    %3127 = vmatprep.subr.mxu0 0.0
    %3128 = vmatpush2.xpose.msra.mxu0 0.0
    %3129 = vmatprep.mubr.f32.mxu0 0.0
    %3130 = vmatmul.mubr.f32.gmra.mxu0 %v3063
    %v3131 = vpop.f32.mrf.mxu0
    %v3132 = vadd.f32 0.0, %v3131
    %v3133 = vpop.f32.mrf.mxu0
    %3134 = vdwg.mxu0
    %v3137 = vunpack.c.l.s4 1966171168
    %v3138 = vunpack.c.0.s8 %v3137
    %v3139 = vlaneseq
    %v3140 = vshrl.u32 %v3139, 7
    %v3141 = vsub.s32 %v3138, %v3140
    %v3142 = vrot.slane %v3132, %v3141
    %v3143 = vcombine.high %v3142, %v3142
    %v3145 = vunpack.c.l.s4 1966171168
    %v3146 = vunpack.c.0.s8 %v3145
    %v3147 = vlaneseq
    %v3148 = vshrl.u32 %v3147, 7
    %v3149 = vsub.s32 %v3146, %v3148
    %v3150 = vrot.slane %v3142, %v3149
    %v3152 = vunpack.c.l.s4 1966171168
    %v3153 = vunpack.c.0.s8 %v3152
    %v3154 = vlaneseq
    %v3155 = vshrl.u32 %v3154, 7
    %v3156 = vsub.s32 %v3153, %v3155
    %v3157 = vrot.slane %v3143, %v3156
    %v3158 = vlaneseq
    %v3159 = vshrl.u32 %v3158, 7
    %v3160 = vsub.s32 0, %v3159
    %v3161 = vrot.slane %v3150, %v3160
    %v3162 = vlaneseq
    %v3163 = vshrl.u32 %v3162, 7
    %v3164 = vsub.s32 0, %v3163
    %v3165 = vrot.slane %v3157, %v3164
    %v3168 = vmul.f32 %v3045, %v3161
    %v3169 = vmul.f32 %v3046, %v3161
    %v3170 = vmul.f32 %v3047, %v3161
    %v3171 = vmul.f32 %v3048, %v3161
    %v3172 = vmul.f32 %v3049, %v3161
    %v3173 = vmul.f32 %v3050, %v3161
    %v3174 = vmul.f32 %v3051, %v3161
    %v3175 = vmul.f32 %v3052, %v3161
    %v3176 = vmul.f32 %v3053, %v3165
    %v3177 = vmul.f32 %v3054, %v3165
    %v3178 = vmul.f32 %v3055, %v3165
    %v3179 = vmul.f32 %v3056, %v3165
    %v3180 = vmul.f32 %v3057, %v3165
    %v3181 = vmul.f32 %v3058, %v3165
    %v3182 = vmul.f32 %v3059, %v3165
    %v3183 = vmul.f32 %v3060, %v3165
    %v3185 = vlaneseq
    %v3186 = vshrl.u32 %v3185, 7
    %v3187 = vsub.s32 0, %v3186
    %v3188 = vrot.slane %v2733, %v3187
    %v3190 = vmul.f32 %v3168, %v3188
    %v3191 = vmul.f32 %v3169, %v3188
    %v3192 = vmul.f32 %v3170, %v3188
    %v3193 = vmul.f32 %v3171, %v3188
    %v3194 = vmul.f32 %v3172, %v3188
    %v3195 = vmul.f32 %v3173, %v3188
    %v3196 = vmul.f32 %v3174, %v3188
    %v3197 = vmul.f32 %v3175, %v3188
    %v3198 = vmul.f32 %v3176, %v3188
    %v3199 = vmul.f32 %v3177, %v3188
    %v3200 = vmul.f32 %v3178, %v3188
    %v3201 = vmul.f32 %v3179, %v3188
    %v3202 = vmul.f32 %v3180, %v3188
    %v3203 = vmul.f32 %v3181, %v3188
    %v3204 = vmul.f32 %v3182, %v3188
    %v3205 = vmul.f32 %v3183, %v3188
    %v3207 = vlaneseq
    %v3208 = vshrl.u32 %v3207, 7
    %v3209 = vsub.s32 0, %v3208
    %v3210 = vrot.slane %v2734, %v3209
    %v3212 = vadd.f32 %v3190, %v3210
    %v3213 = vadd.f32 %v3191, %v3210
    %v3214 = vadd.f32 %v3192, %v3210
    %v3215 = vadd.f32 %v3193, %v3210
    %v3216 = vadd.f32 %v3194, %v3210
    %v3217 = vadd.f32 %v3195, %v3210
    %v3218 = vadd.f32 %v3196, %v3210
    %v3219 = vadd.f32 %v3197, %v3210
    %v3220 = vadd.f32 %v3198, %v3210
    %v3221 = vadd.f32 %v3199, %v3210
    %v3222 = vadd.f32 %v3200, %v3210
    %v3223 = vadd.f32 %v3201, %v3210
    %v3224 = vadd.f32 %v3202, %v3210
    %v3225 = vadd.f32 %v3203, %v3210
    %v3226 = vadd.f32 %v3204, %v3210
    %v3227 = vadd.f32 %v3205, %v3210
    %v3228 = vxor.u32 %v3212, 2147483648
    %v3229 = vxor.u32 %v3213, 2147483648
    %v3230 = vxor.u32 %v3214, 2147483648
    %v3231 = vxor.u32 %v3215, 2147483648
    %v3232 = vxor.u32 %v3216, 2147483648
    %v3233 = vxor.u32 %v3217, 2147483648
    %v3234 = vxor.u32 %v3218, 2147483648
    %v3235 = vxor.u32 %v3219, 2147483648
    %v3236 = vxor.u32 %v3220, 2147483648
    %v3237 = vxor.u32 %v3221, 2147483648
    %v3238 = vxor.u32 %v3222, 2147483648
    %v3239 = vxor.u32 %v3223, 2147483648
    %v3240 = vxor.u32 %v3224, 2147483648
    %v3241 = vxor.u32 %v3225, 2147483648
    %v3242 = vxor.u32 %v3226, 2147483648
    %v3243 = vxor.u32 %v3227, 2147483648
    %v3244 = vmul.f32 %v3228, 1.442695
    %v3245 = vpow.pop %v3244
    %v3246 = vmul.f32 %v3229, 1.442695
    %v3247 = vpow.pop %v3246
    %v3248 = vmul.f32 %v3230, 1.442695
    %v3249 = vpow.pop %v3248
    %v3250 = vmul.f32 %v3231, 1.442695
    %v3251 = vpow.pop %v3250
    %v3252 = vmul.f32 %v3232, 1.442695
    %v3253 = vpow.pop %v3252
    %v3254 = vmul.f32 %v3233, 1.442695
    %v3255 = vpow.pop %v3254
    %v3256 = vmul.f32 %v3234, 1.442695
    %v3257 = vpow.pop %v3256
    %v3258 = vmul.f32 %v3235, 1.442695
    %v3259 = vpow.pop %v3258
    %v3260 = vmul.f32 %v3236, 1.442695
    %v3261 = vpow.pop %v3260
    %v3262 = vmul.f32 %v3237, 1.442695
    %v3263 = vpow.pop %v3262
    %v3264 = vmul.f32 %v3238, 1.442695
    %v3265 = vpow.pop %v3264
    %v3266 = vmul.f32 %v3239, 1.442695
    %v3267 = vpow.pop %v3266
    %v3268 = vmul.f32 %v3240, 1.442695
    %v3269 = vpow.pop %v3268
    %v3270 = vmul.f32 %v3241, 1.442695
    %v3271 = vpow.pop %v3270
    %v3272 = vmul.f32 %v3242, 1.442695
    %v3273 = vpow.pop %v3272
    %v3274 = vmul.f32 %v3243, 1.442695
    %v3275 = vpow.pop %v3274
    %v3276 = vadd.f32 %v3245, 1.0
    %v3277 = vadd.f32 %v3247, 1.0
    %v3278 = vadd.f32 %v3249, 1.0
    %v3279 = vadd.f32 %v3251, 1.0
    %v3280 = vadd.f32 %v3253, 1.0
    %v3281 = vadd.f32 %v3255, 1.0
    %v3282 = vadd.f32 %v3257, 1.0
    %v3283 = vadd.f32 %v3259, 1.0
    %v3284 = vadd.f32 %v3261, 1.0
    %v3285 = vadd.f32 %v3263, 1.0
    %v3286 = vadd.f32 %v3265, 1.0
    %v3287 = vadd.f32 %v3267, 1.0
    %v3288 = vadd.f32 %v3269, 1.0
    %v3289 = vadd.f32 %v3271, 1.0
    %v3290 = vadd.f32 %v3273, 1.0
    %v3291 = vadd.f32 %v3275, 1.0
    %v3292 = vrcp.pop %v3276
    %v3293 = vmul.f32 1.0, %v3292
    %v3294 = vrcp.pop %v3277
    %v3295 = vmul.f32 1.0, %v3294
    %v3296 = vrcp.pop %v3278
    %v3297 = vmul.f32 1.0, %v3296
    %v3298 = vrcp.pop %v3279
    %v3299 = vmul.f32 1.0, %v3298
    %v3300 = vrcp.pop %v3280
    %v3301 = vmul.f32 1.0, %v3300
    %v3302 = vrcp.pop %v3281
    %v3303 = vmul.f32 1.0, %v3302
    %v3304 = vrcp.pop %v3282
    %v3305 = vmul.f32 1.0, %v3304
    %v3306 = vrcp.pop %v3283
    %v3307 = vmul.f32 1.0, %v3306
    %v3308 = vrcp.pop %v3284
    %v3309 = vmul.f32 1.0, %v3308
    %v3310 = vrcp.pop %v3285
    %v3311 = vmul.f32 1.0, %v3310
    %v3312 = vrcp.pop %v3286
    %v3313 = vmul.f32 1.0, %v3312
    %v3314 = vrcp.pop %v3287
    %v3315 = vmul.f32 1.0, %v3314
    %v3316 = vrcp.pop %v3288
    %v3317 = vmul.f32 1.0, %v3316
    %v3318 = vrcp.pop %v3289
    %v3319 = vmul.f32 1.0, %v3318
    %v3320 = vrcp.pop %v3290
    %v3321 = vmul.f32 1.0, %v3320
    %v3322 = vrcp.pop %v3291
    %v3323 = vmul.f32 1.0, %v3322
    %v3324 = vmul.f32 %v3212, %v3293
    %v3325 = vmul.f32 %v3213, %v3295
    %v3326 = vmul.f32 %v3214, %v3297
    %v3327 = vmul.f32 %v3215, %v3299
    %v3328 = vmul.f32 %v3216, %v3301
    %v3329 = vmul.f32 %v3217, %v3303
    %v3330 = vmul.f32 %v3218, %v3305
    %v3331 = vmul.f32 %v3219, %v3307
    %v3332 = vmul.f32 %v3220, %v3309
    %v3333 = vmul.f32 %v3221, %v3311
    %v3334 = vmul.f32 %v3222, %v3313
    %v3335 = vmul.f32 %v3223, %v3315
    %v3336 = vmul.f32 %v3224, %v3317
    %v3337 = vmul.f32 %v3225, %v3319
    %v3338 = vmul.f32 %v3226, %v3321
    %v3339 = vmul.f32 %v3227, %v3323
    %v3340 = vpack.c.bf16 %v3325, %v3324
    %v3341 = vpack.c.bf16 %v3327, %v3326
    %v3342 = vpack.c.bf16 %v3329, %v3328
    %v3343 = vpack.c.bf16 %v3331, %v3330
    %v3344 = vpack.c.bf16 %v3333, %v3332
    %v3345 = vpack.c.bf16 %v3335, %v3334
    %v3346 = vpack.c.bf16 %v3337, %v3336
    %v3347 = vpack.c.bf16 %v3339, %v3338
    %3348 = vst [vmem:[#allocation3] sm:$0xf] 0
    %3349 = vst [vmem:[#allocation3 + $0x4] sm:$0x1] 0
    %3350 = vst [vmem:[#allocation3 + $0x50] sm:$0xf] 0
    %3351 = vst [vmem:[#allocation3 + $0x54] sm:$0x1] 0
    %s3352 = scalar_lea.vmem [#allocation3], 72
    %3353 = vst [vmem:[%s3352] sm:$0xf] 0
    %3354 = vst [vmem:[%s3352 + $0x4] sm:$0x1] 0
    %3355 = vst [vmem:[%s3352 + $0x50] sm:$0xf] 0
    %3356 = vst [vmem:[%s3352 + $0x54] sm:$0x1] 0
    %v3357 = vld [vmem:[#allocation3] sm:$0x1]
    %v3358 = vsel %vm749, 0, %v3357
    %3359 = vst [vmem:[#allocation3] sm:$0x1] %v3358
    %v3360 = vld [vmem:[#allocation3 + $0x8] sm:$0x1]
    %v3361 = vsel %vm749, 0, %v3360
    %3362 = vst [vmem:[#allocation3 + $0x8] sm:$0x1] %v3361
    %v3363 = vld [vmem:[#allocation3 + $0x10] sm:$0x1]
    %v3364 = vsel %vm749, 0, %v3363
    %3365 = vst [vmem:[#allocation3 + $0x10] sm:$0x1] %v3364
    %v3366 = vld [vmem:[#allocation3 + $0x18] sm:$0x1]
    %v3367 = vsel %vm749, 0, %v3366
    %3368 = vst [vmem:[#allocation3 + $0x18] sm:$0x1] %v3367
    %v3369 = vld [vmem:[#allocation3 + $0x20] sm:$0x1]
    %v3370 = vsel %vm749, 0, %v3369
    %3371 = vst [vmem:[#allocation3 + $0x20] sm:$0x1] %v3370
    %v3372 = vld [vmem:[#allocation3 + $0x28] sm:$0x1]
    %v3373 = vsel %vm749, 0, %v3372
    %3374 = vst [vmem:[#allocation3 + $0x28] sm:$0x1] %v3373
    %v3375 = vld [vmem:[#allocation3 + $0x30] sm:$0x1]
    %v3376 = vsel %vm749, 0, %v3375
    %3377 = vst [vmem:[#allocation3 + $0x30] sm:$0x1] %v3376
    %v3378 = vld [vmem:[#allocation3 + $0x38] sm:$0x1]
    %v3379 = vsel %vm749, 0, %v3378
    %3380 = vst [vmem:[#allocation3 + $0x38] sm:$0x1] %v3379
    %v3381 = vld [vmem:[#allocation3 + $0x40] sm:$0x1]
    %v3382 = vsel %vm749, 0, %v3381
    %3383 = vst [vmem:[#allocation3 + $0x40] sm:$0x1] %v3382
    %v3384 = vld [vmem:[#allocation3 + $0x48] sm:$0x1]
    %v3385 = vsel %vm749, 0, %v3384
    %3386 = vst [vmem:[#allocation3 + $0x48] sm:$0x1] %v3385
    %v3387 = vld [vmem:[#allocation3 + $0x50] sm:$0x1]
    %v3388 = vsel %vm749, 0, %v3387
    %3389 = vst [vmem:[#allocation3 + $0x50] sm:$0x1] %v3388
    %v3390 = vld [vmem:[#allocation3 + $0x58] sm:$0x1]
    %v3391 = vsel %vm749, 0, %v3390
    %3392 = vst [vmem:[#allocation3 + $0x58] sm:$0x1] %v3391
    %v3393 = vld [vmem:[#allocation3 + $0x60] sm:$0x1]
    %v3394 = vsel %vm749, 0, %v3393
    %3395 = vst [vmem:[#allocation3 + $0x60] sm:$0x1] %v3394
    %v3396 = vld [vmem:[#allocation3 + $0x68] sm:$0x1]
    %v3397 = vsel %vm749, 0, %v3396
    %3398 = vst [vmem:[#allocation3 + $0x68] sm:$0x1] %v3397
    %v3399 = vld [vmem:[#allocation3 + $0x70] sm:$0x1]
    %v3400 = vsel %vm749, 0, %v3399
    %3401 = vst [vmem:[#allocation3 + $0x70] sm:$0x1] %v3400
    %v3402 = vld [vmem:[#allocation3 + $0x78] sm:$0x1]
    %v3403 = vsel %vm749, 0, %v3402
    %3404 = vst [vmem:[#allocation3 + $0x78] sm:$0x1] %v3403
    %v3405 = vld [vmem:[#allocation3 + $0x80] sm:$0x1]
    %v3406 = vsel %vm749, 0, %v3405
    %3407 = vst [vmem:[#allocation3 + $0x80] sm:$0x1] %v3406
    %v3408 = vld [vmem:[#allocation3 + $0x88] sm:$0x1]
    %v3409 = vsel %vm749, 0, %v3408
    %3410 = vst [vmem:[#allocation3 + $0x88] sm:$0x1] %v3409
    %v3411 = vld [vmem:[#allocation3 + $0x90] sm:$0x1]
    %v3412 = vsel %vm749, 0, %v3411
    %3413 = vst [vmem:[#allocation3 + $0x90] sm:$0x1] %v3412
    %v3414 = vld [vmem:[#allocation3 + $0x98] sm:$0x1]
    %v3415 = vsel %vm749, 0, %v3414
    %3416 = vst [vmem:[#allocation3 + $0x98] sm:$0x1] %v3415
    %v3417 = vld [vmem:[#allocation3 + $0x4] sm:$0x1]
    %v3418 = vsel %vm811, 0, %v3417
    %3419 = vst [vmem:[#allocation3 + $0x4] sm:$0x1] %v3418
    %v3420 = vld [vmem:[#allocation3 + $0xc] sm:$0x1]
    %v3421 = vsel %vm811, 0, %v3420
    %3422 = vst [vmem:[#allocation3 + $0xc] sm:$0x1] %v3421
    %v3423 = vld [vmem:[#allocation3 + $0x14] sm:$0x1]
    %v3424 = vsel %vm811, 0, %v3423
    %3425 = vst [vmem:[#allocation3 + $0x14] sm:$0x1] %v3424
    %v3426 = vld [vmem:[#allocation3 + $0x1c] sm:$0x1]
    %v3427 = vsel %vm811, 0, %v3426
    %3428 = vst [vmem:[#allocation3 + $0x1c] sm:$0x1] %v3427
    %v3429 = vld [vmem:[#allocation3 + $0x24] sm:$0x1]
    %v3430 = vsel %vm811, 0, %v3429
    %3431 = vst [vmem:[#allocation3 + $0x24] sm:$0x1] %v3430
    %v3432 = vld [vmem:[#allocation3 + $0x2c] sm:$0x1]
    %v3433 = vsel %vm811, 0, %v3432
    %3434 = vst [vmem:[#allocation3 + $0x2c] sm:$0x1] %v3433
    %v3435 = vld [vmem:[#allocation3 + $0x34] sm:$0x1]
    %v3436 = vsel %vm811, 0, %v3435
    %3437 = vst [vmem:[#allocation3 + $0x34] sm:$0x1] %v3436
    %v3438 = vld [vmem:[#allocation3 + $0x3c] sm:$0x1]
    %v3439 = vsel %vm811, 0, %v3438
    %3440 = vst [vmem:[#allocation3 + $0x3c] sm:$0x1] %v3439
    %v3441 = vld [vmem:[#allocation3 + $0x44] sm:$0x1]
    %v3442 = vsel %vm811, 0, %v3441
    %3443 = vst [vmem:[#allocation3 + $0x44] sm:$0x1] %v3442
    %v3444 = vld [vmem:[#allocation3 + $0x4c] sm:$0x1]
    %v3445 = vsel %vm811, 0, %v3444
    %3446 = vst [vmem:[#allocation3 + $0x4c] sm:$0x1] %v3445
    %v3447 = vld [vmem:[#allocation3 + $0x54] sm:$0x1]
    %v3448 = vsel %vm811, 0, %v3447
    %3449 = vst [vmem:[#allocation3 + $0x54] sm:$0x1] %v3448
    %v3450 = vld [vmem:[#allocation3 + $0x5c] sm:$0x1]
    %v3451 = vsel %vm811, 0, %v3450
    %3452 = vst [vmem:[#allocation3 + $0x5c] sm:$0x1] %v3451
    %v3453 = vld [vmem:[#allocation3 + $0x64] sm:$0x1]
    %v3454 = vsel %vm811, 0, %v3453
    %3455 = vst [vmem:[#allocation3 + $0x64] sm:$0x1] %v3454
    %v3456 = vld [vmem:[#allocation3 + $0x6c] sm:$0x1]
    %v3457 = vsel %vm811, 0, %v3456
    %3458 = vst [vmem:[#allocation3 + $0x6c] sm:$0x1] %v3457
    %v3459 = vld [vmem:[#allocation3 + $0x74] sm:$0x1]
    %v3460 = vsel %vm811, 0, %v3459
    %3461 = vst [vmem:[#allocation3 + $0x74] sm:$0x1] %v3460
    %v3462 = vld [vmem:[#allocation3 + $0x7c] sm:$0x1]
    %v3463 = vsel %vm811, 0, %v3462
    %3464 = vst [vmem:[#allocation3 + $0x7c] sm:$0x1] %v3463
    %v3465 = vld [vmem:[#allocation3 + $0x84] sm:$0x1]
    %v3466 = vsel %vm811, 0, %v3465
    %3467 = vst [vmem:[#allocation3 + $0x84] sm:$0x1] %v3466
    %v3468 = vld [vmem:[#allocation3 + $0x8c] sm:$0x1]
    %v3469 = vsel %vm811, 0, %v3468
    %3470 = vst [vmem:[#allocation3 + $0x8c] sm:$0x1] %v3469
    %v3471 = vld [vmem:[#allocation3 + $0x94] sm:$0x1]
    %v3472 = vsel %vm811, 0, %v3471
    %3473 = vst [vmem:[#allocation3 + $0x94] sm:$0x1] %v3472
    %v3474 = vld [vmem:[#allocation3 + $0x9c] sm:$0x1]
    %v3475 = vsel %vm811, 0, %v3474
    %3476 = vst [vmem:[#allocation3 + $0x9c] sm:$0x1] %v3475
    %v3485 = vunpack.c.l.b16 %v3340
    %v3486 = vunpack.c.h.b16 %v3340
    %v3487 = vunpack.c.l.b16 %v3341
    %v3488 = vunpack.c.h.b16 %v3341
    %v3489 = vunpack.c.l.b16 %v3342
    %v3490 = vunpack.c.h.b16 %v3342
    %v3491 = vunpack.c.l.b16 %v3343
    %v3492 = vunpack.c.h.b16 %v3343
    %v3493 = vunpack.c.l.b16 %v3344
    %v3494 = vunpack.c.h.b16 %v3344
    %v3495 = vunpack.c.l.b16 %v3345
    %v3496 = vunpack.c.h.b16 %v3345
    %v3497 = vunpack.c.l.b16 %v3346
    %v3498 = vunpack.c.h.b16 %v3346
    %v3499 = vunpack.c.l.b16 %v3347
    %v3500 = vunpack.c.h.b16 %v3347
    %v3501 = vpack.c.b16 %v3485, %v3485
    %v3502 = vpack.c.b16 %v3486, %v3486
    %v3503 = vpack.c.b16 %v3487, %v3487
    %v3504 = vpack.c.b16 %v3488, %v3488
    %v3505 = vpack.c.b16 %v3489, %v3489
    %v3506 = vpack.c.b16 %v3490, %v3490
    %v3507 = vpack.c.b16 %v3491, %v3491
    %v3508 = vpack.c.b16 %v3492, %v3492
    %v3509 = vpack.c.b16 %v3493, %v3493
    %v3510 = vpack.c.b16 %v3494, %v3494
    %v3511 = vpack.c.b16 %v3495, %v3495
    %v3512 = vpack.c.b16 %v3496, %v3496
    %v3513 = vpack.c.b16 %v3497, %v3497
    %v3514 = vpack.c.b16 %v3498, %v3498
    %v3515 = vpack.c.b16 %v3499, %v3499
    %v3516 = vpack.c.b16 %v3500, %v3500
    %v3518 = vshrl.u32 %v3501, 16
    %v3520 = vrot.slane %v3518, 7
    %v3521 = vshll.u32 %v3501, 16
    %v3523 = vor.u32 %v3520, %v3521
    %v3524 = vrot.slane %v3520, 4
    %v3526 = vshrl.u32 %v3502, 16
    %v3528 = vrot.slane %v3526, 7
    %v3529 = vshll.u32 %v3502, 16
    %v3531 = vor.u32 %v3528, %v3529
    %v3532 = vrot.slane %v3528, 4
    %v3534 = vshrl.u32 %v3503, 16
    %v3536 = vrot.slane %v3534, 7
    %v3537 = vshll.u32 %v3503, 16
    %v3539 = vor.u32 %v3536, %v3537
    %v3540 = vrot.slane %v3536, 4
    %v3542 = vshrl.u32 %v3504, 16
    %v3544 = vrot.slane %v3542, 7
    %v3545 = vshll.u32 %v3504, 16
    %v3547 = vor.u32 %v3544, %v3545
    %v3548 = vrot.slane %v3544, 4
    %v3550 = vshrl.u32 %v3505, 16
    %v3552 = vrot.slane %v3550, 7
    %v3553 = vshll.u32 %v3505, 16
    %v3555 = vor.u32 %v3552, %v3553
    %v3556 = vrot.slane %v3552, 4
    %v3558 = vshrl.u32 %v3506, 16
    %v3560 = vrot.slane %v3558, 7
    %v3561 = vshll.u32 %v3506, 16
    %v3563 = vor.u32 %v3560, %v3561
    %v3564 = vrot.slane %v3560, 4
    %v3566 = vshrl.u32 %v3507, 16
    %v3568 = vrot.slane %v3566, 7
    %v3569 = vshll.u32 %v3507, 16
    %v3571 = vor.u32 %v3568, %v3569
    %v3572 = vrot.slane %v3568, 4
    %v3574 = vshrl.u32 %v3508, 16
    %v3576 = vrot.slane %v3574, 7
    %v3577 = vshll.u32 %v3508, 16
    %v3579 = vor.u32 %v3576, %v3577
    %v3580 = vrot.slane %v3576, 4
    %v3582 = vshrl.u32 %v3509, 16
    %v3584 = vrot.slane %v3582, 7
    %v3585 = vshll.u32 %v3509, 16
    %v3587 = vor.u32 %v3584, %v3585
    %v3588 = vrot.slane %v3584, 4
    %v3590 = vshrl.u32 %v3510, 16
    %v3592 = vrot.slane %v3590, 7
    %v3593 = vshll.u32 %v3510, 16
    %v3595 = vor.u32 %v3592, %v3593
    %v3596 = vrot.slane %v3592, 4
    %v3598 = vshrl.u32 %v3511, 16
    %v3600 = vrot.slane %v3598, 7
    %v3601 = vshll.u32 %v3511, 16
    %v3603 = vor.u32 %v3600, %v3601
    %v3604 = vrot.slane %v3600, 4
    %v3606 = vshrl.u32 %v3512, 16
    %v3608 = vrot.slane %v3606, 7
    %v3609 = vshll.u32 %v3512, 16
    %v3611 = vor.u32 %v3608, %v3609
    %v3612 = vrot.slane %v3608, 4
    %v3614 = vshrl.u32 %v3513, 16
    %v3616 = vrot.slane %v3614, 7
    %v3617 = vshll.u32 %v3513, 16
    %v3619 = vor.u32 %v3616, %v3617
    %v3620 = vrot.slane %v3616, 4
    %v3622 = vshrl.u32 %v3514, 16
    %v3624 = vrot.slane %v3622, 7
    %v3625 = vshll.u32 %v3514, 16
    %v3627 = vor.u32 %v3624, %v3625
    %v3628 = vrot.slane %v3624, 4
    %v3630 = vshrl.u32 %v3515, 16
    %v3632 = vrot.slane %v3630, 7
    %v3633 = vshll.u32 %v3515, 16
    %v3635 = vor.u32 %v3632, %v3633
    %v3636 = vrot.slane %v3632, 4
    %v3638 = vshrl.u32 %v3516, 16
    %v3640 = vrot.slane %v3638, 7
    %v3641 = vshll.u32 %v3516, 16
    %v3643 = vor.u32 %v3640, %v3641
    %v3644 = vrot.slane %v3640, 4
    %s3677 = scalar_lea.vmem [#allocation3], 8
    %v3678 = vld [vmem:[%s3677] sm:$0xf]
    %v3679 = vsel %vm1074, %v3523, %v3678
    %3680 = vst [vmem:[%s3677] sm:$0xf] %v3679
    %v3681 = vld [vmem:[%s3677 + $0x4] sm:$0x1]
    %v3682 = vsel %vm749, %v3524, %v3681
    %3683 = vst [vmem:[%s3677 + $0x4] sm:$0x1] %v3682
    %v3684 = vld [vmem:[%s3677 + $0x8] sm:$0xf]
    %v3685 = vsel %vm1074, %v3531, %v3684
    %3686 = vst [vmem:[%s3677 + $0x8] sm:$0xf] %v3685
    %v3687 = vld [vmem:[%s3677 + $0xc] sm:$0x1]
    %v3688 = vsel %vm749, %v3532, %v3687
    %3689 = vst [vmem:[%s3677 + $0xc] sm:$0x1] %v3688
    %v3690 = vld [vmem:[%s3677 + $0x10] sm:$0xf]
    %v3691 = vsel %vm1074, %v3539, %v3690
    %3692 = vst [vmem:[%s3677 + $0x10] sm:$0xf] %v3691
    %v3693 = vld [vmem:[%s3677 + $0x14] sm:$0x1]
    %v3694 = vsel %vm749, %v3540, %v3693
    %3695 = vst [vmem:[%s3677 + $0x14] sm:$0x1] %v3694
    %v3696 = vld [vmem:[%s3677 + $0x18] sm:$0xf]
    %v3697 = vsel %vm1074, %v3547, %v3696
    %3698 = vst [vmem:[%s3677 + $0x18] sm:$0xf] %v3697
    %v3699 = vld [vmem:[%s3677 + $0x1c] sm:$0x1]
    %v3700 = vsel %vm749, %v3548, %v3699
    %3701 = vst [vmem:[%s3677 + $0x1c] sm:$0x1] %v3700
    %v3702 = vld [vmem:[%s3677 + $0x20] sm:$0xf]
    %v3703 = vsel %vm1074, %v3555, %v3702
    %3704 = vst [vmem:[%s3677 + $0x20] sm:$0xf] %v3703
    %v3705 = vld [vmem:[%s3677 + $0x24] sm:$0x1]
    %v3706 = vsel %vm749, %v3556, %v3705
    %3707 = vst [vmem:[%s3677 + $0x24] sm:$0x1] %v3706
    %v3708 = vld [vmem:[%s3677 + $0x28] sm:$0xf]
    %v3709 = vsel %vm1074, %v3563, %v3708
    %3710 = vst [vmem:[%s3677 + $0x28] sm:$0xf] %v3709
    %v3711 = vld [vmem:[%s3677 + $0x2c] sm:$0x1]
    %v3712 = vsel %vm749, %v3564, %v3711
    %3713 = vst [vmem:[%s3677 + $0x2c] sm:$0x1] %v3712
    %v3714 = vld [vmem:[%s3677 + $0x30] sm:$0xf]
    %v3715 = vsel %vm1074, %v3571, %v3714
    %3716 = vst [vmem:[%s3677 + $0x30] sm:$0xf] %v3715
    %v3717 = vld [vmem:[%s3677 + $0x34] sm:$0x1]
    %v3718 = vsel %vm749, %v3572, %v3717
    %3719 = vst [vmem:[%s3677 + $0x34] sm:$0x1] %v3718
    %v3720 = vld [vmem:[%s3677 + $0x38] sm:$0xf]
    %v3721 = vsel %vm1074, %v3579, %v3720
    %3722 = vst [vmem:[%s3677 + $0x38] sm:$0xf] %v3721
    %v3723 = vld [vmem:[%s3677 + $0x3c] sm:$0x1]
    %v3724 = vsel %vm749, %v3580, %v3723
    %3725 = vst [vmem:[%s3677 + $0x3c] sm:$0x1] %v3724
    %v3726 = vld [vmem:[%s3677 + $0x50] sm:$0xf]
    %v3727 = vsel %vm1074, %v3587, %v3726
    %3728 = vst [vmem:[%s3677 + $0x50] sm:$0xf] %v3727
    %v3729 = vld [vmem:[%s3677 + $0x54] sm:$0x1]
    %v3730 = vsel %vm749, %v3588, %v3729
    %3731 = vst [vmem:[%s3677 + $0x54] sm:$0x1] %v3730
    %v3732 = vld [vmem:[%s3677 + $0x58] sm:$0xf]
    %v3733 = vsel %vm1074, %v3595, %v3732
    %3734 = vst [vmem:[%s3677 + $0x58] sm:$0xf] %v3733
    %v3735 = vld [vmem:[%s3677 + $0x5c] sm:$0x1]
    %v3736 = vsel %vm749, %v3596, %v3735
    %3737 = vst [vmem:[%s3677 + $0x5c] sm:$0x1] %v3736
    %v3738 = vld [vmem:[%s3677 + $0x60] sm:$0xf]
    %v3739 = vsel %vm1074, %v3603, %v3738
    %3740 = vst [vmem:[%s3677 + $0x60] sm:$0xf] %v3739
    %v3741 = vld [vmem:[%s3677 + $0x64] sm:$0x1]
    %v3742 = vsel %vm749, %v3604, %v3741
    %3743 = vst [vmem:[%s3677 + $0x64] sm:$0x1] %v3742
    %v3744 = vld [vmem:[%s3677 + $0x68] sm:$0xf]
    %v3745 = vsel %vm1074, %v3611, %v3744
    %3746 = vst [vmem:[%s3677 + $0x68] sm:$0xf] %v3745
    %v3747 = vld [vmem:[%s3677 + $0x6c] sm:$0x1]
    %v3748 = vsel %vm749, %v3612, %v3747
    %3749 = vst [vmem:[%s3677 + $0x6c] sm:$0x1] %v3748
    %v3750 = vld [vmem:[%s3677 + $0x70] sm:$0xf]
    %v3751 = vsel %vm1074, %v3619, %v3750
    %3752 = vst [vmem:[%s3677 + $0x70] sm:$0xf] %v3751
    %v3753 = vld [vmem:[%s3677 + $0x74] sm:$0x1]
    %v3754 = vsel %vm749, %v3620, %v3753
    %3755 = vst [vmem:[%s3677 + $0x74] sm:$0x1] %v3754
    %v3756 = vld [vmem:[%s3677 + $0x78] sm:$0xf]
    %v3757 = vsel %vm1074, %v3627, %v3756
    %3758 = vst [vmem:[%s3677 + $0x78] sm:$0xf] %v3757
    %v3759 = vld [vmem:[%s3677 + $0x7c] sm:$0x1]
    %v3760 = vsel %vm749, %v3628, %v3759
    %3761 = vst [vmem:[%s3677 + $0x7c] sm:$0x1] %v3760
    %v3762 = vld [vmem:[%s3677 + $0x80] sm:$0xf]
    %v3763 = vsel %vm1074, %v3635, %v3762
    %3764 = vst [vmem:[%s3677 + $0x80] sm:$0xf] %v3763
    %v3765 = vld [vmem:[%s3677 + $0x84] sm:$0x1]
    %v3766 = vsel %vm749, %v3636, %v3765
    %3767 = vst [vmem:[%s3677 + $0x84] sm:$0x1] %v3766
    %v3768 = vld [vmem:[%s3677 + $0x88] sm:$0xf]
    %v3769 = vsel %vm1074, %v3643, %v3768
    %3770 = vst [vmem:[%s3677 + $0x88] sm:$0xf] %v3769
    %v3771 = vld [vmem:[%s3677 + $0x8c] sm:$0x1]
    %v3772 = vsel %vm749, %v3644, %v3771
    %3773 = vst [vmem:[%s3677 + $0x8c] sm:$0x1] %v3772
    %v3774 = vld [vmem:[#allocation3] sm:$0xf]
    %v3775 = vld [vmem:[#allocation3 + $0x4] sm:$0x1]
    %v3776 = vld [vmem:[#allocation3 + $0x8] sm:$0xf]
    %v3777 = vld [vmem:[#allocation3 + $0xc] sm:$0x1]
    %v3778 = vld [vmem:[#allocation3 + $0x10] sm:$0xf]
    %v3779 = vld [vmem:[#allocation3 + $0x14] sm:$0x1]
    %v3780 = vld [vmem:[#allocation3 + $0x18] sm:$0xf]
    %v3781 = vld [vmem:[#allocation3 + $0x1c] sm:$0x1]
    %v3782 = vld [vmem:[#allocation3 + $0x20] sm:$0xf]
    %v3783 = vld [vmem:[#allocation3 + $0x24] sm:$0x1]
    %v3784 = vld [vmem:[#allocation3 + $0x28] sm:$0xf]
    %v3785 = vld [vmem:[#allocation3 + $0x2c] sm:$0x1]
    %v3786 = vld [vmem:[#allocation3 + $0x30] sm:$0xf]
    %v3787 = vld [vmem:[#allocation3 + $0x34] sm:$0x1]
    %v3788 = vld [vmem:[#allocation3 + $0x38] sm:$0xf]
    %v3789 = vld [vmem:[#allocation3 + $0x3c] sm:$0x1]
    %v3790 = vld [vmem:[#allocation3 + $0x40] sm:$0xf]
    %v3791 = vld [vmem:[#allocation3 + $0x44] sm:$0x1]
    %v3792 = vld [vmem:[#allocation3 + $0x48] sm:$0xf]
    %v3793 = vld [vmem:[#allocation3 + $0x4c] sm:$0x1]
    %v3794 = vld [vmem:[#allocation3 + $0x50] sm:$0xf]
    %v3795 = vld [vmem:[#allocation3 + $0x54] sm:$0x1]
    %v3796 = vld [vmem:[#allocation3 + $0x58] sm:$0xf]
    %v3797 = vld [vmem:[#allocation3 + $0x5c] sm:$0x1]
    %v3798 = vld [vmem:[#allocation3 + $0x60] sm:$0xf]
    %v3799 = vld [vmem:[#allocation3 + $0x64] sm:$0x1]
    %v3800 = vld [vmem:[#allocation3 + $0x68] sm:$0xf]
    %v3801 = vld [vmem:[#allocation3 + $0x6c] sm:$0x1]
    %v3802 = vld [vmem:[#allocation3 + $0x70] sm:$0xf]
    %v3803 = vld [vmem:[#allocation3 + $0x74] sm:$0x1]
    %v3804 = vld [vmem:[#allocation3 + $0x78] sm:$0xf]
    %v3805 = vld [vmem:[#allocation3 + $0x7c] sm:$0x1]
    %v3806 = vld [vmem:[#allocation3 + $0x80] sm:$0xf]
    %v3807 = vld [vmem:[#allocation3 + $0x84] sm:$0x1]
    %v3808 = vld [vmem:[#allocation3 + $0x88] sm:$0xf]
    %v3809 = vld [vmem:[#allocation3 + $0x8c] sm:$0x1]
    %v3810 = vld [vmem:[#allocation3 + $0x90] sm:$0xf]
    %v3811 = vld [vmem:[#allocation3 + $0x94] sm:$0x1]
    %v3812 = vld [vmem:[#allocation3 + $0x98] sm:$0xf]
    %v3813 = vld [vmem:[#allocation3 + $0x9c] sm:$0x1]
    %v3854 = vunpack.c.l.b16 %v3774
    %v3855 = vunpack.c.l.b16 %v3775
    %v3856 = vunpack.c.l.b16 %v3776
    %v3857 = vunpack.c.l.b16 %v3777
    %v3858 = vunpack.c.l.b16 %v3778
    %v3859 = vunpack.c.l.b16 %v3779
    %v3860 = vunpack.c.l.b16 %v3780
    %v3861 = vunpack.c.l.b16 %v3781
    %v3862 = vunpack.c.l.b16 %v3782
    %v3863 = vunpack.c.l.b16 %v3783
    %v3864 = vunpack.c.l.b16 %v3784
    %v3865 = vunpack.c.l.b16 %v3785
    %v3866 = vunpack.c.l.b16 %v3786
    %v3867 = vunpack.c.l.b16 %v3787
    %v3868 = vunpack.c.l.b16 %v3788
    %v3869 = vunpack.c.l.b16 %v3789
    %v3870 = vunpack.c.l.b16 %v3790
    %v3871 = vunpack.c.l.b16 %v3791
    %v3872 = vunpack.c.l.b16 %v3792
    %v3873 = vunpack.c.l.b16 %v3793
    %v3874 = vunpack.c.l.b16 %v3794
    %v3875 = vunpack.c.l.b16 %v3795
    %v3876 = vunpack.c.l.b16 %v3796
    %v3877 = vunpack.c.l.b16 %v3797
    %v3878 = vunpack.c.l.b16 %v3798
    %v3879 = vunpack.c.l.b16 %v3799
    %v3880 = vunpack.c.l.b16 %v3800
    %v3881 = vunpack.c.l.b16 %v3801
    %v3882 = vunpack.c.l.b16 %v3802
    %v3883 = vunpack.c.l.b16 %v3803
    %v3884 = vunpack.c.l.b16 %v3804
    %v3885 = vunpack.c.l.b16 %v3805
    %v3886 = vunpack.c.l.b16 %v3806
    %v3887 = vunpack.c.l.b16 %v3807
    %v3888 = vunpack.c.l.b16 %v3808
    %v3889 = vunpack.c.l.b16 %v3809
    %v3890 = vunpack.c.l.b16 %v3810
    %v3891 = vunpack.c.l.b16 %v3811
    %v3892 = vunpack.c.l.b16 %v3812
    %v3893 = vunpack.c.l.b16 %v3813
    %v3894 = vpack.c.b16 %v3855, %v3854
    %v3895 = vpack.c.b16 %v3857, %v3856
    %v3896 = vpack.c.b16 %v3859, %v3858
    %v3897 = vpack.c.b16 %v3861, %v3860
    %v3898 = vpack.c.b16 %v3863, %v3862
    %v3899 = vpack.c.b16 %v3865, %v3864
    %v3900 = vpack.c.b16 %v3867, %v3866
    %v3901 = vpack.c.b16 %v3869, %v3868
    %v3902 = vpack.c.b16 %v3871, %v3870
    %v3903 = vpack.c.b16 %v3873, %v3872
    %v3904 = vpack.c.b16 %v3875, %v3874
    %v3905 = vpack.c.b16 %v3877, %v3876
    %v3906 = vpack.c.b16 %v3879, %v3878
    %v3907 = vpack.c.b16 %v3881, %v3880
    %v3908 = vpack.c.b16 %v3883, %v3882
    %v3909 = vpack.c.b16 %v3885, %v3884
    %v3910 = vpack.c.b16 %v3887, %v3886
    %v3911 = vpack.c.b16 %v3889, %v3888
    %v3912 = vpack.c.b16 %v3891, %v3890
    %v3913 = vpack.c.b16 %v3893, %v3892
    %v3915 = vshrl.u32 %v3894, 16
    %v3917 = vshll.u32 %v3894, 16
    %v3919 = vrot.slane %v3917, 1
    %v3920 = vor.u32 %v3915, %v3919
    %v3922 = vshrl.u32 %v3895, 16
    %v3924 = vshll.u32 %v3895, 16
    %v3926 = vrot.slane %v3924, 1
    %v3927 = vor.u32 %v3922, %v3926
    %v3929 = vshrl.u32 %v3896, 16
    %v3931 = vshll.u32 %v3896, 16
    %v3933 = vrot.slane %v3931, 1
    %v3934 = vor.u32 %v3929, %v3933
    %v3936 = vshrl.u32 %v3897, 16
    %v3938 = vshll.u32 %v3897, 16
    %v3940 = vrot.slane %v3938, 1
    %v3941 = vor.u32 %v3936, %v3940
    %v3943 = vshrl.u32 %v3898, 16
    %v3945 = vshll.u32 %v3898, 16
    %v3947 = vrot.slane %v3945, 1
    %v3948 = vor.u32 %v3943, %v3947
    %v3950 = vshrl.u32 %v3899, 16
    %v3952 = vshll.u32 %v3899, 16
    %v3954 = vrot.slane %v3952, 1
    %v3955 = vor.u32 %v3950, %v3954
    %v3957 = vshrl.u32 %v3900, 16
    %v3959 = vshll.u32 %v3900, 16
    %v3961 = vrot.slane %v3959, 1
    %v3962 = vor.u32 %v3957, %v3961
    %v3964 = vshrl.u32 %v3901, 16
    %v3966 = vshll.u32 %v3901, 16
    %v3968 = vrot.slane %v3966, 1
    %v3969 = vor.u32 %v3964, %v3968
    %v3971 = vshrl.u32 %v3902, 16
    %v3973 = vshll.u32 %v3902, 16
    %v3975 = vrot.slane %v3973, 1
    %v3976 = vor.u32 %v3971, %v3975
    %v3978 = vshrl.u32 %v3903, 16
    %v3980 = vshll.u32 %v3903, 16
    %v3982 = vrot.slane %v3980, 1
    %v3983 = vor.u32 %v3978, %v3982
    %v3985 = vshrl.u32 %v3904, 16
    %v3987 = vshll.u32 %v3904, 16
    %v3989 = vrot.slane %v3987, 1
    %v3990 = vor.u32 %v3985, %v3989
    %v3992 = vshrl.u32 %v3905, 16
    %v3994 = vshll.u32 %v3905, 16
    %v3996 = vrot.slane %v3994, 1
    %v3997 = vor.u32 %v3992, %v3996
    %v3999 = vshrl.u32 %v3906, 16
    %v4001 = vshll.u32 %v3906, 16
    %v4003 = vrot.slane %v4001, 1
    %v4004 = vor.u32 %v3999, %v4003
    %v4006 = vshrl.u32 %v3907, 16
    %v4008 = vshll.u32 %v3907, 16
    %v4010 = vrot.slane %v4008, 1
    %v4011 = vor.u32 %v4006, %v4010
    %v4013 = vshrl.u32 %v3908, 16
    %v4015 = vshll.u32 %v3908, 16
    %v4017 = vrot.slane %v4015, 1
    %v4018 = vor.u32 %v4013, %v4017
    %v4020 = vshrl.u32 %v3909, 16
    %v4022 = vshll.u32 %v3909, 16
    %v4024 = vrot.slane %v4022, 1
    %v4025 = vor.u32 %v4020, %v4024
    %v4027 = vshrl.u32 %v3910, 16
    %v4029 = vshll.u32 %v3910, 16
    %v4031 = vrot.slane %v4029, 1
    %v4032 = vor.u32 %v4027, %v4031
    %v4034 = vshrl.u32 %v3911, 16
    %v4036 = vshll.u32 %v3911, 16
    %v4038 = vrot.slane %v4036, 1
    %v4039 = vor.u32 %v4034, %v4038
    %v4041 = vshrl.u32 %v3912, 16
    %v4043 = vshll.u32 %v3912, 16
    %v4045 = vrot.slane %v4043, 1
    %v4046 = vor.u32 %v4041, %v4045
    %v4048 = vshrl.u32 %v3913, 16
    %v4050 = vshll.u32 %v3913, 16
    %v4052 = vrot.slane %v4050, 1
    %v4053 = vor.u32 %v4048, %v4052
    %v4054 = vrot.slane %v3894, 1
    %v4055 = vrot.slane %v3895, 1
    %v4056 = vrot.slane %v3896, 1
    %v4057 = vrot.slane %v3897, 1
    %v4058 = vrot.slane %v3898, 1
    %v4059 = vrot.slane %v3899, 1
    %v4060 = vrot.slane %v3900, 1
    %v4061 = vrot.slane %v3901, 1
    %v4062 = vrot.slane %v3902, 1
    %v4063 = vrot.slane %v3903, 1
    %v4064 = vrot.slane %v3904, 1
    %v4065 = vrot.slane %v3905, 1
    %v4066 = vrot.slane %v3906, 1
    %v4067 = vrot.slane %v3907, 1
    %v4068 = vrot.slane %v3908, 1
    %v4069 = vrot.slane %v3909, 1
    %v4070 = vrot.slane %v3910, 1
    %v4071 = vrot.slane %v3911, 1
    %v4072 = vrot.slane %v3912, 1
    %v4073 = vrot.slane %v3913, 1
    %v4074 = vunpack.c.l.b16 %v3920
    %v4075 = vunpack.c.l.b16 %v4054
    %v4076 = vunpack.c.l.b16 %v3927
    %v4077 = vunpack.c.l.b16 %v4055
    %v4078 = vunpack.c.l.b16 %v3934
    %v4079 = vunpack.c.l.b16 %v4056
    %v4080 = vunpack.c.l.b16 %v3941
    %v4081 = vunpack.c.l.b16 %v4057
    %v4082 = vunpack.c.l.b16 %v3948
    %v4083 = vunpack.c.l.b16 %v4058
    %v4084 = vunpack.c.l.b16 %v3955
    %v4085 = vunpack.c.l.b16 %v4059
    %v4086 = vunpack.c.l.b16 %v3962
    %v4087 = vunpack.c.l.b16 %v4060
    %v4088 = vunpack.c.l.b16 %v3969
    %v4089 = vunpack.c.l.b16 %v4061
    %v4090 = vunpack.c.l.b16 %v3976
    %v4091 = vunpack.c.l.b16 %v4062
    %v4092 = vunpack.c.l.b16 %v3983
    %v4093 = vunpack.c.l.b16 %v4063
    %v4094 = vunpack.c.l.b16 %v3990
    %v4095 = vunpack.c.l.b16 %v4064
    %v4096 = vunpack.c.l.b16 %v3997
    %v4097 = vunpack.c.l.b16 %v4065
    %v4098 = vunpack.c.l.b16 %v4004
    %v4099 = vunpack.c.l.b16 %v4066
    %v4100 = vunpack.c.l.b16 %v4011
    %v4101 = vunpack.c.l.b16 %v4067
    %v4102 = vunpack.c.l.b16 %v4018
    %v4103 = vunpack.c.l.b16 %v4068
    %v4104 = vunpack.c.l.b16 %v4025
    %v4105 = vunpack.c.l.b16 %v4069
    %v4106 = vunpack.c.l.b16 %v4032
    %v4107 = vunpack.c.l.b16 %v4070
    %v4108 = vunpack.c.l.b16 %v4039
    %v4109 = vunpack.c.l.b16 %v4071
    %v4110 = vunpack.c.l.b16 %v4046
    %v4111 = vunpack.c.l.b16 %v4072
    %v4112 = vunpack.c.l.b16 %v4053
    %v4113 = vunpack.c.l.b16 %v4073
    %v4114 = vpack.c.b16 %v3856, %v3854
    %v4115 = vpack.c.b16 %v4076, %v4074
    %v4116 = vpack.c.b16 %v4077, %v4075
    %v4117 = vpack.c.b16 %v3858, %v3856
    %v4118 = vpack.c.b16 %v4078, %v4076
    %v4119 = vpack.c.b16 %v4079, %v4077
    %v4120 = vpack.c.b16 %v3860, %v3858
    %v4121 = vpack.c.b16 %v4080, %v4078
    %v4122 = vpack.c.b16 %v4081, %v4079
    %v4123 = vpack.c.b16 %v3862, %v3860
    %v4124 = vpack.c.b16 %v4082, %v4080
    %v4125 = vpack.c.b16 %v4083, %v4081
    %v4126 = vpack.c.b16 %v3864, %v3862
    %v4127 = vpack.c.b16 %v4084, %v4082
    %v4128 = vpack.c.b16 %v4085, %v4083
    %v4129 = vpack.c.b16 %v3866, %v3864
    %v4130 = vpack.c.b16 %v4086, %v4084
    %v4131 = vpack.c.b16 %v4087, %v4085
    %v4132 = vpack.c.b16 %v3868, %v3866
    %v4133 = vpack.c.b16 %v4088, %v4086
    %v4134 = vpack.c.b16 %v4089, %v4087
    %v4135 = vpack.c.b16 %v3870, %v3868
    %v4136 = vpack.c.b16 %v4090, %v4088
    %v4137 = vpack.c.b16 %v4091, %v4089
    %v4138 = vpack.c.b16 %v3872, %v3870
    %v4139 = vpack.c.b16 %v4092, %v4090
    %v4140 = vpack.c.b16 %v4093, %v4091
    %v4141 = vpack.c.b16 %v3876, %v3874
    %v4142 = vpack.c.b16 %v4096, %v4094
    %v4143 = vpack.c.b16 %v4097, %v4095
    %v4144 = vpack.c.b16 %v3878, %v3876
    %v4145 = vpack.c.b16 %v4098, %v4096
    %v4146 = vpack.c.b16 %v4099, %v4097
    %v4147 = vpack.c.b16 %v3880, %v3878
    %v4148 = vpack.c.b16 %v4100, %v4098
    %v4149 = vpack.c.b16 %v4101, %v4099
    %v4150 = vpack.c.b16 %v3882, %v3880
    %v4151 = vpack.c.b16 %v4102, %v4100
    %v4152 = vpack.c.b16 %v4103, %v4101
    %v4153 = vpack.c.b16 %v3884, %v3882
    %v4154 = vpack.c.b16 %v4104, %v4102
    %v4155 = vpack.c.b16 %v4105, %v4103
    %v4156 = vpack.c.b16 %v3886, %v3884
    %v4157 = vpack.c.b16 %v4106, %v4104
    %v4158 = vpack.c.b16 %v4107, %v4105
    %v4159 = vpack.c.b16 %v3888, %v3886
    %v4160 = vpack.c.b16 %v4108, %v4106
    %v4161 = vpack.c.b16 %v4109, %v4107
    %v4162 = vpack.c.b16 %v3890, %v3888
    %v4163 = vpack.c.b16 %v4110, %v4108
    %v4164 = vpack.c.b16 %v4111, %v4109
    %v4165 = vpack.c.b16 %v3892, %v3890
    %v4166 = vpack.c.b16 %v4112, %v4110
    %v4167 = vpack.c.b16 %v4113, %v4111
    %v4238 = vunpack.c.l.b16 %v71
    %v4239 = vunpack.c.l.b16 %v72
    %v4240 = vunpack.c.l.b16 %v73
    %v4241 = vunpack.c.l.b16 %v74
    %v4242 = vunpack.c.l.b16 %v75
    %v4243 = vunpack.c.l.b16 %v76
    %v4244 = vunpack.c.l.b16 %v77
    %v4245 = vunpack.c.l.b16 %v78
    %v4246 = vunpack.c.l.b16 %v79
    %v4247 = vunpack.c.l.b16 %v80
    %v4248 = vunpack.c.l.b16 %v81
    %v4249 = vunpack.c.l.b16 %v82
    %v4250 = vunpack.c.l.b16 %v83
    %v4251 = vunpack.c.l.b16 %v84
    %v4252 = vunpack.c.l.b16 %v85
    %v4253 = vunpack.c.l.b16 %v86
    %v4254 = vpack.c.b16 %v4239, %v4238
    %v4255 = vpack.c.b16 %v4241, %v4240
    %v4256 = vpack.c.b16 %v4243, %v4242
    %v4257 = vpack.c.b16 %v4245, %v4244
    %v4258 = vpack.c.b16 %v4247, %v4246
    %v4259 = vpack.c.b16 %v4249, %v4248
    %v4260 = vpack.c.b16 %v4251, %v4250
    %v4261 = vpack.c.b16 %v4253, %v4252
    %v4270 = vld [vmem:[#allocation7] sm:$0xf]
    %v4271 = vld [vmem:[#allocation7 + $0x4] sm:$0xf]
    %v4272 = vld [vmem:[#allocation7 + $0x8] sm:$0xf]
    %v4273 = vld [vmem:[#allocation7 + $0xc] sm:$0xf]
    %v4274 = vld [vmem:[#allocation7 + $0x10] sm:$0xf]
    %v4275 = vld [vmem:[#allocation7 + $0x14] sm:$0xf]
    %v4276 = vld [vmem:[#allocation7 + $0x18] sm:$0xf]
    %v4277 = vld [vmem:[#allocation7 + $0x1c] sm:$0xf]
    %v4278 = vld [vmem:[#allocation7 + $0x20] sm:$0xf]
    %v4279 = vld [vmem:[#allocation7 + $0x24] sm:$0xf]
    %v4280 = vld [vmem:[#allocation7 + $0x28] sm:$0xf]
    %v4281 = vld [vmem:[#allocation7 + $0x2c] sm:$0xf]
    %v4282 = vld [vmem:[#allocation7 + $0x30] sm:$0xf]
    %v4283 = vld [vmem:[#allocation7 + $0x34] sm:$0xf]
    %v4284 = vld [vmem:[#allocation7 + $0x38] sm:$0xf]
    %v4285 = vld [vmem:[#allocation7 + $0x3c] sm:$0xf]
    %v4286 = vld [vmem:[#allocation7 + $0x40] sm:$0xf]
    %v4287 = vld [vmem:[#allocation7 + $0x44] sm:$0xf]
    %v4288 = vld [vmem:[#allocation7 + $0x48] sm:$0xf]
    %v4289 = vld [vmem:[#allocation7 + $0x4c] sm:$0xf]
    %v4290 = vld [vmem:[#allocation7 + $0x50] sm:$0xf]
    %v4291 = vld [vmem:[#allocation7 + $0x54] sm:$0xf]
    %v4292 = vld [vmem:[#allocation7 + $0x58] sm:$0xf]
    %v4293 = vld [vmem:[#allocation7 + $0x5c] sm:$0xf]
    %v4294 = vld [vmem:[#allocation7 + $0x60] sm:$0xf]
    %v4295 = vld [vmem:[#allocation7 + $0x64] sm:$0xf]
    %v4296 = vld [vmem:[#allocation7 + $0x68] sm:$0xf]
    %v4297 = vld [vmem:[#allocation7 + $0x6c] sm:$0xf]
    %v4298 = vld [vmem:[#allocation7 + $0x70] sm:$0xf]
    %v4299 = vld [vmem:[#allocation7 + $0x74] sm:$0xf]
    %v4300 = vld [vmem:[#allocation7 + $0x78] sm:$0xf]
    %v4301 = vld [vmem:[#allocation7 + $0x7c] sm:$0xf]
    %v4302 = vld [vmem:[#allocation7 + $0x80] sm:$0xf]
    %v4303 = vld [vmem:[#allocation7 + $0x84] sm:$0xf]
    %v4304 = vld [vmem:[#allocation7 + $0x88] sm:$0xf]
    %v4305 = vld [vmem:[#allocation7 + $0x8c] sm:$0xf]
    %v4306 = vld [vmem:[#allocation7 + $0x90] sm:$0xf]
    %v4307 = vld [vmem:[#allocation7 + $0x94] sm:$0xf]
    %v4308 = vld [vmem:[#allocation7 + $0x98] sm:$0xf]
    %v4309 = vld [vmem:[#allocation7 + $0x9c] sm:$0xf]
    %v4310 = vld [vmem:[#allocation7 + $0xa0] sm:$0xf]
    %v4311 = vld [vmem:[#allocation7 + $0xa4] sm:$0xf]
    %v4312 = vld [vmem:[#allocation7 + $0xa8] sm:$0xf]
    %v4313 = vld [vmem:[#allocation7 + $0xac] sm:$0xf]
    %v4314 = vld [vmem:[#allocation7 + $0xb0] sm:$0xf]
    %v4315 = vld [vmem:[#allocation7 + $0xb4] sm:$0xf]
    %v4316 = vld [vmem:[#allocation7 + $0xb8] sm:$0xf]
    %v4317 = vld [vmem:[#allocation7 + $0xbc] sm:$0xf]
    %v4318 = vld [vmem:[#allocation7 + $0xc0] sm:$0xf]
    %v4319 = vld [vmem:[#allocation7 + $0xc4] sm:$0xf]
    %v4320 = vld [vmem:[#allocation7 + $0xc8] sm:$0xf]
    %v4321 = vld [vmem:[#allocation7 + $0xcc] sm:$0xf]
    %v4322 = vld [vmem:[#allocation7 + $0xd0] sm:$0xf]
    %v4323 = vld [vmem:[#allocation7 + $0xd4] sm:$0xf]
    %v4324 = vld [vmem:[#allocation7 + $0xd8] sm:$0xf]
    %v4325 = vld [vmem:[#allocation7 + $0xdc] sm:$0xf]
    %v4326 = vld [vmem:[#allocation7 + $0xe0] sm:$0xf]
    %v4327 = vld [vmem:[#allocation7 + $0xe4] sm:$0xf]
    %v4328 = vld [vmem:[#allocation7 + $0xe8] sm:$0xf]
    %v4329 = vld [vmem:[#allocation7 + $0xec] sm:$0xf]
    %v4330 = vld [vmem:[#allocation7 + $0xf0] sm:$0xf]
    %v4331 = vld [vmem:[#allocation7 + $0xf4] sm:$0xf]
    %v4332 = vld [vmem:[#allocation7 + $0xf8] sm:$0xf]
    %v4333 = vld [vmem:[#allocation7 + $0xfc] sm:$0xf]
    %v4334 = vld [vmem:[#allocation7 + $0x100] sm:$0xf]
    %v4335 = vld [vmem:[#allocation7 + $0x104] sm:$0xf]
    %v4336 = vld [vmem:[#allocation7 + $0x108] sm:$0xf]
    %v4337 = vld [vmem:[#allocation7 + $0x10c] sm:$0xf]
    %v4338 = vld [vmem:[#allocation7 + $0x110] sm:$0xf]
    %v4339 = vld [vmem:[#allocation7 + $0x114] sm:$0xf]
    %v4340 = vld [vmem:[#allocation7 + $0x118] sm:$0xf]
    %v4341 = vld [vmem:[#allocation7 + $0x11c] sm:$0xf]
    %v4342 = vld [vmem:[#allocation7 + $0x120] sm:$0xf]
    %v4343 = vld [vmem:[#allocation7 + $0x124] sm:$0xf]
    %v4344 = vld [vmem:[#allocation7 + $0x128] sm:$0xf]
    %v4345 = vld [vmem:[#allocation7 + $0x12c] sm:$0xf]
    %v4346 = vld [vmem:[#allocation7 + $0x130] sm:$0xf]
    %v4347 = vld [vmem:[#allocation7 + $0x134] sm:$0xf]
    %v4348 = vld [vmem:[#allocation7 + $0x138] sm:$0xf]
    %v4349 = vld [vmem:[#allocation7 + $0x13c] sm:$0xf]
    %v4350 = vld [vmem:[#allocation7 + $0x140] sm:$0xf]
    %v4351 = vld [vmem:[#allocation7 + $0x144] sm:$0xf]
    %v4352 = vld [vmem:[#allocation7 + $0x148] sm:$0xf]
    %v4353 = vld [vmem:[#allocation7 + $0x14c] sm:$0xf]
    %v4354 = vld [vmem:[#allocation7 + $0x150] sm:$0xf]
    %v4355 = vld [vmem:[#allocation7 + $0x154] sm:$0xf]
    %v4356 = vld [vmem:[#allocation7 + $0x158] sm:$0xf]
    %v4357 = vld [vmem:[#allocation7 + $0x15c] sm:$0xf]
    %v4358 = vld [vmem:[#allocation7 + $0x160] sm:$0xf]
    %v4359 = vld [vmem:[#allocation7 + $0x164] sm:$0xf]
    %v4360 = vld [vmem:[#allocation7 + $0x168] sm:$0xf]
    %v4361 = vld [vmem:[#allocation7 + $0x16c] sm:$0xf]
    %v4362 = vld [vmem:[#allocation7 + $0x170] sm:$0xf]
    %v4363 = vld [vmem:[#allocation7 + $0x174] sm:$0xf]
    %v4364 = vld [vmem:[#allocation7 + $0x178] sm:$0xf]
    %v4365 = vld [vmem:[#allocation7 + $0x17c] sm:$0xf]
    %v4366 = vld [vmem:[#allocation7 + $0x180] sm:$0xf]
    %v4367 = vld [vmem:[#allocation7 + $0x184] sm:$0xf]
    %v4368 = vld [vmem:[#allocation7 + $0x188] sm:$0xf]
    %v4369 = vld [vmem:[#allocation7 + $0x18c] sm:$0xf]
    %v4370 = vld [vmem:[#allocation7 + $0x190] sm:$0xf]
    %v4371 = vld [vmem:[#allocation7 + $0x194] sm:$0xf]
    %v4372 = vld [vmem:[#allocation7 + $0x198] sm:$0xf]
    %v4373 = vld [vmem:[#allocation7 + $0x19c] sm:$0xf]
    %v4374 = vld [vmem:[#allocation7 + $0x1a0] sm:$0xf]
    %v4375 = vld [vmem:[#allocation7 + $0x1a4] sm:$0xf]
    %v4376 = vld [vmem:[#allocation7 + $0x1a8] sm:$0xf]
    %v4377 = vld [vmem:[#allocation7 + $0x1ac] sm:$0xf]
    %v4378 = vld [vmem:[#allocation7 + $0x1b0] sm:$0xf]
    %v4379 = vld [vmem:[#allocation7 + $0x1b4] sm:$0xf]
    %v4380 = vld [vmem:[#allocation7 + $0x1b8] sm:$0xf]
    %v4381 = vld [vmem:[#allocation7 + $0x1bc] sm:$0xf]
    %v4382 = vld [vmem:[#allocation7 + $0x1c0] sm:$0xf]
    %v4383 = vld [vmem:[#allocation7 + $0x1c4] sm:$0xf]
    %v4384 = vld [vmem:[#allocation7 + $0x1c8] sm:$0xf]
    %v4385 = vld [vmem:[#allocation7 + $0x1cc] sm:$0xf]
    %v4386 = vld [vmem:[#allocation7 + $0x1d0] sm:$0xf]
    %v4387 = vld [vmem:[#allocation7 + $0x1d4] sm:$0xf]
    %v4388 = vld [vmem:[#allocation7 + $0x1d8] sm:$0xf]
    %v4389 = vld [vmem:[#allocation7 + $0x1dc] sm:$0xf]
    %v4390 = vld [vmem:[#allocation7 + $0x1e0] sm:$0xf]
    %v4391 = vld [vmem:[#allocation7 + $0x1e4] sm:$0xf]
    %v4392 = vld [vmem:[#allocation7 + $0x1e8] sm:$0xf]
    %v4393 = vld [vmem:[#allocation7 + $0x1ec] sm:$0xf]
    %v4394 = vld [vmem:[#allocation7 + $0x1f0] sm:$0xf]
    %v4395 = vld [vmem:[#allocation7 + $0x1f4] sm:$0xf]
    %v4396 = vld [vmem:[#allocation7 + $0x1f8] sm:$0xf]
    %v4397 = vld [vmem:[#allocation7 + $0x1fc] sm:$0xf]
    %v4398 = vld [vmem:[#allocation7 + $0x200] sm:$0xf]
    %v4399 = vld [vmem:[#allocation7 + $0x204] sm:$0xf]
    %v4400 = vld [vmem:[#allocation7 + $0x208] sm:$0xf]
    %v4401 = vld [vmem:[#allocation7 + $0x20c] sm:$0xf]
    %v4402 = vld [vmem:[#allocation7 + $0x210] sm:$0xf]
    %v4403 = vld [vmem:[#allocation7 + $0x214] sm:$0xf]
    %v4404 = vld [vmem:[#allocation7 + $0x218] sm:$0xf]
    %v4405 = vld [vmem:[#allocation7 + $0x21c] sm:$0xf]
    %v4406 = vld [vmem:[#allocation7 + $0x220] sm:$0xf]
    %v4407 = vld [vmem:[#allocation7 + $0x224] sm:$0xf]
    %v4408 = vld [vmem:[#allocation7 + $0x228] sm:$0xf]
    %v4409 = vld [vmem:[#allocation7 + $0x22c] sm:$0xf]
    %v4410 = vld [vmem:[#allocation7 + $0x230] sm:$0xf]
    %v4411 = vld [vmem:[#allocation7 + $0x234] sm:$0xf]
    %v4412 = vld [vmem:[#allocation7 + $0x238] sm:$0xf]
    %v4413 = vld [vmem:[#allocation7 + $0x23c] sm:$0xf]
    %v4414 = vld [vmem:[#allocation7 + $0x240] sm:$0xf]
    %v4415 = vld [vmem:[#allocation7 + $0x244] sm:$0xf]
    %v4416 = vld [vmem:[#allocation7 + $0x248] sm:$0xf]
    %v4417 = vld [vmem:[#allocation7 + $0x24c] sm:$0xf]
    %v4418 = vld [vmem:[#allocation7 + $0x250] sm:$0xf]
    %v4419 = vld [vmem:[#allocation7 + $0x254] sm:$0xf]
    %v4420 = vld [vmem:[#allocation7 + $0x258] sm:$0xf]
    %v4421 = vld [vmem:[#allocation7 + $0x25c] sm:$0xf]
    %v4422 = vld [vmem:[#allocation7 + $0x260] sm:$0xf]
    %v4423 = vld [vmem:[#allocation7 + $0x264] sm:$0xf]
    %v4424 = vld [vmem:[#allocation7 + $0x268] sm:$0xf]
    %v4425 = vld [vmem:[#allocation7 + $0x26c] sm:$0xf]
    %v4426 = vld [vmem:[#allocation7 + $0x270] sm:$0xf]
    %v4427 = vld [vmem:[#allocation7 + $0x274] sm:$0xf]
    %v4428 = vld [vmem:[#allocation7 + $0x278] sm:$0xf]
    %v4429 = vld [vmem:[#allocation7 + $0x27c] sm:$0xf]
    %v4430 = vld [vmem:[%s9] sm:$0x1]
    %v4432 = vlaneseq
    %v4433 = vshrl.u32 %v4432, 7
    %v4434 = vsub.s32 0, %v4433
    %v4435 = vrot.slane %v4430, %v4434
    %v4597 = vunpack.c.l.b16 %v4270
    %v4598 = vunpack.c.l.b16 %v4271
    %v4599 = vunpack.c.l.b16 %v4272
    %v4600 = vunpack.c.l.b16 %v4273
    %v4601 = vunpack.c.l.b16 %v4274
    %v4602 = vunpack.c.l.b16 %v4275
    %v4603 = vunpack.c.l.b16 %v4276
    %v4604 = vunpack.c.l.b16 %v4277
    %v4605 = vunpack.c.l.b16 %v4278
    %v4606 = vunpack.c.l.b16 %v4279
    %v4607 = vunpack.c.l.b16 %v4280
    %v4608 = vunpack.c.l.b16 %v4281
    %v4609 = vunpack.c.l.b16 %v4282
    %v4610 = vunpack.c.l.b16 %v4283
    %v4611 = vunpack.c.l.b16 %v4284
    %v4612 = vunpack.c.l.b16 %v4285
    %v4613 = vunpack.c.l.b16 %v4286
    %v4614 = vunpack.c.l.b16 %v4287
    %v4615 = vunpack.c.l.b16 %v4288
    %v4616 = vunpack.c.l.b16 %v4289
    %v4617 = vunpack.c.l.b16 %v4290
    %v4618 = vunpack.c.l.b16 %v4291
    %v4619 = vunpack.c.l.b16 %v4292
    %v4620 = vunpack.c.l.b16 %v4293
    %v4621 = vunpack.c.l.b16 %v4294
    %v4622 = vunpack.c.l.b16 %v4295
    %v4623 = vunpack.c.l.b16 %v4296
    %v4624 = vunpack.c.l.b16 %v4297
    %v4625 = vunpack.c.l.b16 %v4298
    %v4626 = vunpack.c.l.b16 %v4299
    %v4627 = vunpack.c.l.b16 %v4300
    %v4628 = vunpack.c.l.b16 %v4301
    %v4629 = vunpack.c.l.b16 %v4302
    %v4630 = vunpack.c.l.b16 %v4303
    %v4631 = vunpack.c.l.b16 %v4304
    %v4632 = vunpack.c.l.b16 %v4305
    %v4633 = vunpack.c.l.b16 %v4306
    %v4634 = vunpack.c.l.b16 %v4307
    %v4635 = vunpack.c.l.b16 %v4308
    %v4636 = vunpack.c.l.b16 %v4309
    %v4637 = vunpack.c.l.b16 %v4310
    %v4638 = vunpack.c.l.b16 %v4311
    %v4639 = vunpack.c.l.b16 %v4312
    %v4640 = vunpack.c.l.b16 %v4313
    %v4641 = vunpack.c.l.b16 %v4314
    %v4642 = vunpack.c.l.b16 %v4315
    %v4643 = vunpack.c.l.b16 %v4316
    %v4644 = vunpack.c.l.b16 %v4317
    %v4645 = vunpack.c.l.b16 %v4318
    %v4646 = vunpack.c.l.b16 %v4319
    %v4647 = vunpack.c.l.b16 %v4320
    %v4648 = vunpack.c.l.b16 %v4321
    %v4649 = vunpack.c.l.b16 %v4322
    %v4650 = vunpack.c.l.b16 %v4323
    %v4651 = vunpack.c.l.b16 %v4324
    %v4652 = vunpack.c.l.b16 %v4325
    %v4653 = vunpack.c.l.b16 %v4326
    %v4654 = vunpack.c.l.b16 %v4327
    %v4655 = vunpack.c.l.b16 %v4328
    %v4656 = vunpack.c.l.b16 %v4329
    %v4657 = vunpack.c.l.b16 %v4330
    %v4658 = vunpack.c.l.b16 %v4331
    %v4659 = vunpack.c.l.b16 %v4332
    %v4660 = vunpack.c.l.b16 %v4333
    %v4661 = vunpack.c.l.b16 %v4334
    %v4662 = vunpack.c.l.b16 %v4335
    %v4663 = vunpack.c.l.b16 %v4336
    %v4664 = vunpack.c.l.b16 %v4337
    %v4665 = vunpack.c.l.b16 %v4338
    %v4666 = vunpack.c.l.b16 %v4339
    %v4667 = vunpack.c.l.b16 %v4340
    %v4668 = vunpack.c.l.b16 %v4341
    %v4669 = vunpack.c.l.b16 %v4342
    %v4670 = vunpack.c.l.b16 %v4343
    %v4671 = vunpack.c.l.b16 %v4344
    %v4672 = vunpack.c.l.b16 %v4345
    %v4673 = vunpack.c.l.b16 %v4346
    %v4674 = vunpack.c.l.b16 %v4347
    %v4675 = vunpack.c.l.b16 %v4348
    %v4676 = vunpack.c.l.b16 %v4349
    %v4677 = vunpack.c.l.b16 %v4350
    %v4678 = vunpack.c.l.b16 %v4351
    %v4679 = vunpack.c.l.b16 %v4352
    %v4680 = vunpack.c.l.b16 %v4353
    %v4681 = vunpack.c.l.b16 %v4354
    %v4682 = vunpack.c.l.b16 %v4355
    %v4683 = vunpack.c.l.b16 %v4356
    %v4684 = vunpack.c.l.b16 %v4357
    %v4685 = vunpack.c.l.b16 %v4358
    %v4686 = vunpack.c.l.b16 %v4359
    %v4687 = vunpack.c.l.b16 %v4360
    %v4688 = vunpack.c.l.b16 %v4361
    %v4689 = vunpack.c.l.b16 %v4362
    %v4690 = vunpack.c.l.b16 %v4363
    %v4691 = vunpack.c.l.b16 %v4364
    %v4692 = vunpack.c.l.b16 %v4365
    %v4693 = vunpack.c.l.b16 %v4366
    %v4694 = vunpack.c.l.b16 %v4367
    %v4695 = vunpack.c.l.b16 %v4368
    %v4696 = vunpack.c.l.b16 %v4369
    %v4697 = vunpack.c.l.b16 %v4370
    %v4698 = vunpack.c.l.b16 %v4371
    %v4699 = vunpack.c.l.b16 %v4372
    %v4700 = vunpack.c.l.b16 %v4373
    %v4701 = vunpack.c.l.b16 %v4374
    %v4702 = vunpack.c.l.b16 %v4375
    %v4703 = vunpack.c.l.b16 %v4376
    %v4704 = vunpack.c.l.b16 %v4377
    %v4705 = vunpack.c.l.b16 %v4378
    %v4706 = vunpack.c.l.b16 %v4379
    %v4707 = vunpack.c.l.b16 %v4380
    %v4708 = vunpack.c.l.b16 %v4381
    %v4709 = vunpack.c.l.b16 %v4382
    %v4710 = vunpack.c.l.b16 %v4383
    %v4711 = vunpack.c.l.b16 %v4384
    %v4712 = vunpack.c.l.b16 %v4385
    %v4713 = vunpack.c.l.b16 %v4386
    %v4714 = vunpack.c.l.b16 %v4387
    %v4715 = vunpack.c.l.b16 %v4388
    %v4716 = vunpack.c.l.b16 %v4389
    %v4717 = vunpack.c.l.b16 %v4390
    %v4718 = vunpack.c.l.b16 %v4391
    %v4719 = vunpack.c.l.b16 %v4392
    %v4720 = vunpack.c.l.b16 %v4393
    %v4721 = vunpack.c.l.b16 %v4394
    %v4722 = vunpack.c.l.b16 %v4395
    %v4723 = vunpack.c.l.b16 %v4396
    %v4724 = vunpack.c.l.b16 %v4397
    %v4725 = vunpack.c.l.b16 %v4398
    %v4726 = vunpack.c.l.b16 %v4399
    %v4727 = vunpack.c.l.b16 %v4400
    %v4728 = vunpack.c.l.b16 %v4401
    %v4729 = vunpack.c.l.b16 %v4402
    %v4730 = vunpack.c.l.b16 %v4403
    %v4731 = vunpack.c.l.b16 %v4404
    %v4732 = vunpack.c.l.b16 %v4405
    %v4733 = vunpack.c.l.b16 %v4406
    %v4734 = vunpack.c.l.b16 %v4407
    %v4735 = vunpack.c.l.b16 %v4408
    %v4736 = vunpack.c.l.b16 %v4409
    %v4737 = vunpack.c.l.b16 %v4410
    %v4738 = vunpack.c.l.b16 %v4411
    %v4739 = vunpack.c.l.b16 %v4412
    %v4740 = vunpack.c.l.b16 %v4413
    %v4741 = vunpack.c.l.b16 %v4414
    %v4742 = vunpack.c.l.b16 %v4415
    %v4743 = vunpack.c.l.b16 %v4416
    %v4744 = vunpack.c.l.b16 %v4417
    %v4745 = vunpack.c.l.b16 %v4418
    %v4746 = vunpack.c.l.b16 %v4419
    %v4747 = vunpack.c.l.b16 %v4420
    %v4748 = vunpack.c.l.b16 %v4421
    %v4749 = vunpack.c.l.b16 %v4422
    %v4750 = vunpack.c.l.b16 %v4423
    %v4751 = vunpack.c.l.b16 %v4424
    %v4752 = vunpack.c.l.b16 %v4425
    %v4753 = vunpack.c.l.b16 %v4426
    %v4754 = vunpack.c.l.b16 %v4427
    %v4755 = vunpack.c.l.b16 %v4428
    %v4756 = vunpack.c.l.b16 %v4429
    %v4757 = vpack.c.b16 %v4598, %v4597
    %v4758 = vpack.c.b16 %v4600, %v4599
    %v4759 = vpack.c.b16 %v4602, %v4601
    %v4760 = vpack.c.b16 %v4604, %v4603
    %v4761 = vpack.c.b16 %v4606, %v4605
    %v4762 = vpack.c.b16 %v4608, %v4607
    %v4763 = vpack.c.b16 %v4610, %v4609
    %v4764 = vpack.c.b16 %v4612, %v4611
    %v4765 = vpack.c.b16 %v4614, %v4613
    %v4766 = vpack.c.b16 %v4616, %v4615
    %v4767 = vpack.c.b16 %v4618, %v4617
    %v4768 = vpack.c.b16 %v4620, %v4619
    %v4769 = vpack.c.b16 %v4622, %v4621
    %v4770 = vpack.c.b16 %v4624, %v4623
    %v4771 = vpack.c.b16 %v4626, %v4625
    %v4772 = vpack.c.b16 %v4628, %v4627
    %v4773 = vpack.c.b16 %v4630, %v4629
    %v4774 = vpack.c.b16 %v4632, %v4631
    %v4775 = vpack.c.b16 %v4634, %v4633
    %v4776 = vpack.c.b16 %v4636, %v4635
    %v4777 = vpack.c.b16 %v4638, %v4637
    %v4778 = vpack.c.b16 %v4640, %v4639
    %v4779 = vpack.c.b16 %v4642, %v4641
    %v4780 = vpack.c.b16 %v4644, %v4643
    %v4781 = vpack.c.b16 %v4646, %v4645
    %v4782 = vpack.c.b16 %v4648, %v4647
    %v4783 = vpack.c.b16 %v4650, %v4649
    %v4784 = vpack.c.b16 %v4652, %v4651
    %v4785 = vpack.c.b16 %v4654, %v4653
    %v4786 = vpack.c.b16 %v4656, %v4655
    %v4787 = vpack.c.b16 %v4658, %v4657
    %v4788 = vpack.c.b16 %v4660, %v4659
    %v4789 = vpack.c.b16 %v4662, %v4661
    %v4790 = vpack.c.b16 %v4664, %v4663
    %v4791 = vpack.c.b16 %v4666, %v4665
    %v4792 = vpack.c.b16 %v4668, %v4667
    %v4793 = vpack.c.b16 %v4670, %v4669
    %v4794 = vpack.c.b16 %v4672, %v4671
    %v4795 = vpack.c.b16 %v4674, %v4673
    %v4796 = vpack.c.b16 %v4676, %v4675
    %v4797 = vpack.c.b16 %v4678, %v4677
    %v4798 = vpack.c.b16 %v4680, %v4679
    %v4799 = vpack.c.b16 %v4682, %v4681
    %v4800 = vpack.c.b16 %v4684, %v4683
    %v4801 = vpack.c.b16 %v4686, %v4685
    %v4802 = vpack.c.b16 %v4688, %v4687
    %v4803 = vpack.c.b16 %v4690, %v4689
    %v4804 = vpack.c.b16 %v4692, %v4691
    %v4805 = vpack.c.b16 %v4694, %v4693
    %v4806 = vpack.c.b16 %v4696, %v4695
    %v4807 = vpack.c.b16 %v4698, %v4697
    %v4808 = vpack.c.b16 %v4700, %v4699
    %v4809 = vpack.c.b16 %v4702, %v4701
    %v4810 = vpack.c.b16 %v4704, %v4703
    %v4811 = vpack.c.b16 %v4706, %v4705
    %v4812 = vpack.c.b16 %v4708, %v4707
    %v4813 = vpack.c.b16 %v4710, %v4709
    %v4814 = vpack.c.b16 %v4712, %v4711
    %v4815 = vpack.c.b16 %v4714, %v4713
    %v4816 = vpack.c.b16 %v4716, %v4715
    %v4817 = vpack.c.b16 %v4718, %v4717
    %v4818 = vpack.c.b16 %v4720, %v4719
    %v4819 = vpack.c.b16 %v4722, %v4721
    %v4820 = vpack.c.b16 %v4724, %v4723
    %v4821 = vpack.c.b16 %v4726, %v4725
    %v4822 = vpack.c.b16 %v4728, %v4727
    %v4823 = vpack.c.b16 %v4730, %v4729
    %v4824 = vpack.c.b16 %v4732, %v4731
    %v4825 = vpack.c.b16 %v4734, %v4733
    %v4826 = vpack.c.b16 %v4736, %v4735
    %v4827 = vpack.c.b16 %v4738, %v4737
    %v4828 = vpack.c.b16 %v4740, %v4739
    %v4829 = vpack.c.b16 %v4742, %v4741
    %v4830 = vpack.c.b16 %v4744, %v4743
    %v4831 = vpack.c.b16 %v4746, %v4745
    %v4832 = vpack.c.b16 %v4748, %v4747
    %v4833 = vpack.c.b16 %v4750, %v4749
    %v4834 = vpack.c.b16 %v4752, %v4751
    %v4835 = vpack.c.b16 %v4754, %v4753
    %v4836 = vpack.c.b16 %v4756, %v4755
    %4917 = vmatprep.subr.bf16.mxu0 0
    %4918 = vmatpush1.bf16.msra.mxu0 %v4764
    %4919 = vmatprep.subr.bf16.mxu0 0
    %4920 = vmatpush1.bf16.msra.mxu0 %v4763
    %4921 = vmatprep.subr.bf16.mxu0 0
    %4922 = vmatpush1.bf16.msra.mxu0 %v4762
    %4923 = vmatprep.subr.bf16.mxu0 0
    %4924 = vmatpush1.bf16.msra.mxu0 %v4761
    %4925 = vmatprep.subr.bf16.mxu0 0
    %4926 = vmatpush1.bf16.msra.mxu0 %v4760
    %4927 = vmatprep.subr.bf16.mxu0 0
    %4928 = vmatpush1.bf16.msra.mxu0 %v4759
    %4929 = vmatprep.subr.bf16.mxu0 0
    %4930 = vmatpush1.bf16.msra.mxu0 %v4758
    %4931 = vmatprep.subr.bf16.mxu0 0
    %4932 = vmatpush1.bf16.msra.mxu0 %v4757
    %4933 = vmatprep.subr.bf16.mxu0 0
    %4934 = vmatpush2.bf16.msra.mxu0 %v4772
    %4935 = vmatprep.subr.bf16.mxu0 0
    %4936 = vmatpush2.bf16.msra.mxu0 %v4771
    %4937 = vmatprep.subr.bf16.mxu0 0
    %4938 = vmatpush2.bf16.msra.mxu0 %v4770
    %4939 = vmatprep.subr.bf16.mxu0 0
    %4940 = vmatpush2.bf16.msra.mxu0 %v4769
    %4941 = vmatprep.subr.bf16.mxu0 0
    %4942 = vmatpush2.bf16.msra.mxu0 %v4768
    %4943 = vmatprep.subr.bf16.mxu0 0
    %4944 = vmatpush2.bf16.msra.mxu0 %v4767
    %4945 = vmatprep.subr.bf16.mxu0 0
    %4946 = vmatpush2.bf16.msra.mxu0 %v4766
    %4947 = vmatprep.subr.bf16.mxu0 0
    %4948 = vmatpush2.bf16.msra.mxu0 %v4765
    %4949 = vmatprep.mubr.bf16.mxu0 %v4115
    %4950 = vmatmul.mubr.bf16.gmra.mxu0 %v4114
    %v4951 = vpop.f32.mrf.mxu0
    %v4952 = vadd.f32 %v4435, %v4951
    %v4953 = vpop.f32.mrf.mxu0
    %v4954 = vpop.f32.mrf.mxu0
    %v4955 = vadd.f32 %v4435, %v4954
    %v4956 = vpop.f32.mrf.mxu0
    %4957 = vmatprep.mubr.bf16.mxu0 %v4121
    %4958 = vmatmul.mubr.bf16.gmra.mxu0 %v4120
    %v4959 = vpop.f32.mrf.mxu0
    %v4960 = vadd.f32 %v4435, %v4959
    %v4961 = vpop.f32.mrf.mxu0
    %v4962 = vpop.f32.mrf.mxu0
    %v4963 = vadd.f32 %v4435, %v4962
    %v4964 = vpop.f32.mrf.mxu0
    %4965 = vmatprep.mubr.bf16.mxu0 %v4127
    %4966 = vmatmul.mubr.bf16.gmra.mxu0 %v4126
    %v4967 = vpop.f32.mrf.mxu0
    %v4968 = vadd.f32 %v4435, %v4967
    %v4969 = vpop.f32.mrf.mxu0
    %v4970 = vpop.f32.mrf.mxu0
    %v4971 = vadd.f32 %v4435, %v4970
    %v4972 = vpop.f32.mrf.mxu0
    %4973 = vmatprep.mubr.bf16.mxu0 %v4133
    %4974 = vmatmul.mubr.bf16.gmra.mxu0 %v4132
    %v4975 = vpop.f32.mrf.mxu0
    %v4976 = vadd.f32 %v4435, %v4975
    %v4977 = vpop.f32.mrf.mxu0
    %v4978 = vpop.f32.mrf.mxu0
    %v4979 = vadd.f32 %v4435, %v4978
    %v4980 = vpop.f32.mrf.mxu0
    %4981 = vmatprep.mubr.bf16.mxu0 %v4142
    %4982 = vmatmul.mubr.bf16.gmra.mxu0 %v4141
    %v4983 = vpop.f32.mrf.mxu0
    %v4984 = vadd.f32 %v4435, %v4983
    %v4985 = vpop.f32.mrf.mxu0
    %v4986 = vpop.f32.mrf.mxu0
    %v4987 = vadd.f32 %v4435, %v4986
    %v4988 = vpop.f32.mrf.mxu0
    %4989 = vmatprep.mubr.bf16.mxu0 %v4148
    %4990 = vmatmul.mubr.bf16.gmra.mxu0 %v4147
    %v4991 = vpop.f32.mrf.mxu0
    %v4992 = vadd.f32 %v4435, %v4991
    %v4993 = vpop.f32.mrf.mxu0
    %v4994 = vpop.f32.mrf.mxu0
    %v4995 = vadd.f32 %v4435, %v4994
    %v4996 = vpop.f32.mrf.mxu0
    %4997 = vmatprep.mubr.bf16.mxu0 %v4154
    %4998 = vmatmul.mubr.bf16.gmra.mxu0 %v4153
    %v4999 = vpop.f32.mrf.mxu0
    %v5000 = vadd.f32 %v4435, %v4999
    %v5001 = vpop.f32.mrf.mxu0
    %v5002 = vpop.f32.mrf.mxu0
    %v5003 = vadd.f32 %v4435, %v5002
    %v5004 = vpop.f32.mrf.mxu0
    %5005 = vmatprep.mubr.bf16.mxu0 %v4160
    %5006 = vmatmul.mubr.bf16.gmra.mxu0 %v4159
    %v5007 = vpop.f32.mrf.mxu0
    %v5008 = vadd.f32 %v4435, %v5007
    %v5009 = vpop.f32.mrf.mxu0
    %v5010 = vpop.f32.mrf.mxu0
    %v5011 = vadd.f32 %v4435, %v5010
    %v5012 = vpop.f32.mrf.mxu0
    %5013 = vdwg.mxu0
    %5014 = vmatprep.subr.bf16.mxu0 0
    %5015 = vmatpush1.bf16.msra.mxu0 %v4780
    %5016 = vmatprep.subr.bf16.mxu0 0
    %5017 = vmatpush1.bf16.msra.mxu0 %v4779
    %5018 = vmatprep.subr.bf16.mxu0 0
    %5019 = vmatpush1.bf16.msra.mxu0 %v4778
    %5020 = vmatprep.subr.bf16.mxu0 0
    %5021 = vmatpush1.bf16.msra.mxu0 %v4777
    %5022 = vmatprep.subr.bf16.mxu0 0
    %5023 = vmatpush1.bf16.msra.mxu0 %v4776
    %5024 = vmatprep.subr.bf16.mxu0 0
    %5025 = vmatpush1.bf16.msra.mxu0 %v4775
    %5026 = vmatprep.subr.bf16.mxu0 0
    %5027 = vmatpush1.bf16.msra.mxu0 %v4774
    %5028 = vmatprep.subr.bf16.mxu0 0
    %5029 = vmatpush1.bf16.msra.mxu0 %v4773
    %5030 = vmatprep.subr.bf16.mxu0 0
    %5031 = vmatpush2.bf16.msra.mxu0 %v4788
    %5032 = vmatprep.subr.bf16.mxu0 0
    %5033 = vmatpush2.bf16.msra.mxu0 %v4787
    %5034 = vmatprep.subr.bf16.mxu0 0
    %5035 = vmatpush2.bf16.msra.mxu0 %v4786
    %5036 = vmatprep.subr.bf16.mxu0 0
    %5037 = vmatpush2.bf16.msra.mxu0 %v4785
    %5038 = vmatprep.subr.bf16.mxu0 0
    %5039 = vmatpush2.bf16.msra.mxu0 %v4784
    %5040 = vmatprep.subr.bf16.mxu0 0
    %5041 = vmatpush2.bf16.msra.mxu0 %v4783
    %5042 = vmatprep.subr.bf16.mxu0 0
    %5043 = vmatpush2.bf16.msra.mxu0 %v4782
    %5044 = vmatprep.subr.bf16.mxu0 0
    %5045 = vmatpush2.bf16.msra.mxu0 %v4781
    %5046 = vmatprep.mubr.bf16.mxu0 %v4117
    %5047 = vmatmul.mubr.bf16.gmra.mxu0 %v4116
    %v5048 = vpop.f32.mrf.mxu0
    %v5049 = vadd.f32 %v4952, %v5048
    %v5050 = vpop.f32.mrf.mxu0
    %v5051 = vpop.f32.mrf.mxu0
    %v5052 = vadd.f32 %v4955, %v5051
    %v5053 = vpop.f32.mrf.mxu0
    %5054 = vmatprep.mubr.bf16.mxu0 %v4123
    %5055 = vmatmul.mubr.bf16.gmra.mxu0 %v4122
    %v5056 = vpop.f32.mrf.mxu0
    %v5057 = vadd.f32 %v4960, %v5056
    %v5058 = vpop.f32.mrf.mxu0
    %v5059 = vpop.f32.mrf.mxu0
    %v5060 = vadd.f32 %v4963, %v5059
    %v5061 = vpop.f32.mrf.mxu0
    %5062 = vmatprep.mubr.bf16.mxu0 %v4129
    %5063 = vmatmul.mubr.bf16.gmra.mxu0 %v4128
    %v5064 = vpop.f32.mrf.mxu0
    %v5065 = vadd.f32 %v4968, %v5064
    %v5066 = vpop.f32.mrf.mxu0
    %v5067 = vpop.f32.mrf.mxu0
    %v5068 = vadd.f32 %v4971, %v5067
    %v5069 = vpop.f32.mrf.mxu0
    %5070 = vmatprep.mubr.bf16.mxu0 %v4135
    %5071 = vmatmul.mubr.bf16.gmra.mxu0 %v4134
    %v5072 = vpop.f32.mrf.mxu0
    %v5073 = vadd.f32 %v4976, %v5072
    %v5074 = vpop.f32.mrf.mxu0
    %v5075 = vpop.f32.mrf.mxu0
    %v5076 = vadd.f32 %v4979, %v5075
    %v5077 = vpop.f32.mrf.mxu0
    %5078 = vmatprep.mubr.bf16.mxu0 %v4144
    %5079 = vmatmul.mubr.bf16.gmra.mxu0 %v4143
    %v5080 = vpop.f32.mrf.mxu0
    %v5081 = vadd.f32 %v4984, %v5080
    %v5082 = vpop.f32.mrf.mxu0
    %v5083 = vpop.f32.mrf.mxu0
    %v5084 = vadd.f32 %v4987, %v5083
    %v5085 = vpop.f32.mrf.mxu0
    %5086 = vmatprep.mubr.bf16.mxu0 %v4150
    %5087 = vmatmul.mubr.bf16.gmra.mxu0 %v4149
    %v5088 = vpop.f32.mrf.mxu0
    %v5089 = vadd.f32 %v4992, %v5088
    %v5090 = vpop.f32.mrf.mxu0
    %v5091 = vpop.f32.mrf.mxu0
    %v5092 = vadd.f32 %v4995, %v5091
    %v5093 = vpop.f32.mrf.mxu0
    %5094 = vmatprep.mubr.bf16.mxu0 %v4156
    %5095 = vmatmul.mubr.bf16.gmra.mxu0 %v4155
    %v5096 = vpop.f32.mrf.mxu0
    %v5097 = vadd.f32 %v5000, %v5096
    %v5098 = vpop.f32.mrf.mxu0
    %v5099 = vpop.f32.mrf.mxu0
    %v5100 = vadd.f32 %v5003, %v5099
    %v5101 = vpop.f32.mrf.mxu0
    %5102 = vmatprep.mubr.bf16.mxu0 %v4162
    %5103 = vmatmul.mubr.bf16.gmra.mxu0 %v4161
    %v5104 = vpop.f32.mrf.mxu0
    %v5105 = vadd.f32 %v5008, %v5104
    %v5106 = vpop.f32.mrf.mxu0
    %v5107 = vpop.f32.mrf.mxu0
    %v5108 = vadd.f32 %v5011, %v5107
    %v5109 = vpop.f32.mrf.mxu0
    %5110 = vdwg.mxu0
    %5111 = vmatprep.subr.bf16.mxu0 0
    %5112 = vmatpush1.bf16.msra.mxu0 %v4796
    %5113 = vmatprep.subr.bf16.mxu0 0
    %5114 = vmatpush1.bf16.msra.mxu0 %v4795
    %5115 = vmatprep.subr.bf16.mxu0 0
    %5116 = vmatpush1.bf16.msra.mxu0 %v4794
    %5117 = vmatprep.subr.bf16.mxu0 0
    %5118 = vmatpush1.bf16.msra.mxu0 %v4793
    %5119 = vmatprep.subr.bf16.mxu0 0
    %5120 = vmatpush1.bf16.msra.mxu0 %v4792
    %5121 = vmatprep.subr.bf16.mxu0 0
    %5122 = vmatpush1.bf16.msra.mxu0 %v4791
    %5123 = vmatprep.subr.bf16.mxu0 0
    %5124 = vmatpush1.bf16.msra.mxu0 %v4790
    %5125 = vmatprep.subr.bf16.mxu0 0
    %5126 = vmatpush1.bf16.msra.mxu0 %v4789
    %5127 = vmatprep.subr.bf16.mxu0 0
    %5128 = vmatpush2.bf16.msra.mxu0 %v4804
    %5129 = vmatprep.subr.bf16.mxu0 0
    %5130 = vmatpush2.bf16.msra.mxu0 %v4803
    %5131 = vmatprep.subr.bf16.mxu0 0
    %5132 = vmatpush2.bf16.msra.mxu0 %v4802
    %5133 = vmatprep.subr.bf16.mxu0 0
    %5134 = vmatpush2.bf16.msra.mxu0 %v4801
    %5135 = vmatprep.subr.bf16.mxu0 0
    %5136 = vmatpush2.bf16.msra.mxu0 %v4800
    %5137 = vmatprep.subr.bf16.mxu0 0
    %5138 = vmatpush2.bf16.msra.mxu0 %v4799
    %5139 = vmatprep.subr.bf16.mxu0 0
    %5140 = vmatpush2.bf16.msra.mxu0 %v4798
    %5141 = vmatprep.subr.bf16.mxu0 0
    %5142 = vmatpush2.bf16.msra.mxu0 %v4797
    %5143 = vmatprep.mubr.bf16.mxu0 %v4119
    %5144 = vmatmul.mubr.bf16.gmra.mxu0 %v4118
    %v5145 = vpop.f32.mrf.mxu0
    %v5146 = vadd.f32 %v5049, %v5145
    %v5147 = vpop.f32.mrf.mxu0
    %v5148 = vpop.f32.mrf.mxu0
    %v5149 = vadd.f32 %v5052, %v5148
    %v5150 = vpop.f32.mrf.mxu0
    %5151 = vmatprep.mubr.bf16.mxu0 %v4125
    %5152 = vmatmul.mubr.bf16.gmra.mxu0 %v4124
    %v5153 = vpop.f32.mrf.mxu0
    %v5154 = vadd.f32 %v5057, %v5153
    %v5155 = vpop.f32.mrf.mxu0
    %v5156 = vpop.f32.mrf.mxu0
    %v5157 = vadd.f32 %v5060, %v5156
    %v5158 = vpop.f32.mrf.mxu0
    %5159 = vmatprep.mubr.bf16.mxu0 %v4131
    %5160 = vmatmul.mubr.bf16.gmra.mxu0 %v4130
    %v5161 = vpop.f32.mrf.mxu0
    %v5162 = vadd.f32 %v5065, %v5161
    %v5163 = vpop.f32.mrf.mxu0
    %v5164 = vpop.f32.mrf.mxu0
    %v5165 = vadd.f32 %v5068, %v5164
    %v5166 = vpop.f32.mrf.mxu0
    %5167 = vmatprep.mubr.bf16.mxu0 %v4137
    %5168 = vmatmul.mubr.bf16.gmra.mxu0 %v4136
    %v5169 = vpop.f32.mrf.mxu0
    %v5170 = vadd.f32 %v5073, %v5169
    %v5171 = vpop.f32.mrf.mxu0
    %v5172 = vpop.f32.mrf.mxu0
    %v5173 = vadd.f32 %v5076, %v5172
    %v5174 = vpop.f32.mrf.mxu0
    %5175 = vmatprep.mubr.bf16.mxu0 %v4146
    %5176 = vmatmul.mubr.bf16.gmra.mxu0 %v4145
    %v5177 = vpop.f32.mrf.mxu0
    %v5178 = vadd.f32 %v5081, %v5177
    %v5179 = vpop.f32.mrf.mxu0
    %v5180 = vpop.f32.mrf.mxu0
    %v5181 = vadd.f32 %v5084, %v5180
    %v5182 = vpop.f32.mrf.mxu0
    %5183 = vmatprep.mubr.bf16.mxu0 %v4152
    %5184 = vmatmul.mubr.bf16.gmra.mxu0 %v4151
    %v5185 = vpop.f32.mrf.mxu0
    %v5186 = vadd.f32 %v5089, %v5185
    %v5187 = vpop.f32.mrf.mxu0
    %v5188 = vpop.f32.mrf.mxu0
    %v5189 = vadd.f32 %v5092, %v5188
    %v5190 = vpop.f32.mrf.mxu0
    %5191 = vmatprep.mubr.bf16.mxu0 %v4158
    %5192 = vmatmul.mubr.bf16.gmra.mxu0 %v4157
    %v5193 = vpop.f32.mrf.mxu0
    %v5194 = vadd.f32 %v5097, %v5193
    %v5195 = vpop.f32.mrf.mxu0
    %v5196 = vpop.f32.mrf.mxu0
    %v5197 = vadd.f32 %v5100, %v5196
    %v5198 = vpop.f32.mrf.mxu0
    %5199 = vmatprep.mubr.bf16.mxu0 %v4164
    %5200 = vmatmul.mubr.bf16.gmra.mxu0 %v4163
    %v5201 = vpop.f32.mrf.mxu0
    %v5202 = vadd.f32 %v5105, %v5201
    %v5203 = vpop.f32.mrf.mxu0
    %v5204 = vpop.f32.mrf.mxu0
    %v5205 = vadd.f32 %v5108, %v5204
    %v5206 = vpop.f32.mrf.mxu0
    %5207 = vdwg.mxu0
    %5208 = vmatprep.subr.bf16.mxu0 0
    %5209 = vmatpush1.bf16.msra.mxu0 %v4812
    %5210 = vmatprep.subr.bf16.mxu0 0
    %5211 = vmatpush1.bf16.msra.mxu0 %v4811
    %5212 = vmatprep.subr.bf16.mxu0 0
    %5213 = vmatpush1.bf16.msra.mxu0 %v4810
    %5214 = vmatprep.subr.bf16.mxu0 0
    %5215 = vmatpush1.bf16.msra.mxu0 %v4809
    %5216 = vmatprep.subr.bf16.mxu0 0
    %5217 = vmatpush1.bf16.msra.mxu0 %v4808
    %5218 = vmatprep.subr.bf16.mxu0 0
    %5219 = vmatpush1.bf16.msra.mxu0 %v4807
    %5220 = vmatprep.subr.bf16.mxu0 0
    %5221 = vmatpush1.bf16.msra.mxu0 %v4806
    %5222 = vmatprep.subr.bf16.mxu0 0
    %5223 = vmatpush1.bf16.msra.mxu0 %v4805
    %5224 = vmatprep.subr.bf16.mxu0 0
    %5225 = vmatpush2.bf16.msra.mxu0 %v4820
    %5226 = vmatprep.subr.bf16.mxu0 0
    %5227 = vmatpush2.bf16.msra.mxu0 %v4819
    %5228 = vmatprep.subr.bf16.mxu0 0
    %5229 = vmatpush2.bf16.msra.mxu0 %v4818
    %5230 = vmatprep.subr.bf16.mxu0 0
    %5231 = vmatpush2.bf16.msra.mxu0 %v4817
    %5232 = vmatprep.subr.bf16.mxu0 0
    %5233 = vmatpush2.bf16.msra.mxu0 %v4816
    %5234 = vmatprep.subr.bf16.mxu0 0
    %5235 = vmatpush2.bf16.msra.mxu0 %v4815
    %5236 = vmatprep.subr.bf16.mxu0 0
    %5237 = vmatpush2.bf16.msra.mxu0 %v4814
    %5238 = vmatprep.subr.bf16.mxu0 0
    %5239 = vmatpush2.bf16.msra.mxu0 %v4813
    %5240 = vmatprep.mubr.bf16.mxu0 %v4121
    %5241 = vmatmul.mubr.bf16.gmra.mxu0 %v4120
    %v5242 = vpop.f32.mrf.mxu0
    %v5243 = vadd.f32 %v5146, %v5242
    %v5244 = vpop.f32.mrf.mxu0
    %v5245 = vpop.f32.mrf.mxu0
    %v5246 = vadd.f32 %v5149, %v5245
    %v5247 = vpop.f32.mrf.mxu0
    %5248 = vmatprep.mubr.bf16.mxu0 %v4127
    %5249 = vmatmul.mubr.bf16.gmra.mxu0 %v4126
    %v5250 = vpop.f32.mrf.mxu0
    %v5251 = vadd.f32 %v5154, %v5250
    %v5252 = vpop.f32.mrf.mxu0
    %v5253 = vpop.f32.mrf.mxu0
    %v5254 = vadd.f32 %v5157, %v5253
    %v5255 = vpop.f32.mrf.mxu0
    %5256 = vmatprep.mubr.bf16.mxu0 %v4133
    %5257 = vmatmul.mubr.bf16.gmra.mxu0 %v4132
    %v5258 = vpop.f32.mrf.mxu0
    %v5259 = vadd.f32 %v5162, %v5258
    %v5260 = vpop.f32.mrf.mxu0
    %v5261 = vpop.f32.mrf.mxu0
    %v5262 = vadd.f32 %v5165, %v5261
    %v5263 = vpop.f32.mrf.mxu0
    %5264 = vmatprep.mubr.bf16.mxu0 %v4139
    %5265 = vmatmul.mubr.bf16.gmra.mxu0 %v4138
    %v5266 = vpop.f32.mrf.mxu0
    %v5267 = vadd.f32 %v5170, %v5266
    %v5268 = vpop.f32.mrf.mxu0
    %v5269 = vpop.f32.mrf.mxu0
    %v5270 = vadd.f32 %v5173, %v5269
    %v5271 = vpop.f32.mrf.mxu0
    %5272 = vmatprep.mubr.bf16.mxu0 %v4148
    %5273 = vmatmul.mubr.bf16.gmra.mxu0 %v4147
    %v5274 = vpop.f32.mrf.mxu0
    %v5275 = vadd.f32 %v5178, %v5274
    %v5276 = vpop.f32.mrf.mxu0
    %v5277 = vpop.f32.mrf.mxu0
    %v5278 = vadd.f32 %v5181, %v5277
    %v5279 = vpop.f32.mrf.mxu0
    %5280 = vmatprep.mubr.bf16.mxu0 %v4154
    %5281 = vmatmul.mubr.bf16.gmra.mxu0 %v4153
    %v5282 = vpop.f32.mrf.mxu0
    %v5283 = vadd.f32 %v5186, %v5282
    %v5284 = vpop.f32.mrf.mxu0
    %v5285 = vpop.f32.mrf.mxu0
    %v5286 = vadd.f32 %v5189, %v5285
    %v5287 = vpop.f32.mrf.mxu0
    %5288 = vmatprep.mubr.bf16.mxu0 %v4160
    %5289 = vmatmul.mubr.bf16.gmra.mxu0 %v4159
    %v5290 = vpop.f32.mrf.mxu0
    %v5291 = vadd.f32 %v5194, %v5290
    %v5292 = vpop.f32.mrf.mxu0
    %v5293 = vpop.f32.mrf.mxu0
    %v5294 = vadd.f32 %v5197, %v5293
    %v5295 = vpop.f32.mrf.mxu0
    %5296 = vmatprep.mubr.bf16.mxu0 %v4166
    %5297 = vmatmul.mubr.bf16.gmra.mxu0 %v4165
    %v5298 = vpop.f32.mrf.mxu0
    %v5299 = vadd.f32 %v5202, %v5298
    %v5300 = vpop.f32.mrf.mxu0
    %v5301 = vpop.f32.mrf.mxu0
    %v5302 = vadd.f32 %v5205, %v5301
    %v5303 = vpop.f32.mrf.mxu0
    %5304 = vdwg.mxu0
    %5305 = vmatprep.subr.bf16.mxu0 0
    %5306 = vmatpush1.bf16.msra.mxu0 %v4828
    %5307 = vmatprep.subr.bf16.mxu0 0
    %5308 = vmatpush1.bf16.msra.mxu0 %v4827
    %5309 = vmatprep.subr.bf16.mxu0 0
    %5310 = vmatpush1.bf16.msra.mxu0 %v4826
    %5311 = vmatprep.subr.bf16.mxu0 0
    %5312 = vmatpush1.bf16.msra.mxu0 %v4825
    %5313 = vmatprep.subr.bf16.mxu0 0
    %5314 = vmatpush1.bf16.msra.mxu0 %v4824
    %5315 = vmatprep.subr.bf16.mxu0 0
    %5316 = vmatpush1.bf16.msra.mxu0 %v4823
    %5317 = vmatprep.subr.bf16.mxu0 0
    %5318 = vmatpush1.bf16.msra.mxu0 %v4822
    %5319 = vmatprep.subr.bf16.mxu0 0
    %5320 = vmatpush1.bf16.msra.mxu0 %v4821
    %5321 = vmatprep.subr.bf16.mxu0 0
    %5322 = vmatpush2.bf16.msra.mxu0 %v4836
    %5323 = vmatprep.subr.bf16.mxu0 0
    %5324 = vmatpush2.bf16.msra.mxu0 %v4835
    %5325 = vmatprep.subr.bf16.mxu0 0
    %5326 = vmatpush2.bf16.msra.mxu0 %v4834
    %5327 = vmatprep.subr.bf16.mxu0 0
    %5328 = vmatpush2.bf16.msra.mxu0 %v4833
    %5329 = vmatprep.subr.bf16.mxu0 0
    %5330 = vmatpush2.bf16.msra.mxu0 %v4832
    %5331 = vmatprep.subr.bf16.mxu0 0
    %5332 = vmatpush2.bf16.msra.mxu0 %v4831
    %5333 = vmatprep.subr.bf16.mxu0 0
    %5334 = vmatpush2.bf16.msra.mxu0 %v4830
    %5335 = vmatprep.subr.bf16.mxu0 0
    %5336 = vmatpush2.bf16.msra.mxu0 %v4829
    %5337 = vmatprep.mubr.bf16.mxu0 %v4254
    %5338 = vmatmul.mubr.bf16.gmra.mxu0 %v4122
    %v5339 = vpop.f32.mrf.mxu0
    %v5340 = vadd.f32 %v5243, %v5339
    %v5341 = vpop.f32.mrf.mxu0
    %v5342 = vpop.f32.mrf.mxu0
    %v5343 = vadd.f32 %v5246, %v5342
    %v5344 = vpop.f32.mrf.mxu0
    %5345 = vmatprep.mubr.bf16.mxu0 %v4255
    %5346 = vmatmul.mubr.bf16.gmra.mxu0 %v4128
    %v5347 = vpop.f32.mrf.mxu0
    %v5348 = vadd.f32 %v5251, %v5347
    %v5349 = vpop.f32.mrf.mxu0
    %v5350 = vpop.f32.mrf.mxu0
    %v5351 = vadd.f32 %v5254, %v5350
    %v5352 = vpop.f32.mrf.mxu0
    %5353 = vmatprep.mubr.bf16.mxu0 %v4256
    %5354 = vmatmul.mubr.bf16.gmra.mxu0 %v4134
    %v5355 = vpop.f32.mrf.mxu0
    %v5356 = vadd.f32 %v5259, %v5355
    %v5357 = vpop.f32.mrf.mxu0
    %v5358 = vpop.f32.mrf.mxu0
    %v5359 = vadd.f32 %v5262, %v5358
    %v5360 = vpop.f32.mrf.mxu0
    %5361 = vmatprep.mubr.bf16.mxu0 %v4257
    %5362 = vmatmul.mubr.bf16.gmra.mxu0 %v4140
    %v5363 = vpop.f32.mrf.mxu0
    %v5364 = vadd.f32 %v5267, %v5363
    %v5365 = vpop.f32.mrf.mxu0
    %v5366 = vpop.f32.mrf.mxu0
    %v5367 = vadd.f32 %v5270, %v5366
    %v5368 = vpop.f32.mrf.mxu0
    %5369 = vmatprep.mubr.bf16.mxu0 %v4258
    %5370 = vmatmul.mubr.bf16.gmra.mxu0 %v4149
    %v5371 = vpop.f32.mrf.mxu0
    %v5372 = vadd.f32 %v5275, %v5371
    %v5373 = vpop.f32.mrf.mxu0
    %v5374 = vpop.f32.mrf.mxu0
    %v5375 = vadd.f32 %v5278, %v5374
    %v5376 = vpop.f32.mrf.mxu0
    %5377 = vmatprep.mubr.bf16.mxu0 %v4259
    %5378 = vmatmul.mubr.bf16.gmra.mxu0 %v4155
    %v5379 = vpop.f32.mrf.mxu0
    %v5380 = vadd.f32 %v5283, %v5379
    %v5381 = vpop.f32.mrf.mxu0
    %v5382 = vpop.f32.mrf.mxu0
    %v5383 = vadd.f32 %v5286, %v5382
    %v5384 = vpop.f32.mrf.mxu0
    %5385 = vmatprep.mubr.bf16.mxu0 %v4260
    %5386 = vmatmul.mubr.bf16.gmra.mxu0 %v4161
    %v5387 = vpop.f32.mrf.mxu0
    %v5388 = vadd.f32 %v5291, %v5387
    %v5389 = vpop.f32.mrf.mxu0
    %v5390 = vpop.f32.mrf.mxu0
    %v5391 = vadd.f32 %v5294, %v5390
    %v5392 = vpop.f32.mrf.mxu0
    %5393 = vmatprep.mubr.bf16.mxu0 %v4261
    %5394 = vmatmul.mubr.bf16.gmra.mxu0 %v4167
    %v5395 = vpop.f32.mrf.mxu0
    %v5396 = vadd.f32 %v5299, %v5395
    %v5397 = vpop.f32.mrf.mxu0
    %v5398 = vpop.f32.mrf.mxu0
    %v5399 = vadd.f32 %v5302, %v5398
    %v5400 = vpop.f32.mrf.mxu0
    %5401 = vdwg.mxu0
    %5402 = vst [vmem:[#allocation9] sm:$0xff] %v5340
    %5403 = vst [vmem:[#allocation9 + $0x8] sm:$0xff] %v5343
    %5404 = vst [vmem:[#allocation9 + $0x10] sm:$0xff] %v5348
    %5405 = vst [vmem:[#allocation9 + $0x18] sm:$0xff] %v5351
    %5406 = vst [vmem:[#allocation9 + $0x20] sm:$0xff] %v5356
    %5407 = vst [vmem:[#allocation9 + $0x28] sm:$0xff] %v5359
    %5408 = vst [vmem:[#allocation9 + $0x30] sm:$0xff] %v5364
    %5409 = vst [vmem:[#allocation9 + $0x38] sm:$0xff] %v5367
    %5410 = vst [vmem:[#allocation9 + $0x40] sm:$0xff] %v5372
    %5411 = vst [vmem:[#allocation9 + $0x48] sm:$0xff] %v5375
    %5412 = vst [vmem:[#allocation9 + $0x50] sm:$0xff] %v5380
    %5413 = vst [vmem:[#allocation9 + $0x58] sm:$0xff] %v5383
    %5414 = vst [vmem:[#allocation9 + $0x60] sm:$0xff] %v5388
    %5415 = vst [vmem:[#allocation9 + $0x68] sm:$0xff] %v5391
    %5416 = vst [vmem:[#allocation9 + $0x70] sm:$0xff] %v5396
    %5417 = vst [vmem:[#allocation9 + $0x78] sm:$0xff] %v5399
    // Predicated region
    $region58: #{tpu_custom_call.1} parent=1 // pred_check
      _
    $region59: #{tpu_custom_call.1} parent=1 // pred_check_branch
      %5419 = sbr.rel (0) target = $region61
    $region60: #{tpu_custom_call.1} parent=1 // pred_region
      %s5421 = ssub.s32 2048, 2048
      %5422 = vsyncadd [#allocation6], %s5421
      %s5423 = sshll.u32 [#allocation9], 4
      %s5424 = int_to_ptr.vmem [resolvable:$true] %s5423
      %5429 = dma.vmem_to_hbm [thread:$0]  %s5424, 2048, %s12, [#allocation6], 128, 128, 8
    $region61: #{tpu_custom_call.1} parent=1 // pred_fallthru
      _
    // Predicated region
    $region62: #{tpu_custom_call.1} parent=1 // pred_check
      _
    $region63: #{tpu_custom_call.1} parent=1 // pred_check_branch
      %5431 = sbr.rel (0) target = $region65
    $region64: #{tpu_custom_call.1} parent=1 // pred_region
      %5432 = dma.done [#allocation6], 2048
    $region65: #{tpu_custom_call.1} parent=1 // pred_fallthru
      _
    %5433 = vsyncpa [#allocation5], 1
    %5434 = vsyncpa [#allocation8], 1
    %5435 = vsyncpa [#allocation6], 1

</llo_original>
